<compile_context>
chip_gen: v7x
topology: tpu7x:2x2x1
jax: 0.10.0
libtpu: 0.0.40
codegen_flags: <defaults>
</compile_context>

<pallas_src>
import jax
import jax.numpy as jnp
import numpy as np
from jax.experimental import pallas as pl
from jax.experimental.pallas import tpu as pltpu

# ---------------- configuration (P4DConv hyper-parameters) ----------------
B = 2             # batch
T = 8             # frames
N = 16            # points per frame
C_IN = 8          # in_planes
MLP_PLANES = [32, 32]
RADIUS = 2.0      # spatial_kernel_size[0] (large enough: points are in [0,1)^3)
K = 8             # spatial_kernel_size[1] (neighbors per ball)
SPATIAL_STRIDE = 2
TK = 3            # temporal_kernel_size (odd)
TEMPORAL_STRIDE = 1
TPAD = (1, 1)     # temporal_padding, mode='replicate'
# operator='+', spatial_pooling='max', temporal_pooling='sum', bias=False
M = N // SPATIAL_STRIDE                       # anchors per frame (8)
KM = K * M                                    # 64
C0, C1 = MLP_PLANES                           # 32, 32
CH = 4 + C_IN                                 # 12 channels: xyz disp + t disp + feats
TP = (T + sum(TPAD) - TK) // TEMPORAL_STRIDE + 1   # output frames (8)
R = TP * TK * KM                              # 1536 rows per batch element
BN_EPS = 1e-5


# ----------------------------- JAX glue ops --------------------------------
# TODO(synk): FPS / ball_query / grouping are data-dependent point ops with no
# clean Pallas equivalent; they stay as plain JAX (XLA) glue before the kernel.
def furthest_point_sample(xyz, m):
    """xyz: (B, N, 3) -> (B, m) int32 indices (first point = index 0)."""
    b, n, _ = xyz.shape

    def body(i, state):
        distance, idx, farthest = state
        idx = idx.at[:, i].set(farthest)
        centroid = jax.vmap(lambda x, f: x[f])(xyz, farthest)[:, None, :]   # (B,1,3)
        d = jnp.sum((xyz - centroid) ** 2, axis=-1)                          # (B,N)
        distance = jnp.minimum(distance, d)
        farthest = jnp.argmax(distance, axis=-1).astype(jnp.int32)
        return distance, idx, farthest

    distance0 = jnp.full((b, n), 1e10, jnp.float32)
    idx0 = jnp.zeros((b, m), jnp.int32)
    far0 = jnp.zeros((b,), jnp.int32)
    _, idx, _ = jax.lax.fori_loop(0, m, body, (distance0, idx0, far0))
    return idx


def ball_query(radius, k, neighbor_xyz, anchor_xyz):
    """neighbor: (B,N,3), anchor: (B,M,3) -> (B,M,k) indices (first-k-in-ball,
    padded with the first found index, as in pointnet2 CUDA)."""
    n = neighbor_xyz.shape[1]
    d2 = jnp.sum((anchor_xyz[:, :, None, :] - neighbor_xyz[:, None, :, :]) ** 2, axis=-1)
    mask = d2 < radius * radius
    ar = jnp.arange(n, dtype=jnp.int32)
    keys = jnp.where(mask, ar, n + ar)
    order = jnp.argsort(keys, axis=-1).astype(jnp.int32)   # valid first, index order
    idx = order[..., :k]
    cnt = jnp.sum(mask, axis=-1)
    slot_ok = jnp.arange(k)[None, None, :] < cnt[..., None]
    idx = jnp.where(slot_ok, idx, idx[..., :1])
    return idx


def grouping_operation(features, idx):
    """features: (B, C, N), idx: (B, M, K) -> (B, C, M, K)."""
    return jax.vmap(lambda f, i: f[:, i])(features, idx)


# ---------------------------- Pallas kernel --------------------------------
def p4d_kernel(x_ref, w1_ref, b1_ref, w2_ref, b2_ref, out_ref):
    # x_ref : (1, R, CH)      bf16  rows ordered (t', j, k, m), m fastest
    # w1_ref: (CH, 2*C0)      bf16  block-diag [[wd*sd, 0], [0, wf*sf]]
    # b1_ref: (1, 2*C0)       f32   [bd | bf]
    # w2_ref: (C0, C1)        bf16  wm*sm
    # b2_ref: (1, C1)         f32   bm
    # out_ref: (1, TP, M*C1)  f32   lane-dense (256 lanes)
    x = x_ref[0]                                                     # (R, CH)

    # fused conv_d | conv_f: one MXU matmul + bias + ReLU over 64 lanes
    h = jnp.dot(x, w1_ref[...], preferred_element_type=jnp.float32)  # (R, 2*C0) f32
    h = jnp.maximum(h + b1_ref[...], 0.0)

    # operator '+': relu(conv_d(disp)) + relu(conv_f(feat))
    h = h[:, :C0] + h[:, C0:]                                        # (R, C0) f32

    # mlp layer: 1x1 conv (bf16 MXU) + folded BN bias + ReLU (f32)
    h = jnp.dot(h.astype(jnp.bfloat16), w2_ref[...],
                preferred_element_type=jnp.float32)                  # (R, C1) f32
    h = jnp.maximum(h + b2_ref[...], 0.0)

    # spatial max over K, then temporal sum over TK  (rows = (t', j, k, m))
    h = h.reshape(TP, TK, K, M, C1)
    h = jnp.sum(jnp.max(h, axis=2), axis=1)                          # (TP, M, C1)

    # lane-dense store: (TP, M*C1) with M*C1 = 256 lanes
    out_ref[0] = jnp.concatenate([h[:, m, :] for m in range(M)], axis=-1)


def run_pallas(x_all, w1, b1, w2, b2):
    """x_all: (B, R, CH) f32 -> (B, TP, M*C1) f32."""
    b = x_all.shape[0]
    return pl.pallas_call(
        p4d_kernel,
        out_shape=jax.ShapeDtypeStruct((b, TP, M * C1), jnp.float32),
        grid=(b,),
        in_specs=[
            pl.BlockSpec((1, R, CH), lambda i: (i, 0, 0)),
            pl.BlockSpec((CH, 2 * C0), lambda i: (0, 0)),
            pl.BlockSpec((1, 2 * C0), lambda i: (0, 0)),
            pl.BlockSpec((C0, C1), lambda i: (0, 0)),
            pl.BlockSpec((1, C1), lambda i: (0, 0)),
        ],
        out_specs=pl.BlockSpec((1, TP, M * C1), lambda i: (i, 0, 0)),
        compiler_params=pltpu.CompilerParams(
            dimension_semantics=("parallel",)),   # v7x: one batch per TensorCore
    )(x_all.astype(jnp.bfloat16), w1.astype(jnp.bfloat16), b1,
      w2.astype(jnp.bfloat16), b2)


# ------------------------------- wrapper ------------------------------------
def fuse_params(params):
    """Fold BN scales into weights; build block-diagonal fused conv_d|conv_f."""
    wd, sd, bd, wf, sf, bf, wm, sm, bm = params
    w1 = jnp.zeros((CH, 2 * C0), jnp.float32)
    w1 = w1.at[:4, :C0].set(wd * sd).at[4:, C0:].set(wf * sf)
    b1 = jnp.concatenate([bd, bf], axis=-1)       # (1, 2*C0)
    w2 = wm * sm                                  # (C0, C1)
    b2 = bm                                       # (1, C1)
    return w1, b1, w2, b2


def p4dconv_forward(xyzs, features, fused_params):
    """xyzs: (B,T,N,3), features: (B,T,C_IN,N) -> (new_xyzs, new_features, ...)."""
    b = xyzs.shape[0]
    # temporal 'replicate' padding
    xyz_list = [xyzs[:, 0]] * TPAD[0] + [xyzs[:, t] for t in range(T)] + [xyzs[:, -1]] * TPAD[1]
    feat_list = [features[:, 0]] * TPAD[0] + [features[:, t] for t in range(T)] + [features[:, -1]] * TPAD[1]
    L = len(xyz_list)

    new_xyzs, blocks = [], []
    for t in range(TK // 2, L - TK // 2, TEMPORAL_STRIDE):
        anchor_idx = furthest_point_sample(xyz_list[t], M)                     # (B, M)
        anchor_xyz = jax.vmap(lambda x, i: x[i])(xyz_list[t], anchor_idx)      # (B, M, 3)
        new_xyzs.append(anchor_xyz)
        anchor_flipped = anchor_xyz.transpose(0, 2, 1)                         # (B, 3, M)

        rows_j = []
        for j in range(TK):
            i = t - TK // 2 + j
            nb = xyz_list[i]
            idx = ball_query(RADIUS, K, nb, anchor_xyz)                        # (B, M, K)
            grouped = grouping_operation(nb.transpose(0, 2, 1), idx)           # (B, 3, M, K)
            disp = grouped - anchor_flipped[..., None]                         # (B, 3, M, K)
            tdisp = jnp.full((b, 1, M, K), float(i - t), jnp.float32)
            fg = grouping_operation(feat_list[i], idx)                         # (B, C_IN, M, K)
            x = jnp.concatenate([disp, tdisp, fg], axis=1)                     # (B, CH, M, K)
            rows_j.append(x.transpose(0, 3, 2, 1).reshape(b, KM, CH))          # rows: k*M + m
        blocks.append(jnp.stack(rows_j, axis=1))                               # (B, TK, KM, CH)

    x_all = jnp.stack(blocks, axis=1).reshape(b, R, CH)       # (B, R, CH), rows (t',j,k,m)
    new_xyzs = jnp.stack(new_xyzs, axis=1)                    # (B, T', M, 3)

    out = run_pallas(x_all, *fused_params)                    # (B, T', M*C1), lane-dense
    new_features = out.reshape(b, TP, M, C1).transpose(0, 1, 3, 2)   # (B, T', C1, M)
    return new_xyzs, new_features, x_all, out


# pure-JAX reference of the kernel math (same bf16 matmul / f32 elementwise)
def ref_compute(x_all, fused_params):
    w1, b1, w2, b2 = fused_params
    xb = x_all.astype(jnp.bfloat16)
    h = jnp.dot(xb, w1.astype(jnp.bfloat16), preferred_element_type=jnp.float32)
    h = jnp.maximum(h + b1, 0.0)
    h = h[..., :C0] + h[..., C0:]
    h = jnp.dot(h.astype(jnp.bfloat16), w2.astype(jnp.bfloat16),
                preferred_element_type=jnp.float32)
    h = jnp.maximum(h + b2, 0.0)
    h = h.reshape(-1, TP, TK, K, M, C1)
    h = jnp.max(h, axis=3)     # spatial 'max' pooling over K
    h = jnp.sum(h, axis=2)     # temporal 'sum' pooling
    return h                   # (B, T', M, C1)


def make_params(key):
    """Deterministic weights + eval-mode BatchNorm folded to per-channel scale/bias."""
    ks = jax.random.split(key, 12)

    def bn_fold(k, c):
        k1, k2, k3, k4 = jax.random.split(k, 4)
        gamma = 1.0 + 0.05 * jax.random.normal(k1, (1, c), jnp.float32)
        beta = 0.05 * jax.random.normal(k2, (1, c), jnp.float32)
        mean = 0.02 * jax.random.normal(k3, (1, c), jnp.float32)
        var = 1.0 + jnp.abs(0.05 * jax.random.normal(k4, (1, c), jnp.float32))
        scale = gamma / jnp.sqrt(var + BN_EPS)
        bias = beta - mean * scale
        return scale, bias

    wd = 0.3 * jax.random.normal(ks[0], (4, C0), jnp.float32)      # conv_d weight.T
    wf = 0.3 * jax.random.normal(ks[1], (C_IN, C0), jnp.float32)   # conv_f weight.T
    wm = 0.2 * jax.random.normal(ks[2], (C0, C1), jnp.float32)     # mlp conv weight.T
    sd, bd = bn_fold(ks[3], C0)
    sf, bf = bn_fold(ks[4], C0)
    sm, bm = bn_fold(ks[5], C1)
    return (wd, sd, bd, wf, sf, bf, wm, sm, bm)


if __name__ == "__main__":
    key = jax.random.PRNGKey(0)
    kx, kf, kp = jax.random.split(key, 3)
    xyzs = jax.random.uniform(kx, (B, T, N, 3), jnp.float32)           # points in [0,1)^3
    features = 0.5 * jax.random.normal(kf, (B, T, C_IN, N), jnp.float32)
    params = make_params(kp)
    fused = fuse_params(params)

    fwd = jax.jit(p4dconv_forward)
    new_xyzs, new_features, x_all, out_kernel = fwd(xyzs, features, fused)
    jax.block_until_ready(new_features)

    ref = ref_compute(x_all, fused)                                    # (B, T', M, C1)
    np.testing.assert_allclose(np.asarray(out_kernel).reshape(B, TP, M, C1),
                               np.asarray(ref), rtol=1e-2, atol=1e-2)

    assert new_xyzs.shape == (B, TP, M, 3)
    assert new_features.shape == (B, TP, C1, M)
    print("KERNEL_OK")
</pallas_src>

<mosaic_0001>
module attributes {stable_mosaic.version = 11 : i64} {
  func.func @p4d_kernel(%arg0: i32, %arg1: memref<1x1536x12xbf16, #tpu.memory_space<vmem>>, %arg2: memref<12x64xbf16, #tpu.memory_space<vmem>>, %arg3: memref<1x64xf32, #tpu.memory_space<vmem>>, %arg4: memref<32x32xbf16, #tpu.memory_space<vmem>>, %arg5: memref<1x32xf32, #tpu.memory_space<vmem>>, %arg6: memref<1x8x256xf32, #tpu.memory_space<vmem>>) attributes {dimension_semantics = [#tpu.dimension_semantics<parallel>], iteration_bounds = array<i64: 2>, scalar_prefetch = 0 : i64, scratch_operands = 0 : i64, tpu.core_type = #tpu.core_type<tc>, window_params = [{transform_indices = @transform_0, window_bounds = array<i64: 1, 1536, 12>}, {pipeline_mode = #tpu.pipeline_mode<synchronous>, transform_indices = @transform_1, window_bounds = array<i64: 12, 64>}, {pipeline_mode = #tpu.pipeline_mode<synchronous>, transform_indices = @transform_2, window_bounds = array<i64: 1, 64>}, {pipeline_mode = #tpu.pipeline_mode<synchronous>, transform_indices = @transform_3, window_bounds = array<i64: 32, 32>}, {pipeline_mode = #tpu.pipeline_mode<synchronous>, transform_indices = @transform_4, window_bounds = array<i64: 1, 32>}, {transform_indices = @transform_5, window_bounds = array<i64: 1, 8, 256>}]} {
    %c0 = arith.constant 0 : index
    %c0_0 = arith.constant 0 : index
    %c0_1 = arith.constant 0 : index
    %0 = vector.load %arg1[%c0, %c0_0, %c0_1] : memref<1x1536x12xbf16, #tpu.memory_space<vmem>>, vector<1x1536x12xbf16>
    %1 = vector.shape_cast %0 : vector<1x1536x12xbf16> to vector<1536x12xbf16>
    %c0_2 = arith.constant 0 : index
    %c0_3 = arith.constant 0 : index
    %2 = vector.load %arg2[%c0_2, %c0_3] : memref<12x64xbf16, #tpu.memory_space<vmem>>, vector<12x64xbf16>
    %cst = arith.constant dense<0.000000e+00> : vector<1536x64xf32>
    %3 = tpu.matmul %1, %2, %cst {dimension_numbers = #tpu.dot_dimension_numbers<[1], [0], [0], [1], [0, 0, 1, 1], [], []>} : vector<1536x12xbf16>, vector<12x64xbf16>, vector<1536x64xf32> -> vector<1536x64xf32>
    %c0_4 = arith.constant 0 : index
    %c0_5 = arith.constant 0 : index
    %4 = vector.load %arg3[%c0_4, %c0_5] : memref<1x64xf32, #tpu.memory_space<vmem>>, vector<1x64xf32>
    %5 = vector.broadcast %4 : vector<1x64xf32> to vector<1536x64xf32>
    %6 = arith.addf %3, %5 : vector<1536x64xf32>
    %cst_6 = arith.constant 0.000000e+00 : f32
    %7 = vector.broadcast %cst_6 : f32 to vector<1536x64xf32>
    %8 = arith.maximumf %6, %7 : vector<1536x64xf32>
    %9 = vector.extract_strided_slice %8 {offsets = [0, 0], sizes = [1536, 32], strides = [1, 1]} : vector<1536x64xf32> to vector<1536x32xf32>
    %10 = vector.extract_strided_slice %8 {offsets = [0, 32], sizes = [1536, 32], strides = [1, 1]} : vector<1536x64xf32> to vector<1536x32xf32>
    %11 = arith.addf %9, %10 : vector<1536x32xf32>
    %12 = arith.truncf %11 : vector<1536x32xf32> to vector<1536x32xbf16>
    %c0_7 = arith.constant 0 : index
    %c0_8 = arith.constant 0 : index
    %13 = vector.load %arg4[%c0_7, %c0_8] : memref<32x32xbf16, #tpu.memory_space<vmem>>, vector<32x32xbf16>
    %cst_9 = arith.constant dense<0.000000e+00> : vector<1536x32xf32>
    %14 = tpu.matmul %12, %13, %cst_9 {dimension_numbers = #tpu.dot_dimension_numbers<[1], [0], [0], [1], [0, 0, 1, 1], [], []>} : vector<1536x32xbf16>, vector<32x32xbf16>, vector<1536x32xf32> -> vector<1536x32xf32>
    %c0_10 = arith.constant 0 : index
    %c0_11 = arith.constant 0 : index
    %15 = vector.load %arg5[%c0_10, %c0_11] : memref<1x32xf32, #tpu.memory_space<vmem>>, vector<1x32xf32>
    %16 = vector.broadcast %15 : vector<1x32xf32> to vector<1536x32xf32>
    %17 = arith.addf %14, %16 : vector<1536x32xf32>
    %cst_12 = arith.constant 0.000000e+00 : f32
    %18 = vector.broadcast %cst_12 : f32 to vector<1536x32xf32>
    %19 = arith.maximumf %17, %18 : vector<1536x32xf32>
    %20 = vector.shape_cast %19 : vector<1536x32xf32> to vector<8x3x8x8x32xf32>
    %cst_13 = arith.constant dense<0xFF800000> : vector<8x3x8x32xf32>
    %21 = vector.multi_reduction <maximumf>, %20, %cst_13 [2] : vector<8x3x8x8x32xf32> to vector<8x3x8x32xf32>
    %cst_14 = arith.constant dense<0.000000e+00> : vector<8x8x32xf32>
    %22 = vector.multi_reduction <add>, %21, %cst_14 [1] : vector<8x3x8x32xf32> to vector<8x8x32xf32>
    %23 = vector.extract_strided_slice %22 {offsets = [0, 0, 0], sizes = [8, 1, 32], strides = [1, 1, 1]} : vector<8x8x32xf32> to vector<8x1x32xf32>
    %24 = vector.shape_cast %23 : vector<8x1x32xf32> to vector<8x32xf32>
    %25 = vector.extract_strided_slice %22 {offsets = [0, 1, 0], sizes = [8, 1, 32], strides = [1, 1, 1]} : vector<8x8x32xf32> to vector<8x1x32xf32>
    %26 = vector.shape_cast %25 : vector<8x1x32xf32> to vector<8x32xf32>
    %27 = vector.extract_strided_slice %22 {offsets = [0, 2, 0], sizes = [8, 1, 32], strides = [1, 1, 1]} : vector<8x8x32xf32> to vector<8x1x32xf32>
    %28 = vector.shape_cast %27 : vector<8x1x32xf32> to vector<8x32xf32>
    %29 = vector.extract_strided_slice %22 {offsets = [0, 3, 0], sizes = [8, 1, 32], strides = [1, 1, 1]} : vector<8x8x32xf32> to vector<8x1x32xf32>
    %30 = vector.shape_cast %29 : vector<8x1x32xf32> to vector<8x32xf32>
    %31 = vector.extract_strided_slice %22 {offsets = [0, 4, 0], sizes = [8, 1, 32], strides = [1, 1, 1]} : vector<8x8x32xf32> to vector<8x1x32xf32>
    %32 = vector.shape_cast %31 : vector<8x1x32xf32> to vector<8x32xf32>
    %33 = vector.extract_strided_slice %22 {offsets = [0, 5, 0], sizes = [8, 1, 32], strides = [1, 1, 1]} : vector<8x8x32xf32> to vector<8x1x32xf32>
    %34 = vector.shape_cast %33 : vector<8x1x32xf32> to vector<8x32xf32>
    %35 = vector.extract_strided_slice %22 {offsets = [0, 6, 0], sizes = [8, 1, 32], strides = [1, 1, 1]} : vector<8x8x32xf32> to vector<8x1x32xf32>
    %36 = vector.shape_cast %35 : vector<8x1x32xf32> to vector<8x32xf32>
    %37 = vector.extract_strided_slice %22 {offsets = [0, 7, 0], sizes = [8, 1, 32], strides = [1, 1, 1]} : vector<8x8x32xf32> to vector<8x1x32xf32>
    %38 = vector.shape_cast %37 : vector<8x1x32xf32> to vector<8x32xf32>
    %39 = tpu.concatenate %24, %26, %28, %30, %32, %34, %36, %38 in 1 : vector<8x32xf32>, vector<8x32xf32>, vector<8x32xf32>, vector<8x32xf32>, vector<8x32xf32>, vector<8x32xf32>, vector<8x32xf32>, vector<8x32xf32> -> vector<8x256xf32>
    %c0_15 = arith.constant 0 : index
    %c0_16 = arith.constant 0 : index
    %c0_17 = arith.constant 0 : index
    %40 = vector.load %arg6[%c0_15, %c0_16, %c0_17] : memref<1x8x256xf32, #tpu.memory_space<vmem>>, vector<1x8x256xf32>
    %41 = vector.shape_cast %40 : vector<1x8x256xf32> to vector<8x256xf32>
    %42 = vector.shape_cast %39 : vector<8x256xf32> to vector<1x8x256xf32>
    tpu.vector_store %arg6[%c0_15, %c0_16, %c0_17], %42 {strides = array<i32>} : memref<1x8x256xf32, #tpu.memory_space<vmem>>, vector<1x8x256xf32>,
    return
  }
  func.func @transform_0(%arg0: i32) -> (i32, i32, i32) {
    %c0_i32 = arith.constant 0 : i32
    %c0_i32_0 = arith.constant 0 : i32
    %c0_i32_1 = arith.constant 0 : i32
    return %arg0, %c0_i32, %c0_i32_0 : i32, i32, i32
  }
  func.func @transform_1(%arg0: i32) -> (i32, i32) {
    %c0_i32 = arith.constant 0 : i32
    %c0_i32_0 = arith.constant 0 : i32
    %c0_i32_1 = arith.constant 0 : i32
    return %c0_i32, %c0_i32_0 : i32, i32
  }
  func.func @transform_2(%arg0: i32) -> (i32, i32) {
    %c0_i32 = arith.constant 0 : i32
    %c0_i32_0 = arith.constant 0 : i32
    %c0_i32_1 = arith.constant 0 : i32
    return %c0_i32, %c0_i32_0 : i32, i32
  }
  func.func @transform_3(%arg0: i32) -> (i32, i32) {
    %c0_i32 = arith.constant 0 : i32
    %c0_i32_0 = arith.constant 0 : i32
    %c0_i32_1 = arith.constant 0 : i32
    return %c0_i32, %c0_i32_0 : i32, i32
  }
  func.func @transform_4(%arg0: i32) -> (i32, i32) {
    %c0_i32 = arith.constant 0 : i32
    %c0_i32_0 = arith.constant 0 : i32
    %c0_i32_1 = arith.constant 0 : i32
    return %c0_i32, %c0_i32_0 : i32, i32
  }
  func.func @transform_5(%arg0: i32) -> (i32, i32, i32) {
    %c0_i32 = arith.constant 0 : i32
    %c0_i32_0 = arith.constant 0 : i32
    %c0_i32_1 = arith.constant 0 : i32
    return %arg0, %c0_i32, %c0_i32_0 : i32, i32, i32
  }
}

</mosaic_0001>

<llo_original>
// kernel: custom-call.127
$region0: #{custom-call.127}
  %s0 = inlined_call_operand.vmem [shape: f32[2,16], index: 0, kind: output, shape index: {}]

// kernel: p4dconv_forward.1
$region0: #{p4dconv_forward.1}
  #allocation0 [shape = 'u32[]', space=smem, size = 0x4, offset = 0x4, fixed_abs, tag = 'smem constant byte address 0x4 - core index']
  #allocation1 [shape = 'u32[144,128]{1,0:T(1,128)}', space=vmem, size = 0x12000, scoped, tag = 'internal scratch']
  %s0 = inlined_call_operand.vmem [shape: bf16[2,1536,12], index: 0, kind: input, shape index: {}]
  %s1 = inlined_call_operand.vmem [shape: bf16[12,64], index: 1, kind: input, shape index: {}]
  %s2 = inlined_call_operand.vmem [shape: f32[1,64], index: 2, kind: input, shape index: {}]
  %s3 = inlined_call_operand.vmem [shape: bf16[32,32], index: 3, kind: input, shape index: {}]
  %s4 = inlined_call_operand.vmem [shape: f32[1,32], index: 4, kind: input, shape index: {}]
  %s5 = inlined_call_operand.vmem [shape: f32[2,8,256], index: 5, kind: output, shape index: {}]
  %s6 = sld [smem:[#allocation0]]
  $region53: #{p4dconv_forward.1} parent=0
    _
  %s8 = ssub.s32 1, %s6
  %s9 = scalar_select 0, %s8, %s6
  loop: start=0, step=1, limit=4
  $region2: #{p4dconv_forward.1} parent=0 // loop_pre_header
    _
  $region3: #{p4dconv_forward.1} parent=0 // loop_header
    %s11 = sphi 0, %s15
    %p12 = scmp.ge.s32.totalorder %s11, 4
    %s21 = sphi 0, %s23
    %s24 = sphi 0, %s21
    %s25 = sphi 0, %s24
    %s41 = sphi 0, %s25
    %s45 = sphi 0, %s45
    %s47 = sphi 0, %s45
    %s48 = sphi 0, %s47
    %s62 = sphi 0, %s48
    %s66 = sphi 0, %s66
    %s68 = sphi 0, %s66
    %s69 = sphi 0, %s68
    %s83 = sphi 0, %s69
    %s87 = sphi 0, %s87
    %s89 = sphi 0, %s87
    %s90 = sphi 0, %s89
    %s104 = sphi 0, %s90
    %s108 = sphi 0, %s108
    %s110 = sphi 0, %s108
    %s111 = sphi 0, %s110
    %s125 = sphi 0, %s111
    %s131 = sphi 0, %s133
    %s134 = sphi 0, %s131
    %s135 = sphi 0, %s134
    %s151 = sphi 0, %s135
  $region4: #{p4dconv_forward.1} parent=0 // loop_header_branch
    %14 = sbr.rel (%p12) target = $region8
  $region5: #{p4dconv_forward.1} parent=0 // loop_body
    %s16 = ssub.s32 %s11, 1
    %s17 = ssub.s32 %s11, 2
    %s18 = sadd.s32 %s11, 1
    %s19 = ssub.s32 %s11, %s18
    %p20 = scmp.eq.s32.totalorder %s19, 0
    %s22 = sadd.s32 %s21, 1
    %s23 = scalar_select %p20, %s21, %s22
    %p26 = pneg %p20
    %p27 = scmp.eq.s32.totalorder %s11, 1
    %p28 = por %p26, %p27
    %p29 = scmp.ne.s32.totalorder %s21, %s24
    %p30 = scmp.eq.s32.totalorder %s11, 0
    %p31 = por %p29, %p30
    %p32 = scmp.ne.s32.totalorder %s21, %s24
    %p33 = scmp.eq.s32.totalorder %s16, 1
    %p34 = por %p32, %p33
    %p35 = scmp.ne.s32.totalorder %s24, %s25
    %p36 = scmp.eq.s32.totalorder %s16, 0
    %p37 = por %p35, %p36
    %p38 = scmp.ne.s32.totalorder %s24, %s25
    %p39 = scmp.eq.s32.totalorder %s17, 1
    %p40 = por %p38, %p39
    %p42 = scmp.ne.s32.totalorder %s25, %s41
    %p43 = scmp.eq.s32.totalorder %s17, 0
    %p44 = por %p42, %p43
    %s46 = sadd.s32 %s45, 1
    %p49 = scmp.eq.s32.totalorder %s11, 1
    %p50 = scmp.ne.s32.totalorder %s45, %s47
    %p51 = scmp.eq.s32.totalorder %s11, 0
    %p52 = por %p50, %p51
    %p53 = scmp.ne.s32.totalorder %s45, %s47
    %p54 = scmp.eq.s32.totalorder %s16, 1
    %p55 = por %p53, %p54
    %p56 = scmp.ne.s32.totalorder %s47, %s48
    %p57 = scmp.eq.s32.totalorder %s16, 0
    %p58 = por %p56, %p57
    %p59 = scmp.ne.s32.totalorder %s47, %s48
    %p60 = scmp.eq.s32.totalorder %s17, 1
    %p61 = por %p59, %p60
    %p63 = scmp.ne.s32.totalorder %s48, %s62
    %p64 = scmp.eq.s32.totalorder %s17, 0
    %p65 = por %p63, %p64
    %s67 = sadd.s32 %s66, 1
    %p70 = scmp.eq.s32.totalorder %s11, 1
    %p71 = scmp.ne.s32.totalorder %s66, %s68
    %p72 = scmp.eq.s32.totalorder %s11, 0
    %p73 = por %p71, %p72
    %p74 = scmp.ne.s32.totalorder %s66, %s68
    %p75 = scmp.eq.s32.totalorder %s16, 1
    %p76 = por %p74, %p75
    %p77 = scmp.ne.s32.totalorder %s68, %s69
    %p78 = scmp.eq.s32.totalorder %s16, 0
    %p79 = por %p77, %p78
    %p80 = scmp.ne.s32.totalorder %s68, %s69
    %p81 = scmp.eq.s32.totalorder %s17, 1
    %p82 = por %p80, %p81
    %p84 = scmp.ne.s32.totalorder %s69, %s83
    %p85 = scmp.eq.s32.totalorder %s17, 0
    %p86 = por %p84, %p85
    %s88 = sadd.s32 %s87, 1
    %p91 = scmp.eq.s32.totalorder %s11, 1
    %p92 = scmp.ne.s32.totalorder %s87, %s89
    %p93 = scmp.eq.s32.totalorder %s11, 0
    %p94 = por %p92, %p93
    %p95 = scmp.ne.s32.totalorder %s87, %s89
    %p96 = scmp.eq.s32.totalorder %s16, 1
    %p97 = por %p95, %p96
    %p98 = scmp.ne.s32.totalorder %s89, %s90
    %p99 = scmp.eq.s32.totalorder %s16, 0
    %p100 = por %p98, %p99
    %p101 = scmp.ne.s32.totalorder %s89, %s90
    %p102 = scmp.eq.s32.totalorder %s17, 1
    %p103 = por %p101, %p102
    %p105 = scmp.ne.s32.totalorder %s90, %s104
    %p106 = scmp.eq.s32.totalorder %s17, 0
    %p107 = por %p105, %p106
    %s109 = sadd.s32 %s108, 1
    %p112 = scmp.eq.s32.totalorder %s11, 1
    %p113 = scmp.ne.s32.totalorder %s108, %s110
    %p114 = scmp.eq.s32.totalorder %s11, 0
    %p115 = por %p113, %p114
    %p116 = scmp.ne.s32.totalorder %s108, %s110
    %p117 = scmp.eq.s32.totalorder %s16, 1
    %p118 = por %p116, %p117
    %p119 = scmp.ne.s32.totalorder %s110, %s111
    %p120 = scmp.eq.s32.totalorder %s16, 0
    %p121 = por %p119, %p120
    %p122 = scmp.ne.s32.totalorder %s110, %s111
    %p123 = scmp.eq.s32.totalorder %s17, 1
    %p124 = por %p122, %p123
    %p126 = scmp.ne.s32.totalorder %s111, %s125
    %p127 = scmp.eq.s32.totalorder %s17, 0
    %p128 = por %p126, %p127
    %s129 = ssub.s32 %s11, %s18
    %p130 = scmp.eq.s32.totalorder %s129, 0
    %s132 = sadd.s32 %s131, 1
    %s133 = scalar_select %p130, %s131, %s132
    %p136 = pneg %p130
    %p137 = scmp.eq.s32.totalorder %s11, 1
    %p138 = por %p136, %p137
    %p139 = scmp.ne.s32.totalorder %s131, %s134
    %p140 = scmp.eq.s32.totalorder %s11, 0
    %p141 = por %p139, %p140
    %p142 = scmp.ne.s32.totalorder %s131, %s134
    %p143 = scmp.eq.s32.totalorder %s16, 1
    %p144 = por %p142, %p143
    %p145 = scmp.ne.s32.totalorder %s134, %s135
    %p146 = scmp.eq.s32.totalorder %s16, 0
    %p147 = por %p145, %p146
    %p148 = scmp.ne.s32.totalorder %s134, %s135
    %p149 = scmp.eq.s32.totalorder %s17, 1
    %p150 = por %p148, %p149
    %p152 = scmp.ne.s32.totalorder %s135, %s151
    %p153 = scmp.eq.s32.totalorder %s17, 0
    %p154 = por %p152, %p153
    %p155 = scmp.le.s32.totalorder 1, %s11
    %p156 = scmp.lt.s32.totalorder %s11, 3
    %p157 = pnand %p155, %p156
    %p158 = pneg %p157
    // Predicated region
    $region9: #{p4dconv_forward.1} parent=5 // pred_check
      _
    $region10: #{p4dconv_forward.1} parent=5 // pred_check_branch
      %160 = sbr.rel (%p157) target = $region12
    $region11: #{p4dconv_forward.1} parent=5 // pred_region
      %s161 = ssub.s32 %s11, 1
      // Predicated region
      $region13: #{p4dconv_forward.1} parent=11 // pred_check
        %p162 = pneg %p58
      $region14: #{p4dconv_forward.1} parent=11 // pred_check_branch
        %164 = sbr.rel (%p162) target = $region16
      $region15: #{p4dconv_forward.1} parent=11 // pred_region
        _
      $region16: #{p4dconv_forward.1} parent=11 // pred_fallthru
        _
      // Predicated region
      $region17: #{p4dconv_forward.1} parent=11 // pred_check
        %p165 = pneg %p79
      $region18: #{p4dconv_forward.1} parent=11 // pred_check_branch
        %167 = sbr.rel (%p165) target = $region20
      $region19: #{p4dconv_forward.1} parent=11 // pred_region
        _
      $region20: #{p4dconv_forward.1} parent=11 // pred_fallthru
        _
      // Predicated region
      $region21: #{p4dconv_forward.1} parent=11 // pred_check
        %p168 = pneg %p100
      $region22: #{p4dconv_forward.1} parent=11 // pred_check_branch
        %170 = sbr.rel (%p168) target = $region24
      $region23: #{p4dconv_forward.1} parent=11 // pred_region
        _
      $region24: #{p4dconv_forward.1} parent=11 // pred_fallthru
        _
      // Predicated region
      $region25: #{p4dconv_forward.1} parent=11 // pred_check
        %p171 = pneg %p121
      $region26: #{p4dconv_forward.1} parent=11 // pred_check_branch
        %173 = sbr.rel (%p171) target = $region28
      $region27: #{p4dconv_forward.1} parent=11 // pred_region
        _
      $region28: #{p4dconv_forward.1} parent=11 // pred_fallthru
        _
    $region12: #{p4dconv_forward.1} parent=5 // pred_fallthru
      _
    %p174 = scmp.lt.s32.totalorder %s11, 2
    // Predicated region
    $region29: #{p4dconv_forward.1} parent=5 // pred_check
      %p175 = pneg %p174
    $region30: #{p4dconv_forward.1} parent=5 // pred_check_branch
      %177 = sbr.rel (%p175) target = $region32
    $region31: #{p4dconv_forward.1} parent=5 // pred_region
      // Predicated region
      $region33: #{p4dconv_forward.1} parent=31 // pred_check
        %p178 = pneg %p31
      $region34: #{p4dconv_forward.1} parent=31 // pred_check_branch
        %180 = sbr.rel (%p178) target = $region36
      $region35: #{p4dconv_forward.1} parent=31 // pred_region
        %p181 = scmp.lt.s32.totalorder %s11, 1
        %s182 = scalar_select %p181, %s11, 1
        %s183 = smul.addr %s182, 192
        %s184 = smul.addr %s183, 4
        %s185 = scalar_lea.vmem %s0, %s184
      $region36: #{p4dconv_forward.1} parent=31 // pred_fallthru
        _
    $region32: #{p4dconv_forward.1} parent=5 // pred_fallthru
      _
    %p186 = scmp.le.s32.totalorder 1, %s11
    %p187 = scmp.lt.s32.totalorder %s11, 3
    %p188 = pnand %p186, %p187
    %p189 = pneg %p188
    // Predicated region
    $region37: #{p4dconv_forward.1} parent=5 // pred_check
      _
    $region38: #{p4dconv_forward.1} parent=5 // pred_check_branch
      %191 = sbr.rel (%p188) target = $region40
    $region39: #{p4dconv_forward.1} parent=5 // pred_region
      %s192 = ssub.s32 %s11, 1
      %p193 = scmp.lt.s32.totalorder %s16, 1
      %s194 = scalar_select %p193, %s16, 1
      %s195 = smul.addr %s194, 192
      %s196 = smul.addr %s195, 4
      %s197 = scalar_lea.vmem %s0, %s196
      %p198 = pneg %p37
      %p199 = pneg %p34
      %p200 = pneg %p58
      %p201 = pneg %p55
      %p202 = pneg %p79
      %p203 = pneg %p76
      %p204 = pneg %p100
      %p205 = pneg %p97
      %p206 = pneg %p121
      %p207 = pneg %p118
      %p208 = pneg %p147
      %p209 = pneg %p144
      %p210 = scmp.lt.s32.totalorder %s16, 1
      %s211 = scalar_select %p210, %s16, 1
      %s212 = smul.addr %s211, 2
      %s213 = smul.addr %s212, 8
      %s214 = scalar_lea.vmem %s5, %s213
      %p215 = scmp.lt.s32.totalorder %s16, 1
      %s216 = scalar_select %p215, %s16, 1
      %s217 = smul.addr %s216, 192
      %s218 = smul.addr %s217, 4
      %s219 = scalar_lea.vmem %s0, %s218
      %p220 = scmp.lt.s32.totalorder %s16, 1
      %s221 = scalar_select %p220, %s16, 1
      %s222 = smul.addr %s221, 2
      %s223 = smul.addr %s222, 8
      %s224 = scalar_lea.vmem %s5, %s223
      %v226 = vld [vmem:[%s219] sm:$0xf]
      %v227 = vld [vmem:[%s219 + $0x4] sm:$0xf]
      %v228 = vld [vmem:[%s219 + $0x8] sm:$0xf]
      %v229 = vld [vmem:[%s219 + $0xc] sm:$0xf]
      %v230 = vld [vmem:[%s219 + $0x10] sm:$0xf]
      %v231 = vld [vmem:[%s219 + $0x14] sm:$0xf]
      %v232 = vld [vmem:[%s219 + $0x18] sm:$0xf]
      %v233 = vld [vmem:[%s219 + $0x1c] sm:$0xf]
      %v234 = vld [vmem:[%s219 + $0x20] sm:$0xf]
      %v235 = vld [vmem:[%s219 + $0x24] sm:$0xf]
      %v236 = vld [vmem:[%s219 + $0x28] sm:$0xf]
      %v237 = vld [vmem:[%s219 + $0x2c] sm:$0xf]
      %v238 = vld [vmem:[%s219 + $0x30] sm:$0xf]
      %v239 = vld [vmem:[%s219 + $0x34] sm:$0xf]
      %v240 = vld [vmem:[%s219 + $0x38] sm:$0xf]
      %v241 = vld [vmem:[%s219 + $0x3c] sm:$0xf]
      %v242 = vld [vmem:[%s219 + $0x40] sm:$0xf]
      %v243 = vld [vmem:[%s219 + $0x44] sm:$0xf]
      %v244 = vld [vmem:[%s219 + $0x48] sm:$0xf]
      %v245 = vld [vmem:[%s219 + $0x4c] sm:$0xf]
      %v246 = vld [vmem:[%s219 + $0x50] sm:$0xf]
      %v247 = vld [vmem:[%s219 + $0x54] sm:$0xf]
      %v248 = vld [vmem:[%s219 + $0x58] sm:$0xf]
      %v249 = vld [vmem:[%s219 + $0x5c] sm:$0xf]
      %v250 = vld [vmem:[%s219 + $0x60] sm:$0xf]
      %v251 = vld [vmem:[%s219 + $0x64] sm:$0xf]
      %v252 = vld [vmem:[%s219 + $0x68] sm:$0xf]
      %v253 = vld [vmem:[%s219 + $0x6c] sm:$0xf]
      %v254 = vld [vmem:[%s219 + $0x70] sm:$0xf]
      %v255 = vld [vmem:[%s219 + $0x74] sm:$0xf]
      %v256 = vld [vmem:[%s219 + $0x78] sm:$0xf]
      %v257 = vld [vmem:[%s219 + $0x7c] sm:$0xf]
      %v258 = vld [vmem:[%s219 + $0x80] sm:$0xf]
      %v259 = vld [vmem:[%s219 + $0x84] sm:$0xf]
      %v260 = vld [vmem:[%s219 + $0x88] sm:$0xf]
      %v261 = vld [vmem:[%s219 + $0x8c] sm:$0xf]
      %v262 = vld [vmem:[%s219 + $0x90] sm:$0xf]
      %v263 = vld [vmem:[%s219 + $0x94] sm:$0xf]
      %v264 = vld [vmem:[%s219 + $0x98] sm:$0xf]
      %v265 = vld [vmem:[%s219 + $0x9c] sm:$0xf]
      %v266 = vld [vmem:[%s219 + $0xa0] sm:$0xf]
      %v267 = vld [vmem:[%s219 + $0xa4] sm:$0xf]
      %v268 = vld [vmem:[%s219 + $0xa8] sm:$0xf]
      %v269 = vld [vmem:[%s219 + $0xac] sm:$0xf]
      %v270 = vld [vmem:[%s219 + $0xb0] sm:$0xf]
      %v271 = vld [vmem:[%s219 + $0xb4] sm:$0xf]
      %v272 = vld [vmem:[%s219 + $0xb8] sm:$0xf]
      %v273 = vld [vmem:[%s219 + $0xbc] sm:$0xf]
      %v274 = vld [vmem:[%s219 + $0xc0] sm:$0xf]
      %v275 = vld [vmem:[%s219 + $0xc4] sm:$0xf]
      %v276 = vld [vmem:[%s219 + $0xc8] sm:$0xf]
      %v277 = vld [vmem:[%s219 + $0xcc] sm:$0xf]
      %v278 = vld [vmem:[%s219 + $0xd0] sm:$0xf]
      %v279 = vld [vmem:[%s219 + $0xd4] sm:$0xf]
      %v280 = vld [vmem:[%s219 + $0xd8] sm:$0xf]
      %v281 = vld [vmem:[%s219 + $0xdc] sm:$0xf]
      %v282 = vld [vmem:[%s219 + $0xe0] sm:$0xf]
      %v283 = vld [vmem:[%s219 + $0xe4] sm:$0xf]
      %v284 = vld [vmem:[%s219 + $0xe8] sm:$0xf]
      %v285 = vld [vmem:[%s219 + $0xec] sm:$0xf]
      %v286 = vld [vmem:[%s219 + $0xf0] sm:$0xf]
      %v287 = vld [vmem:[%s219 + $0xf4] sm:$0xf]
      %v288 = vld [vmem:[%s219 + $0xf8] sm:$0xf]
      %v289 = vld [vmem:[%s219 + $0xfc] sm:$0xf]
      %v290 = vld [vmem:[%s219 + $0x100] sm:$0xf]
      %v291 = vld [vmem:[%s219 + $0x104] sm:$0xf]
      %v292 = vld [vmem:[%s219 + $0x108] sm:$0xf]
      %v293 = vld [vmem:[%s219 + $0x10c] sm:$0xf]
      %v294 = vld [vmem:[%s219 + $0x110] sm:$0xf]
      %v295 = vld [vmem:[%s219 + $0x114] sm:$0xf]
      %v296 = vld [vmem:[%s219 + $0x118] sm:$0xf]
      %v297 = vld [vmem:[%s219 + $0x11c] sm:$0xf]
      %v298 = vld [vmem:[%s219 + $0x120] sm:$0xf]
      %v299 = vld [vmem:[%s219 + $0x124] sm:$0xf]
      %v300 = vld [vmem:[%s219 + $0x128] sm:$0xf]
      %v301 = vld [vmem:[%s219 + $0x12c] sm:$0xf]
      %v302 = vld [vmem:[%s219 + $0x130] sm:$0xf]
      %v303 = vld [vmem:[%s219 + $0x134] sm:$0xf]
      %v304 = vld [vmem:[%s219 + $0x138] sm:$0xf]
      %v305 = vld [vmem:[%s219 + $0x13c] sm:$0xf]
      %v306 = vld [vmem:[%s219 + $0x140] sm:$0xf]
      %v307 = vld [vmem:[%s219 + $0x144] sm:$0xf]
      %v308 = vld [vmem:[%s219 + $0x148] sm:$0xf]
      %v309 = vld [vmem:[%s219 + $0x14c] sm:$0xf]
      %v310 = vld [vmem:[%s219 + $0x150] sm:$0xf]
      %v311 = vld [vmem:[%s219 + $0x154] sm:$0xf]
      %v312 = vld [vmem:[%s219 + $0x158] sm:$0xf]
      %v313 = vld [vmem:[%s219 + $0x15c] sm:$0xf]
      %v314 = vld [vmem:[%s219 + $0x160] sm:$0xf]
      %v315 = vld [vmem:[%s219 + $0x164] sm:$0xf]
      %v316 = vld [vmem:[%s219 + $0x168] sm:$0xf]
      %v317 = vld [vmem:[%s219 + $0x16c] sm:$0xf]
      %v318 = vld [vmem:[%s219 + $0x170] sm:$0xf]
      %v319 = vld [vmem:[%s219 + $0x174] sm:$0xf]
      %v320 = vld [vmem:[%s219 + $0x178] sm:$0xf]
      %v321 = vld [vmem:[%s219 + $0x17c] sm:$0xf]
      %v322 = vld [vmem:[%s219 + $0x180] sm:$0xf]
      %v323 = vld [vmem:[%s219 + $0x184] sm:$0xf]
      %v324 = vld [vmem:[%s219 + $0x188] sm:$0xf]
      %v325 = vld [vmem:[%s219 + $0x18c] sm:$0xf]
      %v326 = vld [vmem:[%s219 + $0x190] sm:$0xf]
      %v327 = vld [vmem:[%s219 + $0x194] sm:$0xf]
      %v328 = vld [vmem:[%s219 + $0x198] sm:$0xf]
      %v329 = vld [vmem:[%s219 + $0x19c] sm:$0xf]
      %v330 = vld [vmem:[%s219 + $0x1a0] sm:$0xf]
      %v331 = vld [vmem:[%s219 + $0x1a4] sm:$0xf]
      %v332 = vld [vmem:[%s219 + $0x1a8] sm:$0xf]
      %v333 = vld [vmem:[%s219 + $0x1ac] sm:$0xf]
      %v334 = vld [vmem:[%s219 + $0x1b0] sm:$0xf]
      %v335 = vld [vmem:[%s219 + $0x1b4] sm:$0xf]
      %v336 = vld [vmem:[%s219 + $0x1b8] sm:$0xf]
      %v337 = vld [vmem:[%s219 + $0x1bc] sm:$0xf]
      %v338 = vld [vmem:[%s219 + $0x1c0] sm:$0xf]
      %v339 = vld [vmem:[%s219 + $0x1c4] sm:$0xf]
      %v340 = vld [vmem:[%s219 + $0x1c8] sm:$0xf]
      %v341 = vld [vmem:[%s219 + $0x1cc] sm:$0xf]
      %v342 = vld [vmem:[%s219 + $0x1d0] sm:$0xf]
      %v343 = vld [vmem:[%s219 + $0x1d4] sm:$0xf]
      %v344 = vld [vmem:[%s219 + $0x1d8] sm:$0xf]
      %v345 = vld [vmem:[%s219 + $0x1dc] sm:$0xf]
      %v346 = vld [vmem:[%s219 + $0x1e0] sm:$0xf]
      %v347 = vld [vmem:[%s219 + $0x1e4] sm:$0xf]
      %v348 = vld [vmem:[%s219 + $0x1e8] sm:$0xf]
      %v349 = vld [vmem:[%s219 + $0x1ec] sm:$0xf]
      %v350 = vld [vmem:[%s219 + $0x1f0] sm:$0xf]
      %v351 = vld [vmem:[%s219 + $0x1f4] sm:$0xf]
      %v352 = vld [vmem:[%s219 + $0x1f8] sm:$0xf]
      %v353 = vld [vmem:[%s219 + $0x1fc] sm:$0xf]
      %v354 = vld [vmem:[%s219 + $0x200] sm:$0xf]
      %v355 = vld [vmem:[%s219 + $0x204] sm:$0xf]
      %v356 = vld [vmem:[%s219 + $0x208] sm:$0xf]
      %v357 = vld [vmem:[%s219 + $0x20c] sm:$0xf]
      %v358 = vld [vmem:[%s219 + $0x210] sm:$0xf]
      %v359 = vld [vmem:[%s219 + $0x214] sm:$0xf]
      %v360 = vld [vmem:[%s219 + $0x218] sm:$0xf]
      %v361 = vld [vmem:[%s219 + $0x21c] sm:$0xf]
      %v362 = vld [vmem:[%s219 + $0x220] sm:$0xf]
      %v363 = vld [vmem:[%s219 + $0x224] sm:$0xf]
      %v364 = vld [vmem:[%s219 + $0x228] sm:$0xf]
      %v365 = vld [vmem:[%s219 + $0x22c] sm:$0xf]
      %v366 = vld [vmem:[%s219 + $0x230] sm:$0xf]
      %v367 = vld [vmem:[%s219 + $0x234] sm:$0xf]
      %v368 = vld [vmem:[%s219 + $0x238] sm:$0xf]
      %v369 = vld [vmem:[%s219 + $0x23c] sm:$0xf]
      %v370 = vld [vmem:[%s219 + $0x240] sm:$0xf]
      %v371 = vld [vmem:[%s219 + $0x244] sm:$0xf]
      %v372 = vld [vmem:[%s219 + $0x248] sm:$0xf]
      %v373 = vld [vmem:[%s219 + $0x24c] sm:$0xf]
      %v374 = vld [vmem:[%s219 + $0x250] sm:$0xf]
      %v375 = vld [vmem:[%s219 + $0x254] sm:$0xf]
      %v376 = vld [vmem:[%s219 + $0x258] sm:$0xf]
      %v377 = vld [vmem:[%s219 + $0x25c] sm:$0xf]
      %v378 = vld [vmem:[%s219 + $0x260] sm:$0xf]
      %v379 = vld [vmem:[%s219 + $0x264] sm:$0xf]
      %v380 = vld [vmem:[%s219 + $0x268] sm:$0xf]
      %v381 = vld [vmem:[%s219 + $0x26c] sm:$0xf]
      %v382 = vld [vmem:[%s219 + $0x270] sm:$0xf]
      %v383 = vld [vmem:[%s219 + $0x274] sm:$0xf]
      %v384 = vld [vmem:[%s219 + $0x278] sm:$0xf]
      %v385 = vld [vmem:[%s219 + $0x27c] sm:$0xf]
      %v386 = vld [vmem:[%s219 + $0x280] sm:$0xf]
      %v387 = vld [vmem:[%s219 + $0x284] sm:$0xf]
      %v388 = vld [vmem:[%s219 + $0x288] sm:$0xf]
      %v389 = vld [vmem:[%s219 + $0x28c] sm:$0xf]
      %v390 = vld [vmem:[%s219 + $0x290] sm:$0xf]
      %v391 = vld [vmem:[%s219 + $0x294] sm:$0xf]
      %v392 = vld [vmem:[%s219 + $0x298] sm:$0xf]
      %v393 = vld [vmem:[%s219 + $0x29c] sm:$0xf]
      %v394 = vld [vmem:[%s219 + $0x2a0] sm:$0xf]
      %v395 = vld [vmem:[%s219 + $0x2a4] sm:$0xf]
      %v396 = vld [vmem:[%s219 + $0x2a8] sm:$0xf]
      %v397 = vld [vmem:[%s219 + $0x2ac] sm:$0xf]
      %v398 = vld [vmem:[%s219 + $0x2b0] sm:$0xf]
      %v399 = vld [vmem:[%s219 + $0x2b4] sm:$0xf]
      %v400 = vld [vmem:[%s219 + $0x2b8] sm:$0xf]
      %v401 = vld [vmem:[%s219 + $0x2bc] sm:$0xf]
      %v402 = vld [vmem:[%s219 + $0x2c0] sm:$0xf]
      %v403 = vld [vmem:[%s219 + $0x2c4] sm:$0xf]
      %v404 = vld [vmem:[%s219 + $0x2c8] sm:$0xf]
      %v405 = vld [vmem:[%s219 + $0x2cc] sm:$0xf]
      %v406 = vld [vmem:[%s219 + $0x2d0] sm:$0xf]
      %v407 = vld [vmem:[%s219 + $0x2d4] sm:$0xf]
      %v408 = vld [vmem:[%s219 + $0x2d8] sm:$0xf]
      %v409 = vld [vmem:[%s219 + $0x2dc] sm:$0xf]
      %v410 = vld [vmem:[%s219 + $0x2e0] sm:$0xf]
      %v411 = vld [vmem:[%s219 + $0x2e4] sm:$0xf]
      %v412 = vld [vmem:[%s219 + $0x2e8] sm:$0xf]
      %v413 = vld [vmem:[%s219 + $0x2ec] sm:$0xf]
      %v414 = vld [vmem:[%s219 + $0x2f0] sm:$0xf]
      %v415 = vld [vmem:[%s219 + $0x2f4] sm:$0xf]
      %v416 = vld [vmem:[%s219 + $0x2f8] sm:$0xf]
      %v417 = vld [vmem:[%s219 + $0x2fc] sm:$0xf]
      %v418 = vld [vmem:[%s1] sm:$0xf]
      %v419 = vld [vmem:[%s1 + $0x4] sm:$0x3]
      %v420 = vld [vmem:[%s2] sm:$0x1]
      %v422 = vlaneseq
      %v423 = vshrl.u32 %v422, 7
      %v424 = vsub.s32 0, %v423
      %v425 = vrot.slane %v420, %v424
      %v619 = vunpack.c.l.b16 %v226
      %v620 = vunpack.c.l.b16 %v227
      %v621 = vunpack.c.l.b16 %v228
      %v622 = vunpack.c.l.b16 %v229
      %v623 = vunpack.c.l.b16 %v230
      %v624 = vunpack.c.l.b16 %v231
      %v625 = vunpack.c.l.b16 %v232
      %v626 = vunpack.c.l.b16 %v233
      %v627 = vunpack.c.l.b16 %v234
      %v628 = vunpack.c.l.b16 %v235
      %v629 = vunpack.c.l.b16 %v236
      %v630 = vunpack.c.l.b16 %v237
      %v631 = vunpack.c.l.b16 %v238
      %v632 = vunpack.c.l.b16 %v239
      %v633 = vunpack.c.l.b16 %v240
      %v634 = vunpack.c.l.b16 %v241
      %v635 = vunpack.c.l.b16 %v242
      %v636 = vunpack.c.l.b16 %v243
      %v637 = vunpack.c.l.b16 %v244
      %v638 = vunpack.c.l.b16 %v245
      %v639 = vunpack.c.l.b16 %v246
      %v640 = vunpack.c.l.b16 %v247
      %v641 = vunpack.c.l.b16 %v248
      %v642 = vunpack.c.l.b16 %v249
      %v643 = vunpack.c.l.b16 %v250
      %v644 = vunpack.c.l.b16 %v251
      %v645 = vunpack.c.l.b16 %v252
      %v646 = vunpack.c.l.b16 %v253
      %v647 = vunpack.c.l.b16 %v254
      %v648 = vunpack.c.l.b16 %v255
      %v649 = vunpack.c.l.b16 %v256
      %v650 = vunpack.c.l.b16 %v257
      %v651 = vunpack.c.l.b16 %v258
      %v652 = vunpack.c.l.b16 %v259
      %v653 = vunpack.c.l.b16 %v260
      %v654 = vunpack.c.l.b16 %v261
      %v655 = vunpack.c.l.b16 %v262
      %v656 = vunpack.c.l.b16 %v263
      %v657 = vunpack.c.l.b16 %v264
      %v658 = vunpack.c.l.b16 %v265
      %v659 = vunpack.c.l.b16 %v266
      %v660 = vunpack.c.l.b16 %v267
      %v661 = vunpack.c.l.b16 %v268
      %v662 = vunpack.c.l.b16 %v269
      %v663 = vunpack.c.l.b16 %v270
      %v664 = vunpack.c.l.b16 %v271
      %v665 = vunpack.c.l.b16 %v272
      %v666 = vunpack.c.l.b16 %v273
      %v667 = vunpack.c.l.b16 %v274
      %v668 = vunpack.c.l.b16 %v275
      %v669 = vunpack.c.l.b16 %v276
      %v670 = vunpack.c.l.b16 %v277
      %v671 = vunpack.c.l.b16 %v278
      %v672 = vunpack.c.l.b16 %v279
      %v673 = vunpack.c.l.b16 %v280
      %v674 = vunpack.c.l.b16 %v281
      %v675 = vunpack.c.l.b16 %v282
      %v676 = vunpack.c.l.b16 %v283
      %v677 = vunpack.c.l.b16 %v284
      %v678 = vunpack.c.l.b16 %v285
      %v679 = vunpack.c.l.b16 %v286
      %v680 = vunpack.c.l.b16 %v287
      %v681 = vunpack.c.l.b16 %v288
      %v682 = vunpack.c.l.b16 %v289
      %v683 = vunpack.c.l.b16 %v290
      %v684 = vunpack.c.l.b16 %v291
      %v685 = vunpack.c.l.b16 %v292
      %v686 = vunpack.c.l.b16 %v293
      %v687 = vunpack.c.l.b16 %v294
      %v688 = vunpack.c.l.b16 %v295
      %v689 = vunpack.c.l.b16 %v296
      %v690 = vunpack.c.l.b16 %v297
      %v691 = vunpack.c.l.b16 %v298
      %v692 = vunpack.c.l.b16 %v299
      %v693 = vunpack.c.l.b16 %v300
      %v694 = vunpack.c.l.b16 %v301
      %v695 = vunpack.c.l.b16 %v302
      %v696 = vunpack.c.l.b16 %v303
      %v697 = vunpack.c.l.b16 %v304
      %v698 = vunpack.c.l.b16 %v305
      %v699 = vunpack.c.l.b16 %v306
      %v700 = vunpack.c.l.b16 %v307
      %v701 = vunpack.c.l.b16 %v308
      %v702 = vunpack.c.l.b16 %v309
      %v703 = vunpack.c.l.b16 %v310
      %v704 = vunpack.c.l.b16 %v311
      %v705 = vunpack.c.l.b16 %v312
      %v706 = vunpack.c.l.b16 %v313
      %v707 = vunpack.c.l.b16 %v314
      %v708 = vunpack.c.l.b16 %v315
      %v709 = vunpack.c.l.b16 %v316
      %v710 = vunpack.c.l.b16 %v317
      %v711 = vunpack.c.l.b16 %v318
      %v712 = vunpack.c.l.b16 %v319
      %v713 = vunpack.c.l.b16 %v320
      %v714 = vunpack.c.l.b16 %v321
      %v715 = vunpack.c.l.b16 %v322
      %v716 = vunpack.c.l.b16 %v323
      %v717 = vunpack.c.l.b16 %v324
      %v718 = vunpack.c.l.b16 %v325
      %v719 = vunpack.c.l.b16 %v326
      %v720 = vunpack.c.l.b16 %v327
      %v721 = vunpack.c.l.b16 %v328
      %v722 = vunpack.c.l.b16 %v329
      %v723 = vunpack.c.l.b16 %v330
      %v724 = vunpack.c.l.b16 %v331
      %v725 = vunpack.c.l.b16 %v332
      %v726 = vunpack.c.l.b16 %v333
      %v727 = vunpack.c.l.b16 %v334
      %v728 = vunpack.c.l.b16 %v335
      %v729 = vunpack.c.l.b16 %v336
      %v730 = vunpack.c.l.b16 %v337
      %v731 = vunpack.c.l.b16 %v338
      %v732 = vunpack.c.l.b16 %v339
      %v733 = vunpack.c.l.b16 %v340
      %v734 = vunpack.c.l.b16 %v341
      %v735 = vunpack.c.l.b16 %v342
      %v736 = vunpack.c.l.b16 %v343
      %v737 = vunpack.c.l.b16 %v344
      %v738 = vunpack.c.l.b16 %v345
      %v739 = vunpack.c.l.b16 %v346
      %v740 = vunpack.c.l.b16 %v347
      %v741 = vunpack.c.l.b16 %v348
      %v742 = vunpack.c.l.b16 %v349
      %v743 = vunpack.c.l.b16 %v350
      %v744 = vunpack.c.l.b16 %v351
      %v745 = vunpack.c.l.b16 %v352
      %v746 = vunpack.c.l.b16 %v353
      %v747 = vunpack.c.l.b16 %v354
      %v748 = vunpack.c.l.b16 %v355
      %v749 = vunpack.c.l.b16 %v356
      %v750 = vunpack.c.l.b16 %v357
      %v751 = vunpack.c.l.b16 %v358
      %v752 = vunpack.c.l.b16 %v359
      %v753 = vunpack.c.l.b16 %v360
      %v754 = vunpack.c.l.b16 %v361
      %v755 = vunpack.c.l.b16 %v362
      %v756 = vunpack.c.l.b16 %v363
      %v757 = vunpack.c.l.b16 %v364
      %v758 = vunpack.c.l.b16 %v365
      %v759 = vunpack.c.l.b16 %v366
      %v760 = vunpack.c.l.b16 %v367
      %v761 = vunpack.c.l.b16 %v368
      %v762 = vunpack.c.l.b16 %v369
      %v763 = vunpack.c.l.b16 %v370
      %v764 = vunpack.c.l.b16 %v371
      %v765 = vunpack.c.l.b16 %v372
      %v766 = vunpack.c.l.b16 %v373
      %v767 = vunpack.c.l.b16 %v374
      %v768 = vunpack.c.l.b16 %v375
      %v769 = vunpack.c.l.b16 %v376
      %v770 = vunpack.c.l.b16 %v377
      %v771 = vunpack.c.l.b16 %v378
      %v772 = vunpack.c.l.b16 %v379
      %v773 = vunpack.c.l.b16 %v380
      %v774 = vunpack.c.l.b16 %v381
      %v775 = vunpack.c.l.b16 %v382
      %v776 = vunpack.c.l.b16 %v383
      %v777 = vunpack.c.l.b16 %v384
      %v778 = vunpack.c.l.b16 %v385
      %v779 = vunpack.c.l.b16 %v386
      %v780 = vunpack.c.l.b16 %v387
      %v781 = vunpack.c.l.b16 %v388
      %v782 = vunpack.c.l.b16 %v389
      %v783 = vunpack.c.l.b16 %v390
      %v784 = vunpack.c.l.b16 %v391
      %v785 = vunpack.c.l.b16 %v392
      %v786 = vunpack.c.l.b16 %v393
      %v787 = vunpack.c.l.b16 %v394
      %v788 = vunpack.c.l.b16 %v395
      %v789 = vunpack.c.l.b16 %v396
      %v790 = vunpack.c.l.b16 %v397
      %v791 = vunpack.c.l.b16 %v398
      %v792 = vunpack.c.l.b16 %v399
      %v793 = vunpack.c.l.b16 %v400
      %v794 = vunpack.c.l.b16 %v401
      %v795 = vunpack.c.l.b16 %v402
      %v796 = vunpack.c.l.b16 %v403
      %v797 = vunpack.c.l.b16 %v404
      %v798 = vunpack.c.l.b16 %v405
      %v799 = vunpack.c.l.b16 %v406
      %v800 = vunpack.c.l.b16 %v407
      %v801 = vunpack.c.l.b16 %v408
      %v802 = vunpack.c.l.b16 %v409
      %v803 = vunpack.c.l.b16 %v410
      %v804 = vunpack.c.l.b16 %v411
      %v805 = vunpack.c.l.b16 %v412
      %v806 = vunpack.c.l.b16 %v413
      %v807 = vunpack.c.l.b16 %v414
      %v808 = vunpack.c.l.b16 %v415
      %v809 = vunpack.c.l.b16 %v416
      %v810 = vunpack.c.l.b16 %v417
      %v811 = vpack.c.b16 %v620, %v619
      %v812 = vpack.c.b16 %v622, %v621
      %v813 = vpack.c.b16 %v624, %v623
      %v814 = vpack.c.b16 %v626, %v625
      %v815 = vpack.c.b16 %v628, %v627
      %v816 = vpack.c.b16 %v630, %v629
      %v817 = vpack.c.b16 %v632, %v631
      %v818 = vpack.c.b16 %v634, %v633
      %v819 = vpack.c.b16 %v636, %v635
      %v820 = vpack.c.b16 %v638, %v637
      %v821 = vpack.c.b16 %v640, %v639
      %v822 = vpack.c.b16 %v642, %v641
      %v823 = vpack.c.b16 %v644, %v643
      %v824 = vpack.c.b16 %v646, %v645
      %v825 = vpack.c.b16 %v648, %v647
      %v826 = vpack.c.b16 %v650, %v649
      %v827 = vpack.c.b16 %v652, %v651
      %v828 = vpack.c.b16 %v654, %v653
      %v829 = vpack.c.b16 %v656, %v655
      %v830 = vpack.c.b16 %v658, %v657
      %v831 = vpack.c.b16 %v660, %v659
      %v832 = vpack.c.b16 %v662, %v661
      %v833 = vpack.c.b16 %v664, %v663
      %v834 = vpack.c.b16 %v666, %v665
      %v835 = vpack.c.b16 %v668, %v667
      %v836 = vpack.c.b16 %v670, %v669
      %v837 = vpack.c.b16 %v672, %v671
      %v838 = vpack.c.b16 %v674, %v673
      %v839 = vpack.c.b16 %v676, %v675
      %v840 = vpack.c.b16 %v678, %v677
      %v841 = vpack.c.b16 %v680, %v679
      %v842 = vpack.c.b16 %v682, %v681
      %v843 = vpack.c.b16 %v684, %v683
      %v844 = vpack.c.b16 %v686, %v685
      %v845 = vpack.c.b16 %v688, %v687
      %v846 = vpack.c.b16 %v690, %v689
      %v847 = vpack.c.b16 %v692, %v691
      %v848 = vpack.c.b16 %v694, %v693
      %v849 = vpack.c.b16 %v696, %v695
      %v850 = vpack.c.b16 %v698, %v697
      %v851 = vpack.c.b16 %v700, %v699
      %v852 = vpack.c.b16 %v702, %v701
      %v853 = vpack.c.b16 %v704, %v703
      %v854 = vpack.c.b16 %v706, %v705
      %v855 = vpack.c.b16 %v708, %v707
      %v856 = vpack.c.b16 %v710, %v709
      %v857 = vpack.c.b16 %v712, %v711
      %v858 = vpack.c.b16 %v714, %v713
      %v859 = vpack.c.b16 %v716, %v715
      %v860 = vpack.c.b16 %v718, %v717
      %v861 = vpack.c.b16 %v720, %v719
      %v862 = vpack.c.b16 %v722, %v721
      %v863 = vpack.c.b16 %v724, %v723
      %v864 = vpack.c.b16 %v726, %v725
      %v865 = vpack.c.b16 %v728, %v727
      %v866 = vpack.c.b16 %v730, %v729
      %v867 = vpack.c.b16 %v732, %v731
      %v868 = vpack.c.b16 %v734, %v733
      %v869 = vpack.c.b16 %v736, %v735
      %v870 = vpack.c.b16 %v738, %v737
      %v871 = vpack.c.b16 %v740, %v739
      %v872 = vpack.c.b16 %v742, %v741
      %v873 = vpack.c.b16 %v744, %v743
      %v874 = vpack.c.b16 %v746, %v745
      %v875 = vpack.c.b16 %v748, %v747
      %v876 = vpack.c.b16 %v750, %v749
      %v877 = vpack.c.b16 %v752, %v751
      %v878 = vpack.c.b16 %v754, %v753
      %v879 = vpack.c.b16 %v756, %v755
      %v880 = vpack.c.b16 %v758, %v757
      %v881 = vpack.c.b16 %v760, %v759
      %v882 = vpack.c.b16 %v762, %v761
      %v883 = vpack.c.b16 %v764, %v763
      %v884 = vpack.c.b16 %v766, %v765
      %v885 = vpack.c.b16 %v768, %v767
      %v886 = vpack.c.b16 %v770, %v769
      %v887 = vpack.c.b16 %v772, %v771
      %v888 = vpack.c.b16 %v774, %v773
      %v889 = vpack.c.b16 %v776, %v775
      %v890 = vpack.c.b16 %v778, %v777
      %v891 = vpack.c.b16 %v780, %v779
      %v892 = vpack.c.b16 %v782, %v781
      %v893 = vpack.c.b16 %v784, %v783
      %v894 = vpack.c.b16 %v786, %v785
      %v895 = vpack.c.b16 %v788, %v787
      %v896 = vpack.c.b16 %v790, %v789
      %v897 = vpack.c.b16 %v792, %v791
      %v898 = vpack.c.b16 %v794, %v793
      %v899 = vpack.c.b16 %v796, %v795
      %v900 = vpack.c.b16 %v798, %v797
      %v901 = vpack.c.b16 %v800, %v799
      %v902 = vpack.c.b16 %v802, %v801
      %v903 = vpack.c.b16 %v804, %v803
      %v904 = vpack.c.b16 %v806, %v805
      %v905 = vpack.c.b16 %v808, %v807
      %v906 = vpack.c.b16 %v810, %v809
      %v909 = vunpack.c.l.b16 %v418
      %v910 = vunpack.c.l.b16 %v419
      %v911 = vpack.c.b16 %v910, %v909
      %vm912 = vcmask 97280
      %v914 = vsel %vm912, %v811, 0
      %v917 = vsel %vm912, %v812, 0
      %v920 = vsel %vm912, %v813, 0
      %v923 = vsel %vm912, %v814, 0
      %v926 = vsel %vm912, %v815, 0
      %v929 = vsel %vm912, %v816, 0
      %v932 = vsel %vm912, %v817, 0
      %v935 = vsel %vm912, %v818, 0
      %v938 = vsel %vm912, %v819, 0
      %v941 = vsel %vm912, %v820, 0
      %v944 = vsel %vm912, %v821, 0
      %v947 = vsel %vm912, %v822, 0
      %v950 = vsel %vm912, %v823, 0
      %v953 = vsel %vm912, %v824, 0
      %v956 = vsel %vm912, %v825, 0
      %v959 = vsel %vm912, %v826, 0
      %v962 = vsel %vm912, %v827, 0
      %v965 = vsel %vm912, %v828, 0
      %v968 = vsel %vm912, %v829, 0
      %v971 = vsel %vm912, %v830, 0
      %v974 = vsel %vm912, %v831, 0
      %v977 = vsel %vm912, %v832, 0
      %v980 = vsel %vm912, %v833, 0
      %v983 = vsel %vm912, %v834, 0
      %v986 = vsel %vm912, %v835, 0
      %v989 = vsel %vm912, %v836, 0
      %v992 = vsel %vm912, %v837, 0
      %v995 = vsel %vm912, %v838, 0
      %v998 = vsel %vm912, %v839, 0
      %v1001 = vsel %vm912, %v840, 0
      %v1004 = vsel %vm912, %v841, 0
      %v1007 = vsel %vm912, %v842, 0
      %v1010 = vsel %vm912, %v843, 0
      %v1013 = vsel %vm912, %v844, 0
      %v1016 = vsel %vm912, %v845, 0
      %v1019 = vsel %vm912, %v846, 0
      %v1022 = vsel %vm912, %v847, 0
      %v1025 = vsel %vm912, %v848, 0
      %v1028 = vsel %vm912, %v849, 0
      %v1031 = vsel %vm912, %v850, 0
      %v1034 = vsel %vm912, %v851, 0
      %v1037 = vsel %vm912, %v852, 0
      %v1040 = vsel %vm912, %v853, 0
      %v1043 = vsel %vm912, %v854, 0
      %v1046 = vsel %vm912, %v855, 0
      %v1049 = vsel %vm912, %v856, 0
      %v1052 = vsel %vm912, %v857, 0
      %v1055 = vsel %vm912, %v858, 0
      %v1058 = vsel %vm912, %v859, 0
      %v1061 = vsel %vm912, %v860, 0
      %v1064 = vsel %vm912, %v861, 0
      %v1067 = vsel %vm912, %v862, 0
      %v1070 = vsel %vm912, %v863, 0
      %v1073 = vsel %vm912, %v864, 0
      %v1076 = vsel %vm912, %v865, 0
      %v1079 = vsel %vm912, %v866, 0
      %v1082 = vsel %vm912, %v867, 0
      %v1085 = vsel %vm912, %v868, 0
      %v1088 = vsel %vm912, %v869, 0
      %v1091 = vsel %vm912, %v870, 0
      %v1094 = vsel %vm912, %v871, 0
      %v1097 = vsel %vm912, %v872, 0
      %v1100 = vsel %vm912, %v873, 0
      %v1103 = vsel %vm912, %v874, 0
      %v1106 = vsel %vm912, %v875, 0
      %v1109 = vsel %vm912, %v876, 0
      %v1112 = vsel %vm912, %v877, 0
      %v1115 = vsel %vm912, %v878, 0
      %v1118 = vsel %vm912, %v879, 0
      %v1121 = vsel %vm912, %v880, 0
      %v1124 = vsel %vm912, %v881, 0
      %v1127 = vsel %vm912, %v882, 0
      %v1130 = vsel %vm912, %v883, 0
      %v1133 = vsel %vm912, %v884, 0
      %v1136 = vsel %vm912, %v885, 0
      %v1139 = vsel %vm912, %v886, 0
      %v1142 = vsel %vm912, %v887, 0
      %v1145 = vsel %vm912, %v888, 0
      %v1148 = vsel %vm912, %v889, 0
      %v1151 = vsel %vm912, %v890, 0
      %v1154 = vsel %vm912, %v891, 0
      %v1157 = vsel %vm912, %v892, 0
      %v1160 = vsel %vm912, %v893, 0
      %v1163 = vsel %vm912, %v894, 0
      %v1166 = vsel %vm912, %v895, 0
      %v1169 = vsel %vm912, %v896, 0
      %v1172 = vsel %vm912, %v897, 0
      %v1175 = vsel %vm912, %v898, 0
      %v1178 = vsel %vm912, %v899, 0
      %v1181 = vsel %vm912, %v900, 0
      %v1184 = vsel %vm912, %v901, 0
      %v1187 = vsel %vm912, %v902, 0
      %v1190 = vsel %vm912, %v903, 0
      %v1193 = vsel %vm912, %v904, 0
      %v1196 = vsel %vm912, %v905, 0
      %v1199 = vsel %vm912, %v906, 0
      %vm1201 = vcmask 1045504
      %v1203 = vsel %vm1201, %v911, 0
      %1205 = vmatprep.subr.bf16.mxu0 0
      %1206 = vmatpush1.bf16.msra.mxu0 %v1203
      %1207 = vmatprep.subr.bf16.mxu0 0
      %1208 = vmatpush1.bf16.msra.mxu0 0
      %1209 = vmatprep.subr.bf16.mxu0 0
      %1210 = vmatpush1.bf16.msra.mxu0 0
      %1211 = vmatprep.subr.bf16.mxu0 0
      %1212 = vmatpush1.bf16.msra.mxu0 0
      %1213 = vmatprep.subr.bf16.mxu0 0
      %1214 = vmatpush1.bf16.msra.mxu0 0
      %1215 = vmatprep.subr.bf16.mxu0 0
      %1216 = vmatpush1.bf16.msra.mxu0 0
      %1217 = vmatprep.subr.bf16.mxu0 0
      %1218 = vmatpush1.bf16.msra.mxu0 0
      %1219 = vmatprep.subr.bf16.mxu0 0
      %1220 = vmatpush1.bf16.msra.mxu0 0
      %1221 = vmatprep.subr.bf16.mxu0 0
      %1222 = vmatpush1.bf16.msra.mxu0 0
      %1223 = vmatprep.subr.bf16.mxu0 0
      %1224 = vmatpush1.bf16.msra.mxu0 0
      %1225 = vmatprep.subr.bf16.mxu0 0
      %1226 = vmatpush1.bf16.msra.mxu0 0
      %1227 = vmatprep.subr.bf16.mxu0 0
      %1228 = vmatpush1.bf16.msra.mxu0 0
      %1229 = vmatprep.subr.bf16.mxu0 0
      %1230 = vmatpush1.bf16.msra.mxu0 0
      %1231 = vmatprep.subr.bf16.mxu0 0
      %1232 = vmatpush1.bf16.msra.mxu0 0
      %1233 = vmatprep.subr.bf16.mxu0 0
      %1234 = vmatpush1.bf16.msra.mxu0 0
      %1235 = vmatprep.subr.bf16.mxu0 0
      %1236 = vmatpush1.bf16.msra.mxu0 0
      %1237 = vmatprep.mubr.bf16.mxu0 0
      %1238 = vmatmul.mubr.bf16.gmra.mrb[0].mxu0 %v914
      %v1239 = vpop.f32.mrb[0].mxu0
      %v1240 = vadd.f32 %v425, %v1239
      %v1241 = vpop.f32.mrb[0].mxu0
      %v1242 = vpop.f32.mrb[0].mxu0
      %v1243 = vadd.f32 %v425, %v1242
      %v1244 = vpop.f32.mrb[0].mxu0
      %1245 = vmatprep.mubr.bf16.mxu0 0
      %1246 = vmatmul.mubr.bf16.gmra.mrb[0].mxu0 %v917
      %v1247 = vpop.f32.mrb[0].mxu0
      %v1248 = vadd.f32 %v425, %v1247
      %v1249 = vpop.f32.mrb[0].mxu0
      %v1250 = vpop.f32.mrb[0].mxu0
      %v1251 = vadd.f32 %v425, %v1250
      %v1252 = vpop.f32.mrb[0].mxu0
      %1253 = vmatprep.mubr.bf16.mxu0 0
      %1254 = vmatmul.mubr.bf16.gmra.mrb[0].mxu0 %v920
      %v1255 = vpop.f32.mrb[0].mxu0
      %v1256 = vadd.f32 %v425, %v1255
      %v1257 = vpop.f32.mrb[0].mxu0
      %v1258 = vpop.f32.mrb[0].mxu0
      %v1259 = vadd.f32 %v425, %v1258
      %v1260 = vpop.f32.mrb[0].mxu0
      %1261 = vmatprep.mubr.bf16.mxu0 0
      %1262 = vmatmul.mubr.bf16.gmra.mrb[0].mxu0 %v923
      %v1263 = vpop.f32.mrb[0].mxu0
      %v1264 = vadd.f32 %v425, %v1263
      %v1265 = vpop.f32.mrb[0].mxu0
      %v1266 = vpop.f32.mrb[0].mxu0
      %v1267 = vadd.f32 %v425, %v1266
      %v1268 = vpop.f32.mrb[0].mxu0
      %1269 = vmatprep.mubr.bf16.mxu0 0
      %1270 = vmatmul.mubr.bf16.gmra.mrb[0].mxu0 %v926
      %v1271 = vpop.f32.mrb[0].mxu0
      %v1272 = vadd.f32 %v425, %v1271
      %v1273 = vpop.f32.mrb[0].mxu0
      %v1274 = vpop.f32.mrb[0].mxu0
      %v1275 = vadd.f32 %v425, %v1274
      %v1276 = vpop.f32.mrb[0].mxu0
      %1277 = vmatprep.mubr.bf16.mxu0 0
      %1278 = vmatmul.mubr.bf16.gmra.mrb[0].mxu0 %v929
      %v1279 = vpop.f32.mrb[0].mxu0
      %v1280 = vadd.f32 %v425, %v1279
      %v1281 = vpop.f32.mrb[0].mxu0
      %v1282 = vpop.f32.mrb[0].mxu0
      %v1283 = vadd.f32 %v425, %v1282
      %v1284 = vpop.f32.mrb[0].mxu0
      %1285 = vmatprep.mubr.bf16.mxu0 0
      %1286 = vmatmul.mubr.bf16.gmra.mrb[0].mxu0 %v932
      %v1287 = vpop.f32.mrb[0].mxu0
      %v1288 = vadd.f32 %v425, %v1287
      %v1289 = vpop.f32.mrb[0].mxu0
      %v1290 = vpop.f32.mrb[0].mxu0
      %v1291 = vadd.f32 %v425, %v1290
      %v1292 = vpop.f32.mrb[0].mxu0
      %1293 = vmatprep.mubr.bf16.mxu0 0
      %1294 = vmatmul.mubr.bf16.gmra.mrb[0].mxu0 %v935
      %v1295 = vpop.f32.mrb[0].mxu0
      %v1296 = vadd.f32 %v425, %v1295
      %v1297 = vpop.f32.mrb[0].mxu0
      %v1298 = vpop.f32.mrb[0].mxu0
      %v1299 = vadd.f32 %v425, %v1298
      %v1300 = vpop.f32.mrb[0].mxu0
      %1301 = vmatprep.mubr.bf16.mxu0 0
      %1302 = vmatmul.mubr.bf16.gmra.mrb[0].mxu0 %v938
      %v1303 = vpop.f32.mrb[0].mxu0
      %v1304 = vadd.f32 %v425, %v1303
      %v1305 = vpop.f32.mrb[0].mxu0
      %v1306 = vpop.f32.mrb[0].mxu0
      %v1307 = vadd.f32 %v425, %v1306
      %v1308 = vpop.f32.mrb[0].mxu0
      %1309 = vmatprep.mubr.bf16.mxu0 0
      %1310 = vmatmul.mubr.bf16.gmra.mrb[0].mxu0 %v941
      %v1311 = vpop.f32.mrb[0].mxu0
      %v1312 = vadd.f32 %v425, %v1311
      %v1313 = vpop.f32.mrb[0].mxu0
      %v1314 = vpop.f32.mrb[0].mxu0
      %v1315 = vadd.f32 %v425, %v1314
      %v1316 = vpop.f32.mrb[0].mxu0
      %1317 = vmatprep.mubr.bf16.mxu0 0
      %1318 = vmatmul.mubr.bf16.gmra.mrb[0].mxu0 %v944
      %v1319 = vpop.f32.mrb[0].mxu0
      %v1320 = vadd.f32 %v425, %v1319
      %v1321 = vpop.f32.mrb[0].mxu0
      %v1322 = vpop.f32.mrb[0].mxu0
      %v1323 = vadd.f32 %v425, %v1322
      %v1324 = vpop.f32.mrb[0].mxu0
      %1325 = vmatprep.mubr.bf16.mxu0 0
      %1326 = vmatmul.mubr.bf16.gmra.mrb[0].mxu0 %v947
      %v1327 = vpop.f32.mrb[0].mxu0
      %v1328 = vadd.f32 %v425, %v1327
      %v1329 = vpop.f32.mrb[0].mxu0
      %v1330 = vpop.f32.mrb[0].mxu0
      %v1331 = vadd.f32 %v425, %v1330
      %v1332 = vpop.f32.mrb[0].mxu0
      %1333 = vmatprep.mubr.bf16.mxu0 0
      %1334 = vmatmul.mubr.bf16.gmra.mrb[0].mxu0 %v950
      %v1335 = vpop.f32.mrb[0].mxu0
      %v1336 = vadd.f32 %v425, %v1335
      %v1337 = vpop.f32.mrb[0].mxu0
      %v1338 = vpop.f32.mrb[0].mxu0
      %v1339 = vadd.f32 %v425, %v1338
      %v1340 = vpop.f32.mrb[0].mxu0
      %1341 = vmatprep.mubr.bf16.mxu0 0
      %1342 = vmatmul.mubr.bf16.gmra.mrb[0].mxu0 %v953
      %v1343 = vpop.f32.mrb[0].mxu0
      %v1344 = vadd.f32 %v425, %v1343
      %v1345 = vpop.f32.mrb[0].mxu0
      %v1346 = vpop.f32.mrb[0].mxu0
      %v1347 = vadd.f32 %v425, %v1346
      %v1348 = vpop.f32.mrb[0].mxu0
      %1349 = vmatprep.mubr.bf16.mxu0 0
      %1350 = vmatmul.mubr.bf16.gmra.mrb[0].mxu0 %v956
      %v1351 = vpop.f32.mrb[0].mxu0
      %v1352 = vadd.f32 %v425, %v1351
      %v1353 = vpop.f32.mrb[0].mxu0
      %v1354 = vpop.f32.mrb[0].mxu0
      %v1355 = vadd.f32 %v425, %v1354
      %v1356 = vpop.f32.mrb[0].mxu0
      %1357 = vmatprep.mubr.bf16.mxu0 0
      %1358 = vmatmul.mubr.bf16.gmra.mrb[0].mxu0 %v959
      %v1359 = vpop.f32.mrb[0].mxu0
      %v1360 = vadd.f32 %v425, %v1359
      %v1361 = vpop.f32.mrb[0].mxu0
      %v1362 = vpop.f32.mrb[0].mxu0
      %v1363 = vadd.f32 %v425, %v1362
      %v1364 = vpop.f32.mrb[0].mxu0
      %1365 = vmatprep.mubr.bf16.mxu0 0
      %1366 = vmatmul.mubr.bf16.gmra.mrb[0].mxu0 %v962
      %v1367 = vpop.f32.mrb[0].mxu0
      %v1368 = vadd.f32 %v425, %v1367
      %v1369 = vpop.f32.mrb[0].mxu0
      %v1370 = vpop.f32.mrb[0].mxu0
      %v1371 = vadd.f32 %v425, %v1370
      %v1372 = vpop.f32.mrb[0].mxu0
      %1373 = vmatprep.mubr.bf16.mxu0 0
      %1374 = vmatmul.mubr.bf16.gmra.mrb[0].mxu0 %v965
      %v1375 = vpop.f32.mrb[0].mxu0
      %v1376 = vadd.f32 %v425, %v1375
      %v1377 = vpop.f32.mrb[0].mxu0
      %v1378 = vpop.f32.mrb[0].mxu0
      %v1379 = vadd.f32 %v425, %v1378
      %v1380 = vpop.f32.mrb[0].mxu0
      %1381 = vmatprep.mubr.bf16.mxu0 0
      %1382 = vmatmul.mubr.bf16.gmra.mrb[0].mxu0 %v968
      %v1383 = vpop.f32.mrb[0].mxu0
      %v1384 = vadd.f32 %v425, %v1383
      %v1385 = vpop.f32.mrb[0].mxu0
      %v1386 = vpop.f32.mrb[0].mxu0
      %v1387 = vadd.f32 %v425, %v1386
      %v1388 = vpop.f32.mrb[0].mxu0
      %1389 = vmatprep.mubr.bf16.mxu0 0
      %1390 = vmatmul.mubr.bf16.gmra.mrb[0].mxu0 %v971
      %v1391 = vpop.f32.mrb[0].mxu0
      %v1392 = vadd.f32 %v425, %v1391
      %v1393 = vpop.f32.mrb[0].mxu0
      %v1394 = vpop.f32.mrb[0].mxu0
      %v1395 = vadd.f32 %v425, %v1394
      %v1396 = vpop.f32.mrb[0].mxu0
      %1397 = vmatprep.mubr.bf16.mxu0 0
      %1398 = vmatmul.mubr.bf16.gmra.mrb[0].mxu0 %v974
      %v1399 = vpop.f32.mrb[0].mxu0
      %v1400 = vadd.f32 %v425, %v1399
      %v1401 = vpop.f32.mrb[0].mxu0
      %v1402 = vpop.f32.mrb[0].mxu0
      %v1403 = vadd.f32 %v425, %v1402
      %v1404 = vpop.f32.mrb[0].mxu0
      %1405 = vmatprep.mubr.bf16.mxu0 0
      %1406 = vmatmul.mubr.bf16.gmra.mrb[0].mxu0 %v977
      %v1407 = vpop.f32.mrb[0].mxu0
      %v1408 = vadd.f32 %v425, %v1407
      %v1409 = vpop.f32.mrb[0].mxu0
      %v1410 = vpop.f32.mrb[0].mxu0
      %v1411 = vadd.f32 %v425, %v1410
      %v1412 = vpop.f32.mrb[0].mxu0
      %1413 = vmatprep.mubr.bf16.mxu0 0
      %1414 = vmatmul.mubr.bf16.gmra.mrb[0].mxu0 %v980
      %v1415 = vpop.f32.mrb[0].mxu0
      %v1416 = vadd.f32 %v425, %v1415
      %v1417 = vpop.f32.mrb[0].mxu0
      %v1418 = vpop.f32.mrb[0].mxu0
      %v1419 = vadd.f32 %v425, %v1418
      %v1420 = vpop.f32.mrb[0].mxu0
      %1421 = vmatprep.mubr.bf16.mxu0 0
      %1422 = vmatmul.mubr.bf16.gmra.mrb[0].mxu0 %v983
      %v1423 = vpop.f32.mrb[0].mxu0
      %v1424 = vadd.f32 %v425, %v1423
      %v1425 = vpop.f32.mrb[0].mxu0
      %v1426 = vpop.f32.mrb[0].mxu0
      %v1427 = vadd.f32 %v425, %v1426
      %v1428 = vpop.f32.mrb[0].mxu0
      %1429 = vmatprep.mubr.bf16.mxu0 0
      %1430 = vmatmul.mubr.bf16.gmra.mrb[0].mxu0 %v986
      %v1431 = vpop.f32.mrb[0].mxu0
      %v1432 = vadd.f32 %v425, %v1431
      %v1433 = vpop.f32.mrb[0].mxu0
      %v1434 = vpop.f32.mrb[0].mxu0
      %v1435 = vadd.f32 %v425, %v1434
      %v1436 = vpop.f32.mrb[0].mxu0
      %1437 = vmatprep.mubr.bf16.mxu0 0
      %1438 = vmatmul.mubr.bf16.gmra.mrb[0].mxu0 %v989
      %v1439 = vpop.f32.mrb[0].mxu0
      %v1440 = vadd.f32 %v425, %v1439
      %v1441 = vpop.f32.mrb[0].mxu0
      %v1442 = vpop.f32.mrb[0].mxu0
      %v1443 = vadd.f32 %v425, %v1442
      %v1444 = vpop.f32.mrb[0].mxu0
      %1445 = vmatprep.mubr.bf16.mxu0 0
      %1446 = vmatmul.mubr.bf16.gmra.mrb[0].mxu0 %v992
      %v1447 = vpop.f32.mrb[0].mxu0
      %v1448 = vadd.f32 %v425, %v1447
      %v1449 = vpop.f32.mrb[0].mxu0
      %v1450 = vpop.f32.mrb[0].mxu0
      %v1451 = vadd.f32 %v425, %v1450
      %v1452 = vpop.f32.mrb[0].mxu0
      %1453 = vmatprep.mubr.bf16.mxu0 0
      %1454 = vmatmul.mubr.bf16.gmra.mrb[0].mxu0 %v995
      %v1455 = vpop.f32.mrb[0].mxu0
      %v1456 = vadd.f32 %v425, %v1455
      %v1457 = vpop.f32.mrb[0].mxu0
      %v1458 = vpop.f32.mrb[0].mxu0
      %v1459 = vadd.f32 %v425, %v1458
      %v1460 = vpop.f32.mrb[0].mxu0
      %1461 = vmatprep.mubr.bf16.mxu0 0
      %1462 = vmatmul.mubr.bf16.gmra.mrb[0].mxu0 %v998
      %v1463 = vpop.f32.mrb[0].mxu0
      %v1464 = vadd.f32 %v425, %v1463
      %v1465 = vpop.f32.mrb[0].mxu0
      %v1466 = vpop.f32.mrb[0].mxu0
      %v1467 = vadd.f32 %v425, %v1466
      %v1468 = vpop.f32.mrb[0].mxu0
      %1469 = vmatprep.mubr.bf16.mxu0 0
      %1470 = vmatmul.mubr.bf16.gmra.mrb[0].mxu0 %v1001
      %v1471 = vpop.f32.mrb[0].mxu0
      %v1472 = vadd.f32 %v425, %v1471
      %v1473 = vpop.f32.mrb[0].mxu0
      %v1474 = vpop.f32.mrb[0].mxu0
      %v1475 = vadd.f32 %v425, %v1474
      %v1476 = vpop.f32.mrb[0].mxu0
      %1477 = vmatprep.mubr.bf16.mxu0 0
      %1478 = vmatmul.mubr.bf16.gmra.mrb[0].mxu0 %v1004
      %v1479 = vpop.f32.mrb[0].mxu0
      %v1480 = vadd.f32 %v425, %v1479
      %v1481 = vpop.f32.mrb[0].mxu0
      %v1482 = vpop.f32.mrb[0].mxu0
      %v1483 = vadd.f32 %v425, %v1482
      %v1484 = vpop.f32.mrb[0].mxu0
      %1485 = vmatprep.mubr.bf16.mxu0 0
      %1486 = vmatmul.mubr.bf16.gmra.mrb[0].mxu0 %v1007
      %v1487 = vpop.f32.mrb[0].mxu0
      %v1488 = vadd.f32 %v425, %v1487
      %v1489 = vpop.f32.mrb[0].mxu0
      %v1490 = vpop.f32.mrb[0].mxu0
      %v1491 = vadd.f32 %v425, %v1490
      %v1492 = vpop.f32.mrb[0].mxu0
      %1493 = vmatprep.mubr.bf16.mxu0 0
      %1494 = vmatmul.mubr.bf16.gmra.mrb[0].mxu0 %v1010
      %v1495 = vpop.f32.mrb[0].mxu0
      %v1496 = vadd.f32 %v425, %v1495
      %v1497 = vpop.f32.mrb[0].mxu0
      %v1498 = vpop.f32.mrb[0].mxu0
      %v1499 = vadd.f32 %v425, %v1498
      %v1500 = vpop.f32.mrb[0].mxu0
      %1501 = vmatprep.mubr.bf16.mxu0 0
      %1502 = vmatmul.mubr.bf16.gmra.mrb[0].mxu0 %v1013
      %v1503 = vpop.f32.mrb[0].mxu0
      %v1504 = vadd.f32 %v425, %v1503
      %v1505 = vpop.f32.mrb[0].mxu0
      %v1506 = vpop.f32.mrb[0].mxu0
      %v1507 = vadd.f32 %v425, %v1506
      %v1508 = vpop.f32.mrb[0].mxu0
      %1509 = vmatprep.mubr.bf16.mxu0 0
      %1510 = vmatmul.mubr.bf16.gmra.mrb[0].mxu0 %v1016
      %v1511 = vpop.f32.mrb[0].mxu0
      %v1512 = vadd.f32 %v425, %v1511
      %v1513 = vpop.f32.mrb[0].mxu0
      %v1514 = vpop.f32.mrb[0].mxu0
      %v1515 = vadd.f32 %v425, %v1514
      %v1516 = vpop.f32.mrb[0].mxu0
      %1517 = vmatprep.mubr.bf16.mxu0 0
      %1518 = vmatmul.mubr.bf16.gmra.mrb[0].mxu0 %v1019
      %v1519 = vpop.f32.mrb[0].mxu0
      %v1520 = vadd.f32 %v425, %v1519
      %v1521 = vpop.f32.mrb[0].mxu0
      %v1522 = vpop.f32.mrb[0].mxu0
      %v1523 = vadd.f32 %v425, %v1522
      %v1524 = vpop.f32.mrb[0].mxu0
      %1525 = vmatprep.mubr.bf16.mxu0 0
      %1526 = vmatmul.mubr.bf16.gmra.mrb[0].mxu0 %v1022
      %v1527 = vpop.f32.mrb[0].mxu0
      %v1528 = vadd.f32 %v425, %v1527
      %v1529 = vpop.f32.mrb[0].mxu0
      %v1530 = vpop.f32.mrb[0].mxu0
      %v1531 = vadd.f32 %v425, %v1530
      %v1532 = vpop.f32.mrb[0].mxu0
      %1533 = vmatprep.mubr.bf16.mxu0 0
      %1534 = vmatmul.mubr.bf16.gmra.mrb[0].mxu0 %v1025
      %v1535 = vpop.f32.mrb[0].mxu0
      %v1536 = vadd.f32 %v425, %v1535
      %v1537 = vpop.f32.mrb[0].mxu0
      %v1538 = vpop.f32.mrb[0].mxu0
      %v1539 = vadd.f32 %v425, %v1538
      %v1540 = vpop.f32.mrb[0].mxu0
      %1541 = vmatprep.mubr.bf16.mxu0 0
      %1542 = vmatmul.mubr.bf16.gmra.mrb[0].mxu0 %v1028
      %v1543 = vpop.f32.mrb[0].mxu0
      %v1544 = vadd.f32 %v425, %v1543
      %v1545 = vpop.f32.mrb[0].mxu0
      %v1546 = vpop.f32.mrb[0].mxu0
      %v1547 = vadd.f32 %v425, %v1546
      %v1548 = vpop.f32.mrb[0].mxu0
      %1549 = vmatprep.mubr.bf16.mxu0 0
      %1550 = vmatmul.mubr.bf16.gmra.mrb[0].mxu0 %v1031
      %v1551 = vpop.f32.mrb[0].mxu0
      %v1552 = vadd.f32 %v425, %v1551
      %v1553 = vpop.f32.mrb[0].mxu0
      %v1554 = vpop.f32.mrb[0].mxu0
      %v1555 = vadd.f32 %v425, %v1554
      %v1556 = vpop.f32.mrb[0].mxu0
      %1557 = vmatprep.mubr.bf16.mxu0 0
      %1558 = vmatmul.mubr.bf16.gmra.mrb[0].mxu0 %v1034
      %v1559 = vpop.f32.mrb[0].mxu0
      %v1560 = vadd.f32 %v425, %v1559
      %v1561 = vpop.f32.mrb[0].mxu0
      %v1562 = vpop.f32.mrb[0].mxu0
      %v1563 = vadd.f32 %v425, %v1562
      %v1564 = vpop.f32.mrb[0].mxu0
      %1565 = vmatprep.mubr.bf16.mxu0 0
      %1566 = vmatmul.mubr.bf16.gmra.mrb[0].mxu0 %v1037
      %v1567 = vpop.f32.mrb[0].mxu0
      %v1568 = vadd.f32 %v425, %v1567
      %v1569 = vpop.f32.mrb[0].mxu0
      %v1570 = vpop.f32.mrb[0].mxu0
      %v1571 = vadd.f32 %v425, %v1570
      %v1572 = vpop.f32.mrb[0].mxu0
      %1573 = vmatprep.mubr.bf16.mxu0 0
      %1574 = vmatmul.mubr.bf16.gmra.mrb[0].mxu0 %v1040
      %v1575 = vpop.f32.mrb[0].mxu0
      %v1576 = vadd.f32 %v425, %v1575
      %v1577 = vpop.f32.mrb[0].mxu0
      %v1578 = vpop.f32.mrb[0].mxu0
      %v1579 = vadd.f32 %v425, %v1578
      %v1580 = vpop.f32.mrb[0].mxu0
      %1581 = vmatprep.mubr.bf16.mxu0 0
      %1582 = vmatmul.mubr.bf16.gmra.mrb[0].mxu0 %v1043
      %v1583 = vpop.f32.mrb[0].mxu0
      %v1584 = vadd.f32 %v425, %v1583
      %v1585 = vpop.f32.mrb[0].mxu0
      %v1586 = vpop.f32.mrb[0].mxu0
      %v1587 = vadd.f32 %v425, %v1586
      %v1588 = vpop.f32.mrb[0].mxu0
      %1589 = vmatprep.mubr.bf16.mxu0 0
      %1590 = vmatmul.mubr.bf16.gmra.mrb[0].mxu0 %v1046
      %v1591 = vpop.f32.mrb[0].mxu0
      %v1592 = vadd.f32 %v425, %v1591
      %v1593 = vpop.f32.mrb[0].mxu0
      %v1594 = vpop.f32.mrb[0].mxu0
      %v1595 = vadd.f32 %v425, %v1594
      %v1596 = vpop.f32.mrb[0].mxu0
      %1597 = vmatprep.mubr.bf16.mxu0 0
      %1598 = vmatmul.mubr.bf16.gmra.mrb[0].mxu0 %v1049
      %v1599 = vpop.f32.mrb[0].mxu0
      %v1600 = vadd.f32 %v425, %v1599
      %v1601 = vpop.f32.mrb[0].mxu0
      %v1602 = vpop.f32.mrb[0].mxu0
      %v1603 = vadd.f32 %v425, %v1602
      %v1604 = vpop.f32.mrb[0].mxu0
      %1605 = vmatprep.mubr.bf16.mxu0 0
      %1606 = vmatmul.mubr.bf16.gmra.mrb[0].mxu0 %v1052
      %v1607 = vpop.f32.mrb[0].mxu0
      %v1608 = vadd.f32 %v425, %v1607
      %v1609 = vpop.f32.mrb[0].mxu0
      %v1610 = vpop.f32.mrb[0].mxu0
      %v1611 = vadd.f32 %v425, %v1610
      %v1612 = vpop.f32.mrb[0].mxu0
      %1613 = vmatprep.mubr.bf16.mxu0 0
      %1614 = vmatmul.mubr.bf16.gmra.mrb[0].mxu0 %v1055
      %v1615 = vpop.f32.mrb[0].mxu0
      %v1616 = vadd.f32 %v425, %v1615
      %v1617 = vpop.f32.mrb[0].mxu0
      %v1618 = vpop.f32.mrb[0].mxu0
      %v1619 = vadd.f32 %v425, %v1618
      %v1620 = vpop.f32.mrb[0].mxu0
      %1621 = vmatprep.mubr.bf16.mxu0 0
      %1622 = vmatmul.mubr.bf16.gmra.mrb[0].mxu0 %v1058
      %v1623 = vpop.f32.mrb[0].mxu0
      %v1624 = vadd.f32 %v425, %v1623
      %v1625 = vpop.f32.mrb[0].mxu0
      %v1626 = vpop.f32.mrb[0].mxu0
      %v1627 = vadd.f32 %v425, %v1626
      %v1628 = vpop.f32.mrb[0].mxu0
      %1629 = vmatprep.mubr.bf16.mxu0 0
      %1630 = vmatmul.mubr.bf16.gmra.mrb[0].mxu0 %v1061
      %v1631 = vpop.f32.mrb[0].mxu0
      %v1632 = vadd.f32 %v425, %v1631
      %v1633 = vpop.f32.mrb[0].mxu0
      %v1634 = vpop.f32.mrb[0].mxu0
      %v1635 = vadd.f32 %v425, %v1634
      %v1636 = vpop.f32.mrb[0].mxu0
      %1637 = vmatprep.mubr.bf16.mxu0 0
      %1638 = vmatmul.mubr.bf16.gmra.mrb[0].mxu0 %v1064
      %v1639 = vpop.f32.mrb[0].mxu0
      %v1640 = vadd.f32 %v425, %v1639
      %v1641 = vpop.f32.mrb[0].mxu0
      %v1642 = vpop.f32.mrb[0].mxu0
      %v1643 = vadd.f32 %v425, %v1642
      %v1644 = vpop.f32.mrb[0].mxu0
      %1645 = vmatprep.mubr.bf16.mxu0 0
      %1646 = vmatmul.mubr.bf16.gmra.mrb[0].mxu0 %v1067
      %v1647 = vpop.f32.mrb[0].mxu0
      %v1648 = vadd.f32 %v425, %v1647
      %v1649 = vpop.f32.mrb[0].mxu0
      %v1650 = vpop.f32.mrb[0].mxu0
      %v1651 = vadd.f32 %v425, %v1650
      %v1652 = vpop.f32.mrb[0].mxu0
      %1653 = vmatprep.mubr.bf16.mxu0 0
      %1654 = vmatmul.mubr.bf16.gmra.mrb[0].mxu0 %v1070
      %v1655 = vpop.f32.mrb[0].mxu0
      %v1656 = vadd.f32 %v425, %v1655
      %v1657 = vpop.f32.mrb[0].mxu0
      %v1658 = vpop.f32.mrb[0].mxu0
      %v1659 = vadd.f32 %v425, %v1658
      %v1660 = vpop.f32.mrb[0].mxu0
      %1661 = vmatprep.mubr.bf16.mxu0 0
      %1662 = vmatmul.mubr.bf16.gmra.mrb[0].mxu0 %v1073
      %v1663 = vpop.f32.mrb[0].mxu0
      %v1664 = vadd.f32 %v425, %v1663
      %v1665 = vpop.f32.mrb[0].mxu0
      %v1666 = vpop.f32.mrb[0].mxu0
      %v1667 = vadd.f32 %v425, %v1666
      %v1668 = vpop.f32.mrb[0].mxu0
      %1669 = vmatprep.mubr.bf16.mxu0 0
      %1670 = vmatmul.mubr.bf16.gmra.mrb[0].mxu0 %v1076
      %v1671 = vpop.f32.mrb[0].mxu0
      %v1672 = vadd.f32 %v425, %v1671
      %v1673 = vpop.f32.mrb[0].mxu0
      %v1674 = vpop.f32.mrb[0].mxu0
      %v1675 = vadd.f32 %v425, %v1674
      %v1676 = vpop.f32.mrb[0].mxu0
      %1677 = vmatprep.mubr.bf16.mxu0 0
      %1678 = vmatmul.mubr.bf16.gmra.mrb[0].mxu0 %v1079
      %v1679 = vpop.f32.mrb[0].mxu0
      %v1680 = vadd.f32 %v425, %v1679
      %v1681 = vpop.f32.mrb[0].mxu0
      %v1682 = vpop.f32.mrb[0].mxu0
      %v1683 = vadd.f32 %v425, %v1682
      %v1684 = vpop.f32.mrb[0].mxu0
      %1685 = vmatprep.mubr.bf16.mxu0 0
      %1686 = vmatmul.mubr.bf16.gmra.mrb[0].mxu0 %v1082
      %v1687 = vpop.f32.mrb[0].mxu0
      %v1688 = vadd.f32 %v425, %v1687
      %v1689 = vpop.f32.mrb[0].mxu0
      %v1690 = vpop.f32.mrb[0].mxu0
      %v1691 = vadd.f32 %v425, %v1690
      %v1692 = vpop.f32.mrb[0].mxu0
      %1693 = vmatprep.mubr.bf16.mxu0 0
      %1694 = vmatmul.mubr.bf16.gmra.mrb[0].mxu0 %v1085
      %v1695 = vpop.f32.mrb[0].mxu0
      %v1696 = vadd.f32 %v425, %v1695
      %v1697 = vpop.f32.mrb[0].mxu0
      %v1698 = vpop.f32.mrb[0].mxu0
      %v1699 = vadd.f32 %v425, %v1698
      %v1700 = vpop.f32.mrb[0].mxu0
      %1701 = vmatprep.mubr.bf16.mxu0 0
      %1702 = vmatmul.mubr.bf16.gmra.mrb[0].mxu0 %v1088
      %v1703 = vpop.f32.mrb[0].mxu0
      %v1704 = vadd.f32 %v425, %v1703
      %v1705 = vpop.f32.mrb[0].mxu0
      %v1706 = vpop.f32.mrb[0].mxu0
      %v1707 = vadd.f32 %v425, %v1706
      %v1708 = vpop.f32.mrb[0].mxu0
      %1709 = vmatprep.mubr.bf16.mxu0 0
      %1710 = vmatmul.mubr.bf16.gmra.mrb[0].mxu0 %v1091
      %v1711 = vpop.f32.mrb[0].mxu0
      %v1712 = vadd.f32 %v425, %v1711
      %v1713 = vpop.f32.mrb[0].mxu0
      %v1714 = vpop.f32.mrb[0].mxu0
      %v1715 = vadd.f32 %v425, %v1714
      %v1716 = vpop.f32.mrb[0].mxu0
      %1717 = vmatprep.mubr.bf16.mxu0 0
      %1718 = vmatmul.mubr.bf16.gmra.mrb[0].mxu0 %v1094
      %v1719 = vpop.f32.mrb[0].mxu0
      %v1720 = vadd.f32 %v425, %v1719
      %v1721 = vpop.f32.mrb[0].mxu0
      %v1722 = vpop.f32.mrb[0].mxu0
      %v1723 = vadd.f32 %v425, %v1722
      %v1724 = vpop.f32.mrb[0].mxu0
      %1725 = vmatprep.mubr.bf16.mxu0 0
      %1726 = vmatmul.mubr.bf16.gmra.mrb[0].mxu0 %v1097
      %v1727 = vpop.f32.mrb[0].mxu0
      %v1728 = vadd.f32 %v425, %v1727
      %v1729 = vpop.f32.mrb[0].mxu0
      %v1730 = vpop.f32.mrb[0].mxu0
      %v1731 = vadd.f32 %v425, %v1730
      %v1732 = vpop.f32.mrb[0].mxu0
      %1733 = vmatprep.mubr.bf16.mxu0 0
      %1734 = vmatmul.mubr.bf16.gmra.mrb[0].mxu0 %v1100
      %v1735 = vpop.f32.mrb[0].mxu0
      %v1736 = vadd.f32 %v425, %v1735
      %v1737 = vpop.f32.mrb[0].mxu0
      %v1738 = vpop.f32.mrb[0].mxu0
      %v1739 = vadd.f32 %v425, %v1738
      %v1740 = vpop.f32.mrb[0].mxu0
      %1741 = vmatprep.mubr.bf16.mxu0 0
      %1742 = vmatmul.mubr.bf16.gmra.mrb[0].mxu0 %v1103
      %v1743 = vpop.f32.mrb[0].mxu0
      %v1744 = vadd.f32 %v425, %v1743
      %v1745 = vpop.f32.mrb[0].mxu0
      %v1746 = vpop.f32.mrb[0].mxu0
      %v1747 = vadd.f32 %v425, %v1746
      %v1748 = vpop.f32.mrb[0].mxu0
      %1749 = vmatprep.mubr.bf16.mxu0 0
      %1750 = vmatmul.mubr.bf16.gmra.mrb[0].mxu0 %v1106
      %v1751 = vpop.f32.mrb[0].mxu0
      %v1752 = vadd.f32 %v425, %v1751
      %v1753 = vpop.f32.mrb[0].mxu0
      %v1754 = vpop.f32.mrb[0].mxu0
      %v1755 = vadd.f32 %v425, %v1754
      %v1756 = vpop.f32.mrb[0].mxu0
      %1757 = vmatprep.mubr.bf16.mxu0 0
      %1758 = vmatmul.mubr.bf16.gmra.mrb[0].mxu0 %v1109
      %v1759 = vpop.f32.mrb[0].mxu0
      %v1760 = vadd.f32 %v425, %v1759
      %v1761 = vpop.f32.mrb[0].mxu0
      %v1762 = vpop.f32.mrb[0].mxu0
      %v1763 = vadd.f32 %v425, %v1762
      %v1764 = vpop.f32.mrb[0].mxu0
      %1765 = vmatprep.mubr.bf16.mxu0 0
      %1766 = vmatmul.mubr.bf16.gmra.mrb[0].mxu0 %v1112
      %v1767 = vpop.f32.mrb[0].mxu0
      %v1768 = vadd.f32 %v425, %v1767
      %v1769 = vpop.f32.mrb[0].mxu0
      %v1770 = vpop.f32.mrb[0].mxu0
      %v1771 = vadd.f32 %v425, %v1770
      %v1772 = vpop.f32.mrb[0].mxu0
      %1773 = vmatprep.mubr.bf16.mxu0 0
      %1774 = vmatmul.mubr.bf16.gmra.mrb[0].mxu0 %v1115
      %v1775 = vpop.f32.mrb[0].mxu0
      %v1776 = vadd.f32 %v425, %v1775
      %v1777 = vpop.f32.mrb[0].mxu0
      %v1778 = vpop.f32.mrb[0].mxu0
      %v1779 = vadd.f32 %v425, %v1778
      %v1780 = vpop.f32.mrb[0].mxu0
      %1781 = vmatprep.mubr.bf16.mxu0 0
      %1782 = vmatmul.mubr.bf16.gmra.mrb[0].mxu0 %v1118
      %v1783 = vpop.f32.mrb[0].mxu0
      %v1784 = vadd.f32 %v425, %v1783
      %v1785 = vpop.f32.mrb[0].mxu0
      %v1786 = vpop.f32.mrb[0].mxu0
      %v1787 = vadd.f32 %v425, %v1786
      %v1788 = vpop.f32.mrb[0].mxu0
      %1789 = vmatprep.mubr.bf16.mxu0 0
      %1790 = vmatmul.mubr.bf16.gmra.mrb[0].mxu0 %v1121
      %v1791 = vpop.f32.mrb[0].mxu0
      %v1792 = vadd.f32 %v425, %v1791
      %v1793 = vpop.f32.mrb[0].mxu0
      %v1794 = vpop.f32.mrb[0].mxu0
      %v1795 = vadd.f32 %v425, %v1794
      %v1796 = vpop.f32.mrb[0].mxu0
      %1797 = vmatprep.mubr.bf16.mxu0 0
      %1798 = vmatmul.mubr.bf16.gmra.mrb[0].mxu0 %v1124
      %v1799 = vpop.f32.mrb[0].mxu0
      %v1800 = vadd.f32 %v425, %v1799
      %v1801 = vpop.f32.mrb[0].mxu0
      %v1802 = vpop.f32.mrb[0].mxu0
      %v1803 = vadd.f32 %v425, %v1802
      %v1804 = vpop.f32.mrb[0].mxu0
      %1805 = vmatprep.mubr.bf16.mxu0 0
      %1806 = vmatmul.mubr.bf16.gmra.mrb[0].mxu0 %v1127
      %v1807 = vpop.f32.mrb[0].mxu0
      %v1808 = vadd.f32 %v425, %v1807
      %v1809 = vpop.f32.mrb[0].mxu0
      %v1810 = vpop.f32.mrb[0].mxu0
      %v1811 = vadd.f32 %v425, %v1810
      %v1812 = vpop.f32.mrb[0].mxu0
      %1813 = vmatprep.mubr.bf16.mxu0 0
      %1814 = vmatmul.mubr.bf16.gmra.mrb[0].mxu0 %v1130
      %v1815 = vpop.f32.mrb[0].mxu0
      %v1816 = vadd.f32 %v425, %v1815
      %v1817 = vpop.f32.mrb[0].mxu0
      %v1818 = vpop.f32.mrb[0].mxu0
      %v1819 = vadd.f32 %v425, %v1818
      %v1820 = vpop.f32.mrb[0].mxu0
      %1821 = vmatprep.mubr.bf16.mxu0 0
      %1822 = vmatmul.mubr.bf16.gmra.mrb[0].mxu0 %v1133
      %v1823 = vpop.f32.mrb[0].mxu0
      %v1824 = vadd.f32 %v425, %v1823
      %v1825 = vpop.f32.mrb[0].mxu0
      %v1826 = vpop.f32.mrb[0].mxu0
      %v1827 = vadd.f32 %v425, %v1826
      %v1828 = vpop.f32.mrb[0].mxu0
      %1829 = vmatprep.mubr.bf16.mxu0 0
      %1830 = vmatmul.mubr.bf16.gmra.mrb[0].mxu0 %v1136
      %v1831 = vpop.f32.mrb[0].mxu0
      %v1832 = vadd.f32 %v425, %v1831
      %v1833 = vpop.f32.mrb[0].mxu0
      %v1834 = vpop.f32.mrb[0].mxu0
      %v1835 = vadd.f32 %v425, %v1834
      %v1836 = vpop.f32.mrb[0].mxu0
      %1837 = vmatprep.mubr.bf16.mxu0 0
      %1838 = vmatmul.mubr.bf16.gmra.mrb[0].mxu0 %v1139
      %v1839 = vpop.f32.mrb[0].mxu0
      %v1840 = vadd.f32 %v425, %v1839
      %v1841 = vpop.f32.mrb[0].mxu0
      %v1842 = vpop.f32.mrb[0].mxu0
      %v1843 = vadd.f32 %v425, %v1842
      %v1844 = vpop.f32.mrb[0].mxu0
      %1845 = vmatprep.mubr.bf16.mxu0 0
      %1846 = vmatmul.mubr.bf16.gmra.mrb[0].mxu0 %v1142
      %v1847 = vpop.f32.mrb[0].mxu0
      %v1848 = vadd.f32 %v425, %v1847
      %v1849 = vpop.f32.mrb[0].mxu0
      %v1850 = vpop.f32.mrb[0].mxu0
      %v1851 = vadd.f32 %v425, %v1850
      %v1852 = vpop.f32.mrb[0].mxu0
      %1853 = vmatprep.mubr.bf16.mxu0 0
      %1854 = vmatmul.mubr.bf16.gmra.mrb[0].mxu0 %v1145
      %v1855 = vpop.f32.mrb[0].mxu0
      %v1856 = vadd.f32 %v425, %v1855
      %v1857 = vpop.f32.mrb[0].mxu0
      %v1858 = vpop.f32.mrb[0].mxu0
      %v1859 = vadd.f32 %v425, %v1858
      %v1860 = vpop.f32.mrb[0].mxu0
      %1861 = vmatprep.mubr.bf16.mxu0 0
      %1862 = vmatmul.mubr.bf16.gmra.mrb[0].mxu0 %v1148
      %v1863 = vpop.f32.mrb[0].mxu0
      %v1864 = vadd.f32 %v425, %v1863
      %v1865 = vpop.f32.mrb[0].mxu0
      %v1866 = vpop.f32.mrb[0].mxu0
      %v1867 = vadd.f32 %v425, %v1866
      %v1868 = vpop.f32.mrb[0].mxu0
      %1869 = vmatprep.mubr.bf16.mxu0 0
      %1870 = vmatmul.mubr.bf16.gmra.mrb[0].mxu0 %v1151
      %v1871 = vpop.f32.mrb[0].mxu0
      %v1872 = vadd.f32 %v425, %v1871
      %v1873 = vpop.f32.mrb[0].mxu0
      %v1874 = vpop.f32.mrb[0].mxu0
      %v1875 = vadd.f32 %v425, %v1874
      %v1876 = vpop.f32.mrb[0].mxu0
      %1877 = vmatprep.mubr.bf16.mxu0 0
      %1878 = vmatmul.mubr.bf16.gmra.mrb[0].mxu0 %v1154
      %v1879 = vpop.f32.mrb[0].mxu0
      %v1880 = vadd.f32 %v425, %v1879
      %v1881 = vpop.f32.mrb[0].mxu0
      %v1882 = vpop.f32.mrb[0].mxu0
      %v1883 = vadd.f32 %v425, %v1882
      %v1884 = vpop.f32.mrb[0].mxu0
      %1885 = vmatprep.mubr.bf16.mxu0 0
      %1886 = vmatmul.mubr.bf16.gmra.mrb[0].mxu0 %v1157
      %v1887 = vpop.f32.mrb[0].mxu0
      %v1888 = vadd.f32 %v425, %v1887
      %v1889 = vpop.f32.mrb[0].mxu0
      %v1890 = vpop.f32.mrb[0].mxu0
      %v1891 = vadd.f32 %v425, %v1890
      %v1892 = vpop.f32.mrb[0].mxu0
      %1893 = vmatprep.mubr.bf16.mxu0 0
      %1894 = vmatmul.mubr.bf16.gmra.mrb[0].mxu0 %v1160
      %v1895 = vpop.f32.mrb[0].mxu0
      %v1896 = vadd.f32 %v425, %v1895
      %v1897 = vpop.f32.mrb[0].mxu0
      %v1898 = vpop.f32.mrb[0].mxu0
      %v1899 = vadd.f32 %v425, %v1898
      %v1900 = vpop.f32.mrb[0].mxu0
      %1901 = vmatprep.mubr.bf16.mxu0 0
      %1902 = vmatmul.mubr.bf16.gmra.mrb[0].mxu0 %v1163
      %v1903 = vpop.f32.mrb[0].mxu0
      %v1904 = vadd.f32 %v425, %v1903
      %v1905 = vpop.f32.mrb[0].mxu0
      %v1906 = vpop.f32.mrb[0].mxu0
      %v1907 = vadd.f32 %v425, %v1906
      %v1908 = vpop.f32.mrb[0].mxu0
      %1909 = vmatprep.mubr.bf16.mxu0 0
      %1910 = vmatmul.mubr.bf16.gmra.mrb[0].mxu0 %v1166
      %v1911 = vpop.f32.mrb[0].mxu0
      %v1912 = vadd.f32 %v425, %v1911
      %v1913 = vpop.f32.mrb[0].mxu0
      %v1914 = vpop.f32.mrb[0].mxu0
      %v1915 = vadd.f32 %v425, %v1914
      %v1916 = vpop.f32.mrb[0].mxu0
      %1917 = vmatprep.mubr.bf16.mxu0 0
      %1918 = vmatmul.mubr.bf16.gmra.mrb[0].mxu0 %v1169
      %v1919 = vpop.f32.mrb[0].mxu0
      %v1920 = vadd.f32 %v425, %v1919
      %v1921 = vpop.f32.mrb[0].mxu0
      %v1922 = vpop.f32.mrb[0].mxu0
      %v1923 = vadd.f32 %v425, %v1922
      %v1924 = vpop.f32.mrb[0].mxu0
      %1925 = vmatprep.mubr.bf16.mxu0 0
      %1926 = vmatmul.mubr.bf16.gmra.mrb[0].mxu0 %v1172
      %v1927 = vpop.f32.mrb[0].mxu0
      %v1928 = vadd.f32 %v425, %v1927
      %v1929 = vpop.f32.mrb[0].mxu0
      %v1930 = vpop.f32.mrb[0].mxu0
      %v1931 = vadd.f32 %v425, %v1930
      %v1932 = vpop.f32.mrb[0].mxu0
      %1933 = vmatprep.mubr.bf16.mxu0 0
      %1934 = vmatmul.mubr.bf16.gmra.mrb[0].mxu0 %v1175
      %v1935 = vpop.f32.mrb[0].mxu0
      %v1936 = vadd.f32 %v425, %v1935
      %v1937 = vpop.f32.mrb[0].mxu0
      %v1938 = vpop.f32.mrb[0].mxu0
      %v1939 = vadd.f32 %v425, %v1938
      %v1940 = vpop.f32.mrb[0].mxu0
      %1941 = vmatprep.mubr.bf16.mxu0 0
      %1942 = vmatmul.mubr.bf16.gmra.mrb[0].mxu0 %v1178
      %v1943 = vpop.f32.mrb[0].mxu0
      %v1944 = vadd.f32 %v425, %v1943
      %v1945 = vpop.f32.mrb[0].mxu0
      %v1946 = vpop.f32.mrb[0].mxu0
      %v1947 = vadd.f32 %v425, %v1946
      %v1948 = vpop.f32.mrb[0].mxu0
      %1949 = vmatprep.mubr.bf16.mxu0 0
      %1950 = vmatmul.mubr.bf16.gmra.mrb[0].mxu0 %v1181
      %v1951 = vpop.f32.mrb[0].mxu0
      %v1952 = vadd.f32 %v425, %v1951
      %v1953 = vpop.f32.mrb[0].mxu0
      %v1954 = vpop.f32.mrb[0].mxu0
      %v1955 = vadd.f32 %v425, %v1954
      %v1956 = vpop.f32.mrb[0].mxu0
      %1957 = vmatprep.mubr.bf16.mxu0 0
      %1958 = vmatmul.mubr.bf16.gmra.mrb[0].mxu0 %v1184
      %v1959 = vpop.f32.mrb[0].mxu0
      %v1960 = vadd.f32 %v425, %v1959
      %v1961 = vpop.f32.mrb[0].mxu0
      %v1962 = vpop.f32.mrb[0].mxu0
      %v1963 = vadd.f32 %v425, %v1962
      %v1964 = vpop.f32.mrb[0].mxu0
      %1965 = vmatprep.mubr.bf16.mxu0 0
      %1966 = vmatmul.mubr.bf16.gmra.mrb[0].mxu0 %v1187
      %v1967 = vpop.f32.mrb[0].mxu0
      %v1968 = vadd.f32 %v425, %v1967
      %v1969 = vpop.f32.mrb[0].mxu0
      %v1970 = vpop.f32.mrb[0].mxu0
      %v1971 = vadd.f32 %v425, %v1970
      %v1972 = vpop.f32.mrb[0].mxu0
      %1973 = vmatprep.mubr.bf16.mxu0 0
      %1974 = vmatmul.mubr.bf16.gmra.mrb[0].mxu0 %v1190
      %v1975 = vpop.f32.mrb[0].mxu0
      %v1976 = vadd.f32 %v425, %v1975
      %v1977 = vpop.f32.mrb[0].mxu0
      %v1978 = vpop.f32.mrb[0].mxu0
      %v1979 = vadd.f32 %v425, %v1978
      %v1980 = vpop.f32.mrb[0].mxu0
      %1981 = vmatprep.mubr.bf16.mxu0 0
      %1982 = vmatmul.mubr.bf16.gmra.mrb[0].mxu0 %v1193
      %v1983 = vpop.f32.mrb[0].mxu0
      %v1984 = vadd.f32 %v425, %v1983
      %v1985 = vpop.f32.mrb[0].mxu0
      %v1986 = vpop.f32.mrb[0].mxu0
      %v1987 = vadd.f32 %v425, %v1986
      %v1988 = vpop.f32.mrb[0].mxu0
      %1989 = vmatprep.mubr.bf16.mxu0 0
      %1990 = vmatmul.mubr.bf16.gmra.mrb[0].mxu0 %v1196
      %v1991 = vpop.f32.mrb[0].mxu0
      %v1992 = vadd.f32 %v425, %v1991
      %v1993 = vpop.f32.mrb[0].mxu0
      %v1994 = vpop.f32.mrb[0].mxu0
      %v1995 = vadd.f32 %v425, %v1994
      %v1996 = vpop.f32.mrb[0].mxu0
      %1997 = vmatprep.mubr.bf16.mxu0 0
      %1998 = vmatmul.mubr.bf16.gmra.mrb[0].mxu0 %v1199
      %v1999 = vpop.f32.mrb[0].mxu0
      %v2000 = vadd.f32 %v425, %v1999
      %v2001 = vpop.f32.mrb[0].mxu0
      %v2002 = vpop.f32.mrb[0].mxu0
      %v2003 = vadd.f32 %v425, %v2002
      %v2004 = vpop.f32.mrb[0].mxu0
      %2005 = vdwg.mxu0
      %v2006 = vmax.f32 %v1240, 0.0
      %v2007 = vmax.f32 %v1243, 0.0
      %v2008 = vmax.f32 %v1248, 0.0
      %v2009 = vmax.f32 %v1251, 0.0
      %v2010 = vmax.f32 %v1256, 0.0
      %v2011 = vmax.f32 %v1259, 0.0
      %v2012 = vmax.f32 %v1264, 0.0
      %v2013 = vmax.f32 %v1267, 0.0
      %v2014 = vmax.f32 %v1272, 0.0
      %v2015 = vmax.f32 %v1275, 0.0
      %v2016 = vmax.f32 %v1280, 0.0
      %v2017 = vmax.f32 %v1283, 0.0
      %v2018 = vmax.f32 %v1288, 0.0
      %v2019 = vmax.f32 %v1291, 0.0
      %v2020 = vmax.f32 %v1296, 0.0
      %v2021 = vmax.f32 %v1299, 0.0
      %v2022 = vmax.f32 %v1304, 0.0
      %v2023 = vmax.f32 %v1307, 0.0
      %v2024 = vmax.f32 %v1312, 0.0
      %v2025 = vmax.f32 %v1315, 0.0
      %v2026 = vmax.f32 %v1320, 0.0
      %v2027 = vmax.f32 %v1323, 0.0
      %v2028 = vmax.f32 %v1328, 0.0
      %v2029 = vmax.f32 %v1331, 0.0
      %v2030 = vmax.f32 %v1336, 0.0
      %v2031 = vmax.f32 %v1339, 0.0
      %v2032 = vmax.f32 %v1344, 0.0
      %v2033 = vmax.f32 %v1347, 0.0
      %v2034 = vmax.f32 %v1352, 0.0
      %v2035 = vmax.f32 %v1355, 0.0
      %v2036 = vmax.f32 %v1360, 0.0
      %v2037 = vmax.f32 %v1363, 0.0
      %v2038 = vmax.f32 %v1368, 0.0
      %v2039 = vmax.f32 %v1371, 0.0
      %v2040 = vmax.f32 %v1376, 0.0
      %v2041 = vmax.f32 %v1379, 0.0
      %v2042 = vmax.f32 %v1384, 0.0
      %v2043 = vmax.f32 %v1387, 0.0
      %v2044 = vmax.f32 %v1392, 0.0
      %v2045 = vmax.f32 %v1395, 0.0
      %v2046 = vmax.f32 %v1400, 0.0
      %v2047 = vmax.f32 %v1403, 0.0
      %v2048 = vmax.f32 %v1408, 0.0
      %v2049 = vmax.f32 %v1411, 0.0
      %v2050 = vmax.f32 %v1416, 0.0
      %v2051 = vmax.f32 %v1419, 0.0
      %v2052 = vmax.f32 %v1424, 0.0
      %v2053 = vmax.f32 %v1427, 0.0
      %v2054 = vmax.f32 %v1432, 0.0
      %v2055 = vmax.f32 %v1435, 0.0
      %v2056 = vmax.f32 %v1440, 0.0
      %v2057 = vmax.f32 %v1443, 0.0
      %v2058 = vmax.f32 %v1448, 0.0
      %v2059 = vmax.f32 %v1451, 0.0
      %v2060 = vmax.f32 %v1456, 0.0
      %v2061 = vmax.f32 %v1459, 0.0
      %v2062 = vmax.f32 %v1464, 0.0
      %v2063 = vmax.f32 %v1467, 0.0
      %v2064 = vmax.f32 %v1472, 0.0
      %v2065 = vmax.f32 %v1475, 0.0
      %v2066 = vmax.f32 %v1480, 0.0
      %v2067 = vmax.f32 %v1483, 0.0
      %v2068 = vmax.f32 %v1488, 0.0
      %v2069 = vmax.f32 %v1491, 0.0
      %v2070 = vmax.f32 %v1496, 0.0
      %v2071 = vmax.f32 %v1499, 0.0
      %v2072 = vmax.f32 %v1504, 0.0
      %v2073 = vmax.f32 %v1507, 0.0
      %v2074 = vmax.f32 %v1512, 0.0
      %v2075 = vmax.f32 %v1515, 0.0
      %v2076 = vmax.f32 %v1520, 0.0
      %v2077 = vmax.f32 %v1523, 0.0
      %v2078 = vmax.f32 %v1528, 0.0
      %v2079 = vmax.f32 %v1531, 0.0
      %v2080 = vmax.f32 %v1536, 0.0
      %v2081 = vmax.f32 %v1539, 0.0
      %v2082 = vmax.f32 %v1544, 0.0
      %v2083 = vmax.f32 %v1547, 0.0
      %v2084 = vmax.f32 %v1552, 0.0
      %v2085 = vmax.f32 %v1555, 0.0
      %v2086 = vmax.f32 %v1560, 0.0
      %v2087 = vmax.f32 %v1563, 0.0
      %v2088 = vmax.f32 %v1568, 0.0
      %v2089 = vmax.f32 %v1571, 0.0
      %v2090 = vmax.f32 %v1576, 0.0
      %v2091 = vmax.f32 %v1579, 0.0
      %v2092 = vmax.f32 %v1584, 0.0
      %v2093 = vmax.f32 %v1587, 0.0
      %v2094 = vmax.f32 %v1592, 0.0
      %v2095 = vmax.f32 %v1595, 0.0
      %v2096 = vmax.f32 %v1600, 0.0
      %v2097 = vmax.f32 %v1603, 0.0
      %v2098 = vmax.f32 %v1608, 0.0
      %v2099 = vmax.f32 %v1611, 0.0
      %v2100 = vmax.f32 %v1616, 0.0
      %v2101 = vmax.f32 %v1619, 0.0
      %v2102 = vmax.f32 %v1624, 0.0
      %v2103 = vmax.f32 %v1627, 0.0
      %v2104 = vmax.f32 %v1632, 0.0
      %v2105 = vmax.f32 %v1635, 0.0
      %v2106 = vmax.f32 %v1640, 0.0
      %v2107 = vmax.f32 %v1643, 0.0
      %v2108 = vmax.f32 %v1648, 0.0
      %v2109 = vmax.f32 %v1651, 0.0
      %v2110 = vmax.f32 %v1656, 0.0
      %v2111 = vmax.f32 %v1659, 0.0
      %v2112 = vmax.f32 %v1664, 0.0
      %v2113 = vmax.f32 %v1667, 0.0
      %v2114 = vmax.f32 %v1672, 0.0
      %v2115 = vmax.f32 %v1675, 0.0
      %v2116 = vmax.f32 %v1680, 0.0
      %v2117 = vmax.f32 %v1683, 0.0
      %v2118 = vmax.f32 %v1688, 0.0
      %v2119 = vmax.f32 %v1691, 0.0
      %v2120 = vmax.f32 %v1696, 0.0
      %v2121 = vmax.f32 %v1699, 0.0
      %v2122 = vmax.f32 %v1704, 0.0
      %v2123 = vmax.f32 %v1707, 0.0
      %v2124 = vmax.f32 %v1712, 0.0
      %v2125 = vmax.f32 %v1715, 0.0
      %v2126 = vmax.f32 %v1720, 0.0
      %v2127 = vmax.f32 %v1723, 0.0
      %v2128 = vmax.f32 %v1728, 0.0
      %v2129 = vmax.f32 %v1731, 0.0
      %v2130 = vmax.f32 %v1736, 0.0
      %v2131 = vmax.f32 %v1739, 0.0
      %v2132 = vmax.f32 %v1744, 0.0
      %v2133 = vmax.f32 %v1747, 0.0
      %v2134 = vmax.f32 %v1752, 0.0
      %v2135 = vmax.f32 %v1755, 0.0
      %v2136 = vmax.f32 %v1760, 0.0
      %v2137 = vmax.f32 %v1763, 0.0
      %v2138 = vmax.f32 %v1768, 0.0
      %v2139 = vmax.f32 %v1771, 0.0
      %v2140 = vmax.f32 %v1776, 0.0
      %v2141 = vmax.f32 %v1779, 0.0
      %v2142 = vmax.f32 %v1784, 0.0
      %v2143 = vmax.f32 %v1787, 0.0
      %v2144 = vmax.f32 %v1792, 0.0
      %v2145 = vmax.f32 %v1795, 0.0
      %v2146 = vmax.f32 %v1800, 0.0
      %v2147 = vmax.f32 %v1803, 0.0
      %v2148 = vmax.f32 %v1808, 0.0
      %v2149 = vmax.f32 %v1811, 0.0
      %v2150 = vmax.f32 %v1816, 0.0
      %v2151 = vmax.f32 %v1819, 0.0
      %v2152 = vmax.f32 %v1824, 0.0
      %v2153 = vmax.f32 %v1827, 0.0
      %v2154 = vmax.f32 %v1832, 0.0
      %v2155 = vmax.f32 %v1835, 0.0
      %v2156 = vmax.f32 %v1840, 0.0
      %v2157 = vmax.f32 %v1843, 0.0
      %v2158 = vmax.f32 %v1848, 0.0
      %v2159 = vmax.f32 %v1851, 0.0
      %v2160 = vmax.f32 %v1856, 0.0
      %v2161 = vmax.f32 %v1859, 0.0
      %v2162 = vmax.f32 %v1864, 0.0
      %v2163 = vmax.f32 %v1867, 0.0
      %v2164 = vmax.f32 %v1872, 0.0
      %v2165 = vmax.f32 %v1875, 0.0
      %v2166 = vmax.f32 %v1880, 0.0
      %v2167 = vmax.f32 %v1883, 0.0
      %v2168 = vmax.f32 %v1888, 0.0
      %v2169 = vmax.f32 %v1891, 0.0
      %v2170 = vmax.f32 %v1896, 0.0
      %v2171 = vmax.f32 %v1899, 0.0
      %v2172 = vmax.f32 %v1904, 0.0
      %v2173 = vmax.f32 %v1907, 0.0
      %v2174 = vmax.f32 %v1912, 0.0
      %v2175 = vmax.f32 %v1915, 0.0
      %v2176 = vmax.f32 %v1920, 0.0
      %v2177 = vmax.f32 %v1923, 0.0
      %v2178 = vmax.f32 %v1928, 0.0
      %v2179 = vmax.f32 %v1931, 0.0
      %v2180 = vmax.f32 %v1936, 0.0
      %v2181 = vmax.f32 %v1939, 0.0
      %v2182 = vmax.f32 %v1944, 0.0
      %v2183 = vmax.f32 %v1947, 0.0
      %v2184 = vmax.f32 %v1952, 0.0
      %v2185 = vmax.f32 %v1955, 0.0
      %v2186 = vmax.f32 %v1960, 0.0
      %v2187 = vmax.f32 %v1963, 0.0
      %v2188 = vmax.f32 %v1968, 0.0
      %v2189 = vmax.f32 %v1971, 0.0
      %v2190 = vmax.f32 %v1976, 0.0
      %v2191 = vmax.f32 %v1979, 0.0
      %v2192 = vmax.f32 %v1984, 0.0
      %v2193 = vmax.f32 %v1987, 0.0
      %v2194 = vmax.f32 %v1992, 0.0
      %v2195 = vmax.f32 %v1995, 0.0
      %v2196 = vmax.f32 %v2000, 0.0
      %v2197 = vmax.f32 %v2003, 0.0
      %2390 = vrot.lane.b32.xlu0 %v2006, 96
      %v2391 = vpop.permute.xlu0 %2390
      %2392 = vrot.lane.b32.xlu0 %v2007, 96
      %v2393 = vpop.permute.xlu0 %2392
      %2394 = vrot.lane.b32.xlu0 %v2008, 96
      %v2395 = vpop.permute.xlu0 %2394
      %2396 = vrot.lane.b32.xlu0 %v2009, 96
      %v2397 = vpop.permute.xlu0 %2396
      %2398 = vrot.lane.b32.xlu0 %v2010, 96
      %v2399 = vpop.permute.xlu0 %2398
      %2400 = vrot.lane.b32.xlu0 %v2011, 96
      %v2401 = vpop.permute.xlu0 %2400
      %2402 = vrot.lane.b32.xlu0 %v2012, 96
      %v2403 = vpop.permute.xlu0 %2402
      %2404 = vrot.lane.b32.xlu0 %v2013, 96
      %v2405 = vpop.permute.xlu0 %2404
      %2406 = vrot.lane.b32.xlu0 %v2014, 96
      %v2407 = vpop.permute.xlu0 %2406
      %2408 = vrot.lane.b32.xlu0 %v2015, 96
      %v2409 = vpop.permute.xlu0 %2408
      %2410 = vrot.lane.b32.xlu0 %v2016, 96
      %v2411 = vpop.permute.xlu0 %2410
      %2412 = vrot.lane.b32.xlu0 %v2017, 96
      %v2413 = vpop.permute.xlu0 %2412
      %2414 = vrot.lane.b32.xlu0 %v2018, 96
      %v2415 = vpop.permute.xlu0 %2414
      %2416 = vrot.lane.b32.xlu0 %v2019, 96
      %v2417 = vpop.permute.xlu0 %2416
      %2418 = vrot.lane.b32.xlu0 %v2020, 96
      %v2419 = vpop.permute.xlu0 %2418
      %2420 = vrot.lane.b32.xlu0 %v2021, 96
      %v2421 = vpop.permute.xlu0 %2420
      %2422 = vrot.lane.b32.xlu0 %v2022, 96
      %v2423 = vpop.permute.xlu0 %2422
      %2424 = vrot.lane.b32.xlu0 %v2023, 96
      %v2425 = vpop.permute.xlu0 %2424
      %2426 = vrot.lane.b32.xlu0 %v2024, 96
      %v2427 = vpop.permute.xlu0 %2426
      %2428 = vrot.lane.b32.xlu0 %v2025, 96
      %v2429 = vpop.permute.xlu0 %2428
      %2430 = vrot.lane.b32.xlu0 %v2026, 96
      %v2431 = vpop.permute.xlu0 %2430
      %2432 = vrot.lane.b32.xlu0 %v2027, 96
      %v2433 = vpop.permute.xlu0 %2432
      %2434 = vrot.lane.b32.xlu0 %v2028, 96
      %v2435 = vpop.permute.xlu0 %2434
      %2436 = vrot.lane.b32.xlu0 %v2029, 96
      %v2437 = vpop.permute.xlu0 %2436
      %2438 = vrot.lane.b32.xlu0 %v2030, 96
      %v2439 = vpop.permute.xlu0 %2438
      %2440 = vrot.lane.b32.xlu0 %v2031, 96
      %v2441 = vpop.permute.xlu0 %2440
      %2442 = vrot.lane.b32.xlu0 %v2032, 96
      %v2443 = vpop.permute.xlu0 %2442
      %2444 = vrot.lane.b32.xlu0 %v2033, 96
      %v2445 = vpop.permute.xlu0 %2444
      %2446 = vrot.lane.b32.xlu0 %v2034, 96
      %v2447 = vpop.permute.xlu0 %2446
      %2448 = vrot.lane.b32.xlu0 %v2035, 96
      %v2449 = vpop.permute.xlu0 %2448
      %2450 = vrot.lane.b32.xlu0 %v2036, 96
      %v2451 = vpop.permute.xlu0 %2450
      %2452 = vrot.lane.b32.xlu0 %v2037, 96
      %v2453 = vpop.permute.xlu0 %2452
      %2454 = vrot.lane.b32.xlu0 %v2038, 96
      %v2455 = vpop.permute.xlu0 %2454
      %2456 = vrot.lane.b32.xlu0 %v2039, 96
      %v2457 = vpop.permute.xlu0 %2456
      %2458 = vrot.lane.b32.xlu0 %v2040, 96
      %v2459 = vpop.permute.xlu0 %2458
      %2460 = vrot.lane.b32.xlu0 %v2041, 96
      %v2461 = vpop.permute.xlu0 %2460
      %2462 = vrot.lane.b32.xlu0 %v2042, 96
      %v2463 = vpop.permute.xlu0 %2462
      %2464 = vrot.lane.b32.xlu0 %v2043, 96
      %v2465 = vpop.permute.xlu0 %2464
      %2466 = vrot.lane.b32.xlu0 %v2044, 96
      %v2467 = vpop.permute.xlu0 %2466
      %2468 = vrot.lane.b32.xlu0 %v2045, 96
      %v2469 = vpop.permute.xlu0 %2468
      %2470 = vrot.lane.b32.xlu0 %v2046, 96
      %v2471 = vpop.permute.xlu0 %2470
      %2472 = vrot.lane.b32.xlu0 %v2047, 96
      %v2473 = vpop.permute.xlu0 %2472
      %2474 = vrot.lane.b32.xlu0 %v2048, 96
      %v2475 = vpop.permute.xlu0 %2474
      %2476 = vrot.lane.b32.xlu0 %v2049, 96
      %v2477 = vpop.permute.xlu0 %2476
      %2478 = vrot.lane.b32.xlu0 %v2050, 96
      %v2479 = vpop.permute.xlu0 %2478
      %2480 = vrot.lane.b32.xlu0 %v2051, 96
      %v2481 = vpop.permute.xlu0 %2480
      %2482 = vrot.lane.b32.xlu0 %v2052, 96
      %v2483 = vpop.permute.xlu0 %2482
      %2484 = vrot.lane.b32.xlu0 %v2053, 96
      %v2485 = vpop.permute.xlu0 %2484
      %2486 = vrot.lane.b32.xlu0 %v2054, 96
      %v2487 = vpop.permute.xlu0 %2486
      %2488 = vrot.lane.b32.xlu0 %v2055, 96
      %v2489 = vpop.permute.xlu0 %2488
      %2490 = vrot.lane.b32.xlu0 %v2056, 96
      %v2491 = vpop.permute.xlu0 %2490
      %2492 = vrot.lane.b32.xlu0 %v2057, 96
      %v2493 = vpop.permute.xlu0 %2492
      %2494 = vrot.lane.b32.xlu0 %v2058, 96
      %v2495 = vpop.permute.xlu0 %2494
      %2496 = vrot.lane.b32.xlu0 %v2059, 96
      %v2497 = vpop.permute.xlu0 %2496
      %2498 = vrot.lane.b32.xlu0 %v2060, 96
      %v2499 = vpop.permute.xlu0 %2498
      %2500 = vrot.lane.b32.xlu0 %v2061, 96
      %v2501 = vpop.permute.xlu0 %2500
      %2502 = vrot.lane.b32.xlu0 %v2062, 96
      %v2503 = vpop.permute.xlu0 %2502
      %2504 = vrot.lane.b32.xlu0 %v2063, 96
      %v2505 = vpop.permute.xlu0 %2504
      %2506 = vrot.lane.b32.xlu0 %v2064, 96
      %v2507 = vpop.permute.xlu0 %2506
      %2508 = vrot.lane.b32.xlu0 %v2065, 96
      %v2509 = vpop.permute.xlu0 %2508
      %2510 = vrot.lane.b32.xlu0 %v2066, 96
      %v2511 = vpop.permute.xlu0 %2510
      %2512 = vrot.lane.b32.xlu0 %v2067, 96
      %v2513 = vpop.permute.xlu0 %2512
      %2514 = vrot.lane.b32.xlu0 %v2068, 96
      %v2515 = vpop.permute.xlu0 %2514
      %2516 = vrot.lane.b32.xlu0 %v2069, 96
      %v2517 = vpop.permute.xlu0 %2516
      %2518 = vrot.lane.b32.xlu0 %v2070, 96
      %v2519 = vpop.permute.xlu0 %2518
      %2520 = vrot.lane.b32.xlu0 %v2071, 96
      %v2521 = vpop.permute.xlu0 %2520
      %2522 = vrot.lane.b32.xlu0 %v2072, 96
      %v2523 = vpop.permute.xlu0 %2522
      %2524 = vrot.lane.b32.xlu0 %v2073, 96
      %v2525 = vpop.permute.xlu0 %2524
      %2526 = vrot.lane.b32.xlu0 %v2074, 96
      %v2527 = vpop.permute.xlu0 %2526
      %2528 = vrot.lane.b32.xlu0 %v2075, 96
      %v2529 = vpop.permute.xlu0 %2528
      %2530 = vrot.lane.b32.xlu0 %v2076, 96
      %v2531 = vpop.permute.xlu0 %2530
      %2532 = vrot.lane.b32.xlu0 %v2077, 96
      %v2533 = vpop.permute.xlu0 %2532
      %2534 = vrot.lane.b32.xlu0 %v2078, 96
      %v2535 = vpop.permute.xlu0 %2534
      %2536 = vrot.lane.b32.xlu0 %v2079, 96
      %v2537 = vpop.permute.xlu0 %2536
      %2538 = vrot.lane.b32.xlu0 %v2080, 96
      %v2539 = vpop.permute.xlu0 %2538
      %2540 = vrot.lane.b32.xlu0 %v2081, 96
      %v2541 = vpop.permute.xlu0 %2540
      %2542 = vrot.lane.b32.xlu0 %v2082, 96
      %v2543 = vpop.permute.xlu0 %2542
      %2544 = vrot.lane.b32.xlu0 %v2083, 96
      %v2545 = vpop.permute.xlu0 %2544
      %2546 = vrot.lane.b32.xlu0 %v2084, 96
      %v2547 = vpop.permute.xlu0 %2546
      %2548 = vrot.lane.b32.xlu0 %v2085, 96
      %v2549 = vpop.permute.xlu0 %2548
      %2550 = vrot.lane.b32.xlu0 %v2086, 96
      %v2551 = vpop.permute.xlu0 %2550
      %2552 = vrot.lane.b32.xlu0 %v2087, 96
      %v2553 = vpop.permute.xlu0 %2552
      %2554 = vrot.lane.b32.xlu0 %v2088, 96
      %v2555 = vpop.permute.xlu0 %2554
      %2556 = vrot.lane.b32.xlu0 %v2089, 96
      %v2557 = vpop.permute.xlu0 %2556
      %2558 = vrot.lane.b32.xlu0 %v2090, 96
      %v2559 = vpop.permute.xlu0 %2558
      %2560 = vrot.lane.b32.xlu0 %v2091, 96
      %v2561 = vpop.permute.xlu0 %2560
      %2562 = vrot.lane.b32.xlu0 %v2092, 96
      %v2563 = vpop.permute.xlu0 %2562
      %2564 = vrot.lane.b32.xlu0 %v2093, 96
      %v2565 = vpop.permute.xlu0 %2564
      %2566 = vrot.lane.b32.xlu0 %v2094, 96
      %v2567 = vpop.permute.xlu0 %2566
      %2568 = vrot.lane.b32.xlu0 %v2095, 96
      %v2569 = vpop.permute.xlu0 %2568
      %2570 = vrot.lane.b32.xlu0 %v2096, 96
      %v2571 = vpop.permute.xlu0 %2570
      %2572 = vrot.lane.b32.xlu0 %v2097, 96
      %v2573 = vpop.permute.xlu0 %2572
      %2574 = vrot.lane.b32.xlu0 %v2098, 96
      %v2575 = vpop.permute.xlu0 %2574
      %2576 = vrot.lane.b32.xlu0 %v2099, 96
      %v2577 = vpop.permute.xlu0 %2576
      %2578 = vrot.lane.b32.xlu0 %v2100, 96
      %v2579 = vpop.permute.xlu0 %2578
      %2580 = vrot.lane.b32.xlu0 %v2101, 96
      %v2581 = vpop.permute.xlu0 %2580
      %2582 = vrot.lane.b32.xlu0 %v2102, 96
      %v2583 = vpop.permute.xlu0 %2582
      %2584 = vrot.lane.b32.xlu0 %v2103, 96
      %v2585 = vpop.permute.xlu0 %2584
      %2586 = vrot.lane.b32.xlu0 %v2104, 96
      %v2587 = vpop.permute.xlu0 %2586
      %2588 = vrot.lane.b32.xlu0 %v2105, 96
      %v2589 = vpop.permute.xlu0 %2588
      %2590 = vrot.lane.b32.xlu0 %v2106, 96
      %v2591 = vpop.permute.xlu0 %2590
      %2592 = vrot.lane.b32.xlu0 %v2107, 96
      %v2593 = vpop.permute.xlu0 %2592
      %2594 = vrot.lane.b32.xlu0 %v2108, 96
      %v2595 = vpop.permute.xlu0 %2594
      %2596 = vrot.lane.b32.xlu0 %v2109, 96
      %v2597 = vpop.permute.xlu0 %2596
      %2598 = vrot.lane.b32.xlu0 %v2110, 96
      %v2599 = vpop.permute.xlu0 %2598
      %2600 = vrot.lane.b32.xlu0 %v2111, 96
      %v2601 = vpop.permute.xlu0 %2600
      %2602 = vrot.lane.b32.xlu0 %v2112, 96
      %v2603 = vpop.permute.xlu0 %2602
      %2604 = vrot.lane.b32.xlu0 %v2113, 96
      %v2605 = vpop.permute.xlu0 %2604
      %2606 = vrot.lane.b32.xlu0 %v2114, 96
      %v2607 = vpop.permute.xlu0 %2606
      %2608 = vrot.lane.b32.xlu0 %v2115, 96
      %v2609 = vpop.permute.xlu0 %2608
      %2610 = vrot.lane.b32.xlu0 %v2116, 96
      %v2611 = vpop.permute.xlu0 %2610
      %2612 = vrot.lane.b32.xlu0 %v2117, 96
      %v2613 = vpop.permute.xlu0 %2612
      %2614 = vrot.lane.b32.xlu0 %v2118, 96
      %v2615 = vpop.permute.xlu0 %2614
      %2616 = vrot.lane.b32.xlu0 %v2119, 96
      %v2617 = vpop.permute.xlu0 %2616
      %2618 = vrot.lane.b32.xlu0 %v2120, 96
      %v2619 = vpop.permute.xlu0 %2618
      %2620 = vrot.lane.b32.xlu0 %v2121, 96
      %v2621 = vpop.permute.xlu0 %2620
      %2622 = vrot.lane.b32.xlu0 %v2122, 96
      %v2623 = vpop.permute.xlu0 %2622
      %2624 = vrot.lane.b32.xlu0 %v2123, 96
      %v2625 = vpop.permute.xlu0 %2624
      %2626 = vrot.lane.b32.xlu0 %v2124, 96
      %v2627 = vpop.permute.xlu0 %2626
      %2628 = vrot.lane.b32.xlu0 %v2125, 96
      %v2629 = vpop.permute.xlu0 %2628
      %2630 = vrot.lane.b32.xlu0 %v2126, 96
      %v2631 = vpop.permute.xlu0 %2630
      %2632 = vrot.lane.b32.xlu0 %v2127, 96
      %v2633 = vpop.permute.xlu0 %2632
      %2634 = vrot.lane.b32.xlu0 %v2128, 96
      %v2635 = vpop.permute.xlu0 %2634
      %2636 = vrot.lane.b32.xlu0 %v2129, 96
      %v2637 = vpop.permute.xlu0 %2636
      %2638 = vrot.lane.b32.xlu0 %v2130, 96
      %v2639 = vpop.permute.xlu0 %2638
      %2640 = vrot.lane.b32.xlu0 %v2131, 96
      %v2641 = vpop.permute.xlu0 %2640
      %2642 = vrot.lane.b32.xlu0 %v2132, 96
      %v2643 = vpop.permute.xlu0 %2642
      %2644 = vrot.lane.b32.xlu0 %v2133, 96
      %v2645 = vpop.permute.xlu0 %2644
      %2646 = vrot.lane.b32.xlu0 %v2134, 96
      %v2647 = vpop.permute.xlu0 %2646
      %2648 = vrot.lane.b32.xlu0 %v2135, 96
      %v2649 = vpop.permute.xlu0 %2648
      %2650 = vrot.lane.b32.xlu0 %v2136, 96
      %v2651 = vpop.permute.xlu0 %2650
      %2652 = vrot.lane.b32.xlu0 %v2137, 96
      %v2653 = vpop.permute.xlu0 %2652
      %2654 = vrot.lane.b32.xlu0 %v2138, 96
      %v2655 = vpop.permute.xlu0 %2654
      %2656 = vrot.lane.b32.xlu0 %v2139, 96
      %v2657 = vpop.permute.xlu0 %2656
      %2658 = vrot.lane.b32.xlu0 %v2140, 96
      %v2659 = vpop.permute.xlu0 %2658
      %2660 = vrot.lane.b32.xlu0 %v2141, 96
      %v2661 = vpop.permute.xlu0 %2660
      %2662 = vrot.lane.b32.xlu0 %v2142, 96
      %v2663 = vpop.permute.xlu0 %2662
      %2664 = vrot.lane.b32.xlu0 %v2143, 96
      %v2665 = vpop.permute.xlu0 %2664
      %2666 = vrot.lane.b32.xlu0 %v2144, 96
      %v2667 = vpop.permute.xlu0 %2666
      %2668 = vrot.lane.b32.xlu0 %v2145, 96
      %v2669 = vpop.permute.xlu0 %2668
      %2670 = vrot.lane.b32.xlu0 %v2146, 96
      %v2671 = vpop.permute.xlu0 %2670
      %2672 = vrot.lane.b32.xlu0 %v2147, 96
      %v2673 = vpop.permute.xlu0 %2672
      %2674 = vrot.lane.b32.xlu0 %v2148, 96
      %v2675 = vpop.permute.xlu0 %2674
      %2676 = vrot.lane.b32.xlu0 %v2149, 96
      %v2677 = vpop.permute.xlu0 %2676
      %2678 = vrot.lane.b32.xlu0 %v2150, 96
      %v2679 = vpop.permute.xlu0 %2678
      %2680 = vrot.lane.b32.xlu0 %v2151, 96
      %v2681 = vpop.permute.xlu0 %2680
      %2682 = vrot.lane.b32.xlu0 %v2152, 96
      %v2683 = vpop.permute.xlu0 %2682
      %2684 = vrot.lane.b32.xlu0 %v2153, 96
      %v2685 = vpop.permute.xlu0 %2684
      %2686 = vrot.lane.b32.xlu0 %v2154, 96
      %v2687 = vpop.permute.xlu0 %2686
      %2688 = vrot.lane.b32.xlu0 %v2155, 96
      %v2689 = vpop.permute.xlu0 %2688
      %2690 = vrot.lane.b32.xlu0 %v2156, 96
      %v2691 = vpop.permute.xlu0 %2690
      %2692 = vrot.lane.b32.xlu0 %v2157, 96
      %v2693 = vpop.permute.xlu0 %2692
      %2694 = vrot.lane.b32.xlu0 %v2158, 96
      %v2695 = vpop.permute.xlu0 %2694
      %2696 = vrot.lane.b32.xlu0 %v2159, 96
      %v2697 = vpop.permute.xlu0 %2696
      %2698 = vrot.lane.b32.xlu0 %v2160, 96
      %v2699 = vpop.permute.xlu0 %2698
      %2700 = vrot.lane.b32.xlu0 %v2161, 96
      %v2701 = vpop.permute.xlu0 %2700
      %2702 = vrot.lane.b32.xlu0 %v2162, 96
      %v2703 = vpop.permute.xlu0 %2702
      %2704 = vrot.lane.b32.xlu0 %v2163, 96
      %v2705 = vpop.permute.xlu0 %2704
      %2706 = vrot.lane.b32.xlu0 %v2164, 96
      %v2707 = vpop.permute.xlu0 %2706
      %2708 = vrot.lane.b32.xlu0 %v2165, 96
      %v2709 = vpop.permute.xlu0 %2708
      %2710 = vrot.lane.b32.xlu0 %v2166, 96
      %v2711 = vpop.permute.xlu0 %2710
      %2712 = vrot.lane.b32.xlu0 %v2167, 96
      %v2713 = vpop.permute.xlu0 %2712
      %2714 = vrot.lane.b32.xlu0 %v2168, 96
      %v2715 = vpop.permute.xlu0 %2714
      %2716 = vrot.lane.b32.xlu0 %v2169, 96
      %v2717 = vpop.permute.xlu0 %2716
      %2718 = vrot.lane.b32.xlu0 %v2170, 96
      %v2719 = vpop.permute.xlu0 %2718
      %2720 = vrot.lane.b32.xlu0 %v2171, 96
      %v2721 = vpop.permute.xlu0 %2720
      %2722 = vrot.lane.b32.xlu0 %v2172, 96
      %v2723 = vpop.permute.xlu0 %2722
      %2724 = vrot.lane.b32.xlu0 %v2173, 96
      %v2725 = vpop.permute.xlu0 %2724
      %2726 = vrot.lane.b32.xlu0 %v2174, 96
      %v2727 = vpop.permute.xlu0 %2726
      %2728 = vrot.lane.b32.xlu0 %v2175, 96
      %v2729 = vpop.permute.xlu0 %2728
      %2730 = vrot.lane.b32.xlu0 %v2176, 96
      %v2731 = vpop.permute.xlu0 %2730
      %2732 = vrot.lane.b32.xlu0 %v2177, 96
      %v2733 = vpop.permute.xlu0 %2732
      %2734 = vrot.lane.b32.xlu0 %v2178, 96
      %v2735 = vpop.permute.xlu0 %2734
      %2736 = vrot.lane.b32.xlu0 %v2179, 96
      %v2737 = vpop.permute.xlu0 %2736
      %2738 = vrot.lane.b32.xlu0 %v2180, 96
      %v2739 = vpop.permute.xlu0 %2738
      %2740 = vrot.lane.b32.xlu0 %v2181, 96
      %v2741 = vpop.permute.xlu0 %2740
      %2742 = vrot.lane.b32.xlu0 %v2182, 96
      %v2743 = vpop.permute.xlu0 %2742
      %2744 = vrot.lane.b32.xlu0 %v2183, 96
      %v2745 = vpop.permute.xlu0 %2744
      %2746 = vrot.lane.b32.xlu0 %v2184, 96
      %v2747 = vpop.permute.xlu0 %2746
      %2748 = vrot.lane.b32.xlu0 %v2185, 96
      %v2749 = vpop.permute.xlu0 %2748
      %2750 = vrot.lane.b32.xlu0 %v2186, 96
      %v2751 = vpop.permute.xlu0 %2750
      %2752 = vrot.lane.b32.xlu0 %v2187, 96
      %v2753 = vpop.permute.xlu0 %2752
      %2754 = vrot.lane.b32.xlu0 %v2188, 96
      %v2755 = vpop.permute.xlu0 %2754
      %2756 = vrot.lane.b32.xlu0 %v2189, 96
      %v2757 = vpop.permute.xlu0 %2756
      %2758 = vrot.lane.b32.xlu0 %v2190, 96
      %v2759 = vpop.permute.xlu0 %2758
      %2760 = vrot.lane.b32.xlu0 %v2191, 96
      %v2761 = vpop.permute.xlu0 %2760
      %2762 = vrot.lane.b32.xlu0 %v2192, 96
      %v2763 = vpop.permute.xlu0 %2762
      %2764 = vrot.lane.b32.xlu0 %v2193, 96
      %v2765 = vpop.permute.xlu0 %2764
      %2766 = vrot.lane.b32.xlu0 %v2194, 96
      %v2767 = vpop.permute.xlu0 %2766
      %2768 = vrot.lane.b32.xlu0 %v2195, 96
      %v2769 = vpop.permute.xlu0 %2768
      %2770 = vrot.lane.b32.xlu0 %v2196, 96
      %v2771 = vpop.permute.xlu0 %2770
      %2772 = vrot.lane.b32.xlu0 %v2197, 96
      %v2773 = vpop.permute.xlu0 %2772
      %v2966 = vadd.f32 %v2006, %v2391
      %v2967 = vadd.f32 %v2007, %v2393
      %v2968 = vadd.f32 %v2008, %v2395
      %v2969 = vadd.f32 %v2009, %v2397
      %v2970 = vadd.f32 %v2010, %v2399
      %v2971 = vadd.f32 %v2011, %v2401
      %v2972 = vadd.f32 %v2012, %v2403
      %v2973 = vadd.f32 %v2013, %v2405
      %v2974 = vadd.f32 %v2014, %v2407
      %v2975 = vadd.f32 %v2015, %v2409
      %v2976 = vadd.f32 %v2016, %v2411
      %v2977 = vadd.f32 %v2017, %v2413
      %v2978 = vadd.f32 %v2018, %v2415
      %v2979 = vadd.f32 %v2019, %v2417
      %v2980 = vadd.f32 %v2020, %v2419
      %v2981 = vadd.f32 %v2021, %v2421
      %v2982 = vadd.f32 %v2022, %v2423
      %v2983 = vadd.f32 %v2023, %v2425
      %v2984 = vadd.f32 %v2024, %v2427
      %v2985 = vadd.f32 %v2025, %v2429
      %v2986 = vadd.f32 %v2026, %v2431
      %v2987 = vadd.f32 %v2027, %v2433
      %v2988 = vadd.f32 %v2028, %v2435
      %v2989 = vadd.f32 %v2029, %v2437
      %v2990 = vadd.f32 %v2030, %v2439
      %v2991 = vadd.f32 %v2031, %v2441
      %v2992 = vadd.f32 %v2032, %v2443
      %v2993 = vadd.f32 %v2033, %v2445
      %v2994 = vadd.f32 %v2034, %v2447
      %v2995 = vadd.f32 %v2035, %v2449
      %v2996 = vadd.f32 %v2036, %v2451
      %v2997 = vadd.f32 %v2037, %v2453
      %v2998 = vadd.f32 %v2038, %v2455
      %v2999 = vadd.f32 %v2039, %v2457
      %v3000 = vadd.f32 %v2040, %v2459
      %v3001 = vadd.f32 %v2041, %v2461
      %v3002 = vadd.f32 %v2042, %v2463
      %v3003 = vadd.f32 %v2043, %v2465
      %v3004 = vadd.f32 %v2044, %v2467
      %v3005 = vadd.f32 %v2045, %v2469
      %v3006 = vadd.f32 %v2046, %v2471
      %v3007 = vadd.f32 %v2047, %v2473
      %v3008 = vadd.f32 %v2048, %v2475
      %v3009 = vadd.f32 %v2049, %v2477
      %v3010 = vadd.f32 %v2050, %v2479
      %v3011 = vadd.f32 %v2051, %v2481
      %v3012 = vadd.f32 %v2052, %v2483
      %v3013 = vadd.f32 %v2053, %v2485
      %v3014 = vadd.f32 %v2054, %v2487
      %v3015 = vadd.f32 %v2055, %v2489
      %v3016 = vadd.f32 %v2056, %v2491
      %v3017 = vadd.f32 %v2057, %v2493
      %v3018 = vadd.f32 %v2058, %v2495
      %v3019 = vadd.f32 %v2059, %v2497
      %v3020 = vadd.f32 %v2060, %v2499
      %v3021 = vadd.f32 %v2061, %v2501
      %v3022 = vadd.f32 %v2062, %v2503
      %v3023 = vadd.f32 %v2063, %v2505
      %v3024 = vadd.f32 %v2064, %v2507
      %v3025 = vadd.f32 %v2065, %v2509
      %v3026 = vadd.f32 %v2066, %v2511
      %v3027 = vadd.f32 %v2067, %v2513
      %v3028 = vadd.f32 %v2068, %v2515
      %v3029 = vadd.f32 %v2069, %v2517
      %v3030 = vadd.f32 %v2070, %v2519
      %v3031 = vadd.f32 %v2071, %v2521
      %v3032 = vadd.f32 %v2072, %v2523
      %v3033 = vadd.f32 %v2073, %v2525
      %v3034 = vadd.f32 %v2074, %v2527
      %v3035 = vadd.f32 %v2075, %v2529
      %v3036 = vadd.f32 %v2076, %v2531
      %v3037 = vadd.f32 %v2077, %v2533
      %v3038 = vadd.f32 %v2078, %v2535
      %v3039 = vadd.f32 %v2079, %v2537
      %v3040 = vadd.f32 %v2080, %v2539
      %v3041 = vadd.f32 %v2081, %v2541
      %v3042 = vadd.f32 %v2082, %v2543
      %v3043 = vadd.f32 %v2083, %v2545
      %v3044 = vadd.f32 %v2084, %v2547
      %v3045 = vadd.f32 %v2085, %v2549
      %v3046 = vadd.f32 %v2086, %v2551
      %v3047 = vadd.f32 %v2087, %v2553
      %v3048 = vadd.f32 %v2088, %v2555
      %v3049 = vadd.f32 %v2089, %v2557
      %v3050 = vadd.f32 %v2090, %v2559
      %v3051 = vadd.f32 %v2091, %v2561
      %v3052 = vadd.f32 %v2092, %v2563
      %v3053 = vadd.f32 %v2093, %v2565
      %v3054 = vadd.f32 %v2094, %v2567
      %v3055 = vadd.f32 %v2095, %v2569
      %v3056 = vadd.f32 %v2096, %v2571
      %v3057 = vadd.f32 %v2097, %v2573
      %v3058 = vadd.f32 %v2098, %v2575
      %v3059 = vadd.f32 %v2099, %v2577
      %v3060 = vadd.f32 %v2100, %v2579
      %v3061 = vadd.f32 %v2101, %v2581
      %v3062 = vadd.f32 %v2102, %v2583
      %v3063 = vadd.f32 %v2103, %v2585
      %v3064 = vadd.f32 %v2104, %v2587
      %v3065 = vadd.f32 %v2105, %v2589
      %v3066 = vadd.f32 %v2106, %v2591
      %v3067 = vadd.f32 %v2107, %v2593
      %v3068 = vadd.f32 %v2108, %v2595
      %v3069 = vadd.f32 %v2109, %v2597
      %v3070 = vadd.f32 %v2110, %v2599
      %v3071 = vadd.f32 %v2111, %v2601
      %v3072 = vadd.f32 %v2112, %v2603
      %v3073 = vadd.f32 %v2113, %v2605
      %v3074 = vadd.f32 %v2114, %v2607
      %v3075 = vadd.f32 %v2115, %v2609
      %v3076 = vadd.f32 %v2116, %v2611
      %v3077 = vadd.f32 %v2117, %v2613
      %v3078 = vadd.f32 %v2118, %v2615
      %v3079 = vadd.f32 %v2119, %v2617
      %v3080 = vadd.f32 %v2120, %v2619
      %v3081 = vadd.f32 %v2121, %v2621
      %v3082 = vadd.f32 %v2122, %v2623
      %v3083 = vadd.f32 %v2123, %v2625
      %v3084 = vadd.f32 %v2124, %v2627
      %v3085 = vadd.f32 %v2125, %v2629
      %v3086 = vadd.f32 %v2126, %v2631
      %v3087 = vadd.f32 %v2127, %v2633
      %v3088 = vadd.f32 %v2128, %v2635
      %v3089 = vadd.f32 %v2129, %v2637
      %v3090 = vadd.f32 %v2130, %v2639
      %v3091 = vadd.f32 %v2131, %v2641
      %v3092 = vadd.f32 %v2132, %v2643
      %v3093 = vadd.f32 %v2133, %v2645
      %v3094 = vadd.f32 %v2134, %v2647
      %v3095 = vadd.f32 %v2135, %v2649
      %v3096 = vadd.f32 %v2136, %v2651
      %v3097 = vadd.f32 %v2137, %v2653
      %v3098 = vadd.f32 %v2138, %v2655
      %v3099 = vadd.f32 %v2139, %v2657
      %v3100 = vadd.f32 %v2140, %v2659
      %v3101 = vadd.f32 %v2141, %v2661
      %v3102 = vadd.f32 %v2142, %v2663
      %v3103 = vadd.f32 %v2143, %v2665
      %v3104 = vadd.f32 %v2144, %v2667
      %v3105 = vadd.f32 %v2145, %v2669
      %v3106 = vadd.f32 %v2146, %v2671
      %v3107 = vadd.f32 %v2147, %v2673
      %v3108 = vadd.f32 %v2148, %v2675
      %v3109 = vadd.f32 %v2149, %v2677
      %v3110 = vadd.f32 %v2150, %v2679
      %v3111 = vadd.f32 %v2151, %v2681
      %v3112 = vadd.f32 %v2152, %v2683
      %v3113 = vadd.f32 %v2153, %v2685
      %v3114 = vadd.f32 %v2154, %v2687
      %v3115 = vadd.f32 %v2155, %v2689
      %v3116 = vadd.f32 %v2156, %v2691
      %v3117 = vadd.f32 %v2157, %v2693
      %v3118 = vadd.f32 %v2158, %v2695
      %v3119 = vadd.f32 %v2159, %v2697
      %v3120 = vadd.f32 %v2160, %v2699
      %v3121 = vadd.f32 %v2161, %v2701
      %v3122 = vadd.f32 %v2162, %v2703
      %v3123 = vadd.f32 %v2163, %v2705
      %v3124 = vadd.f32 %v2164, %v2707
      %v3125 = vadd.f32 %v2165, %v2709
      %v3126 = vadd.f32 %v2166, %v2711
      %v3127 = vadd.f32 %v2167, %v2713
      %v3128 = vadd.f32 %v2168, %v2715
      %v3129 = vadd.f32 %v2169, %v2717
      %v3130 = vadd.f32 %v2170, %v2719
      %v3131 = vadd.f32 %v2171, %v2721
      %v3132 = vadd.f32 %v2172, %v2723
      %v3133 = vadd.f32 %v2173, %v2725
      %v3134 = vadd.f32 %v2174, %v2727
      %v3135 = vadd.f32 %v2175, %v2729
      %v3136 = vadd.f32 %v2176, %v2731
      %v3137 = vadd.f32 %v2177, %v2733
      %v3138 = vadd.f32 %v2178, %v2735
      %v3139 = vadd.f32 %v2179, %v2737
      %v3140 = vadd.f32 %v2180, %v2739
      %v3141 = vadd.f32 %v2181, %v2741
      %v3142 = vadd.f32 %v2182, %v2743
      %v3143 = vadd.f32 %v2183, %v2745
      %v3144 = vadd.f32 %v2184, %v2747
      %v3145 = vadd.f32 %v2185, %v2749
      %v3146 = vadd.f32 %v2186, %v2751
      %v3147 = vadd.f32 %v2187, %v2753
      %v3148 = vadd.f32 %v2188, %v2755
      %v3149 = vadd.f32 %v2189, %v2757
      %v3150 = vadd.f32 %v2190, %v2759
      %v3151 = vadd.f32 %v2191, %v2761
      %v3152 = vadd.f32 %v2192, %v2763
      %v3153 = vadd.f32 %v2193, %v2765
      %v3154 = vadd.f32 %v2194, %v2767
      %v3155 = vadd.f32 %v2195, %v2769
      %v3156 = vadd.f32 %v2196, %v2771
      %v3157 = vadd.f32 %v2197, %v2773
      %v3158 = vpack.c.bf16 %v2967, %v2966
      %v3159 = vpack.c.bf16 %v2969, %v2968
      %v3160 = vpack.c.bf16 %v2971, %v2970
      %v3161 = vpack.c.bf16 %v2973, %v2972
      %v3162 = vpack.c.bf16 %v2975, %v2974
      %v3163 = vpack.c.bf16 %v2977, %v2976
      %v3164 = vpack.c.bf16 %v2979, %v2978
      %v3165 = vpack.c.bf16 %v2981, %v2980
      %v3166 = vpack.c.bf16 %v2983, %v2982
      %v3167 = vpack.c.bf16 %v2985, %v2984
      %v3168 = vpack.c.bf16 %v2987, %v2986
      %v3169 = vpack.c.bf16 %v2989, %v2988
      %v3170 = vpack.c.bf16 %v2991, %v2990
      %v3171 = vpack.c.bf16 %v2993, %v2992
      %v3172 = vpack.c.bf16 %v2995, %v2994
      %v3173 = vpack.c.bf16 %v2997, %v2996
      %v3174 = vpack.c.bf16 %v2999, %v2998
      %v3175 = vpack.c.bf16 %v3001, %v3000
      %v3176 = vpack.c.bf16 %v3003, %v3002
      %v3177 = vpack.c.bf16 %v3005, %v3004
      %v3178 = vpack.c.bf16 %v3007, %v3006
      %v3179 = vpack.c.bf16 %v3009, %v3008
      %v3180 = vpack.c.bf16 %v3011, %v3010
      %v3181 = vpack.c.bf16 %v3013, %v3012
      %v3182 = vpack.c.bf16 %v3015, %v3014
      %v3183 = vpack.c.bf16 %v3017, %v3016
      %v3184 = vpack.c.bf16 %v3019, %v3018
      %v3185 = vpack.c.bf16 %v3021, %v3020
      %v3186 = vpack.c.bf16 %v3023, %v3022
      %v3187 = vpack.c.bf16 %v3025, %v3024
      %v3188 = vpack.c.bf16 %v3027, %v3026
      %v3189 = vpack.c.bf16 %v3029, %v3028
      %v3190 = vpack.c.bf16 %v3031, %v3030
      %v3191 = vpack.c.bf16 %v3033, %v3032
      %v3192 = vpack.c.bf16 %v3035, %v3034
      %v3193 = vpack.c.bf16 %v3037, %v3036
      %v3194 = vpack.c.bf16 %v3039, %v3038
      %v3195 = vpack.c.bf16 %v3041, %v3040
      %v3196 = vpack.c.bf16 %v3043, %v3042
      %v3197 = vpack.c.bf16 %v3045, %v3044
      %v3198 = vpack.c.bf16 %v3047, %v3046
      %v3199 = vpack.c.bf16 %v3049, %v3048
      %v3200 = vpack.c.bf16 %v3051, %v3050
      %v3201 = vpack.c.bf16 %v3053, %v3052
      %v3202 = vpack.c.bf16 %v3055, %v3054
      %v3203 = vpack.c.bf16 %v3057, %v3056
      %v3204 = vpack.c.bf16 %v3059, %v3058
      %v3205 = vpack.c.bf16 %v3061, %v3060
      %v3206 = vpack.c.bf16 %v3063, %v3062
      %v3207 = vpack.c.bf16 %v3065, %v3064
      %v3208 = vpack.c.bf16 %v3067, %v3066
      %v3209 = vpack.c.bf16 %v3069, %v3068
      %v3210 = vpack.c.bf16 %v3071, %v3070
      %v3211 = vpack.c.bf16 %v3073, %v3072
      %v3212 = vpack.c.bf16 %v3075, %v3074
      %v3213 = vpack.c.bf16 %v3077, %v3076
      %v3214 = vpack.c.bf16 %v3079, %v3078
      %v3215 = vpack.c.bf16 %v3081, %v3080
      %v3216 = vpack.c.bf16 %v3083, %v3082
      %v3217 = vpack.c.bf16 %v3085, %v3084
      %v3218 = vpack.c.bf16 %v3087, %v3086
      %v3219 = vpack.c.bf16 %v3089, %v3088
      %v3220 = vpack.c.bf16 %v3091, %v3090
      %v3221 = vpack.c.bf16 %v3093, %v3092
      %v3222 = vpack.c.bf16 %v3095, %v3094
      %v3223 = vpack.c.bf16 %v3097, %v3096
      %v3224 = vpack.c.bf16 %v3099, %v3098
      %v3225 = vpack.c.bf16 %v3101, %v3100
      %v3226 = vpack.c.bf16 %v3103, %v3102
      %v3227 = vpack.c.bf16 %v3105, %v3104
      %v3228 = vpack.c.bf16 %v3107, %v3106
      %v3229 = vpack.c.bf16 %v3109, %v3108
      %v3230 = vpack.c.bf16 %v3111, %v3110
      %v3231 = vpack.c.bf16 %v3113, %v3112
      %v3232 = vpack.c.bf16 %v3115, %v3114
      %v3233 = vpack.c.bf16 %v3117, %v3116
      %v3234 = vpack.c.bf16 %v3119, %v3118
      %v3235 = vpack.c.bf16 %v3121, %v3120
      %v3236 = vpack.c.bf16 %v3123, %v3122
      %v3237 = vpack.c.bf16 %v3125, %v3124
      %v3238 = vpack.c.bf16 %v3127, %v3126
      %v3239 = vpack.c.bf16 %v3129, %v3128
      %v3240 = vpack.c.bf16 %v3131, %v3130
      %v3241 = vpack.c.bf16 %v3133, %v3132
      %v3242 = vpack.c.bf16 %v3135, %v3134
      %v3243 = vpack.c.bf16 %v3137, %v3136
      %v3244 = vpack.c.bf16 %v3139, %v3138
      %v3245 = vpack.c.bf16 %v3141, %v3140
      %v3246 = vpack.c.bf16 %v3143, %v3142
      %v3247 = vpack.c.bf16 %v3145, %v3144
      %v3248 = vpack.c.bf16 %v3147, %v3146
      %v3249 = vpack.c.bf16 %v3149, %v3148
      %v3250 = vpack.c.bf16 %v3151, %v3150
      %v3251 = vpack.c.bf16 %v3153, %v3152
      %v3252 = vpack.c.bf16 %v3155, %v3154
      %v3253 = vpack.c.bf16 %v3157, %v3156
      %v3254 = vld [vmem:[%s3] sm:$0xf]
      %v3255 = vld [vmem:[%s3 + $0x4] sm:$0xf]
      %v3256 = vld [vmem:[%s3 + $0x8] sm:$0xf]
      %v3257 = vld [vmem:[%s3 + $0xc] sm:$0xf]
      %v3258 = vld [vmem:[%s4] sm:$0x1]
      %v3260 = vlaneseq
      %v3261 = vshrl.u32 %v3260, 7
      %v3262 = vsub.s32 0, %v3261
      %v3263 = vrot.slane %v3258, %v3262
      %v3269 = vunpack.c.l.b16 %v3254
      %v3270 = vunpack.c.l.b16 %v3255
      %v3271 = vunpack.c.l.b16 %v3256
      %v3272 = vunpack.c.l.b16 %v3257
      %v3273 = vpack.c.b16 %v3270, %v3269
      %v3274 = vpack.c.b16 %v3272, %v3271
      %vm3277 = vcmask 261120
      %v3279 = vsel %vm3277, %v3158, 0
      %v3282 = vsel %vm3277, %v3159, 0
      %v3285 = vsel %vm3277, %v3160, 0
      %v3288 = vsel %vm3277, %v3161, 0
      %v3291 = vsel %vm3277, %v3162, 0
      %v3294 = vsel %vm3277, %v3163, 0
      %v3297 = vsel %vm3277, %v3164, 0
      %v3300 = vsel %vm3277, %v3165, 0
      %v3303 = vsel %vm3277, %v3166, 0
      %v3306 = vsel %vm3277, %v3167, 0
      %v3309 = vsel %vm3277, %v3168, 0
      %v3312 = vsel %vm3277, %v3169, 0
      %v3315 = vsel %vm3277, %v3170, 0
      %v3318 = vsel %vm3277, %v3171, 0
      %v3321 = vsel %vm3277, %v3172, 0
      %v3324 = vsel %vm3277, %v3173, 0
      %v3327 = vsel %vm3277, %v3174, 0
      %v3330 = vsel %vm3277, %v3175, 0
      %v3333 = vsel %vm3277, %v3176, 0
      %v3336 = vsel %vm3277, %v3177, 0
      %v3339 = vsel %vm3277, %v3178, 0
      %v3342 = vsel %vm3277, %v3179, 0
      %v3345 = vsel %vm3277, %v3180, 0
      %v3348 = vsel %vm3277, %v3181, 0
      %v3351 = vsel %vm3277, %v3182, 0
      %v3354 = vsel %vm3277, %v3183, 0
      %v3357 = vsel %vm3277, %v3184, 0
      %v3360 = vsel %vm3277, %v3185, 0
      %v3363 = vsel %vm3277, %v3186, 0
      %v3366 = vsel %vm3277, %v3187, 0
      %v3369 = vsel %vm3277, %v3188, 0
      %v3372 = vsel %vm3277, %v3189, 0
      %v3375 = vsel %vm3277, %v3190, 0
      %v3378 = vsel %vm3277, %v3191, 0
      %v3381 = vsel %vm3277, %v3192, 0
      %v3384 = vsel %vm3277, %v3193, 0
      %v3387 = vsel %vm3277, %v3194, 0
      %v3390 = vsel %vm3277, %v3195, 0
      %v3393 = vsel %vm3277, %v3196, 0
      %v3396 = vsel %vm3277, %v3197, 0
      %v3399 = vsel %vm3277, %v3198, 0
      %v3402 = vsel %vm3277, %v3199, 0
      %v3405 = vsel %vm3277, %v3200, 0
      %v3408 = vsel %vm3277, %v3201, 0
      %v3411 = vsel %vm3277, %v3202, 0
      %v3414 = vsel %vm3277, %v3203, 0
      %v3417 = vsel %vm3277, %v3204, 0
      %v3420 = vsel %vm3277, %v3205, 0
      %v3423 = vsel %vm3277, %v3206, 0
      %v3426 = vsel %vm3277, %v3207, 0
      %v3429 = vsel %vm3277, %v3208, 0
      %v3432 = vsel %vm3277, %v3209, 0
      %v3435 = vsel %vm3277, %v3210, 0
      %v3438 = vsel %vm3277, %v3211, 0
      %v3441 = vsel %vm3277, %v3212, 0
      %v3444 = vsel %vm3277, %v3213, 0
      %v3447 = vsel %vm3277, %v3214, 0
      %v3450 = vsel %vm3277, %v3215, 0
      %v3453 = vsel %vm3277, %v3216, 0
      %v3456 = vsel %vm3277, %v3217, 0
      %v3459 = vsel %vm3277, %v3218, 0
      %v3462 = vsel %vm3277, %v3219, 0
      %v3465 = vsel %vm3277, %v3220, 0
      %v3468 = vsel %vm3277, %v3221, 0
      %v3471 = vsel %vm3277, %v3222, 0
      %v3474 = vsel %vm3277, %v3223, 0
      %v3477 = vsel %vm3277, %v3224, 0
      %v3480 = vsel %vm3277, %v3225, 0
      %v3483 = vsel %vm3277, %v3226, 0
      %v3486 = vsel %vm3277, %v3227, 0
      %v3489 = vsel %vm3277, %v3228, 0
      %v3492 = vsel %vm3277, %v3229, 0
      %v3495 = vsel %vm3277, %v3230, 0
      %v3498 = vsel %vm3277, %v3231, 0
      %v3501 = vsel %vm3277, %v3232, 0
      %v3504 = vsel %vm3277, %v3233, 0
      %v3507 = vsel %vm3277, %v3234, 0
      %v3510 = vsel %vm3277, %v3235, 0
      %v3513 = vsel %vm3277, %v3236, 0
      %v3516 = vsel %vm3277, %v3237, 0
      %v3519 = vsel %vm3277, %v3238, 0
      %v3522 = vsel %vm3277, %v3239, 0
      %v3525 = vsel %vm3277, %v3240, 0
      %v3528 = vsel %vm3277, %v3241, 0
      %v3531 = vsel %vm3277, %v3242, 0
      %v3534 = vsel %vm3277, %v3243, 0
      %v3537 = vsel %vm3277, %v3244, 0
      %v3540 = vsel %vm3277, %v3245, 0
      %v3543 = vsel %vm3277, %v3246, 0
      %v3546 = vsel %vm3277, %v3247, 0
      %v3549 = vsel %vm3277, %v3248, 0
      %v3552 = vsel %vm3277, %v3249, 0
      %v3555 = vsel %vm3277, %v3250, 0
      %v3558 = vsel %vm3277, %v3251, 0
      %v3561 = vsel %vm3277, %v3252, 0
      %v3564 = vsel %vm3277, %v3253, 0
      %3566 = vmatprep.subr.bf16.mxu0 0
      %3567 = vmatpush1.bf16.msra.mxu0 %v3273
      %3568 = vmatprep.subr.bf16.mxu0 0
      %3569 = vmatpush1.bf16.msra.mxu0 %v3274
      %3570 = vmatprep.subr.bf16.mxu0 0
      %3571 = vmatpush1.bf16.msra.mxu0 0
      %3572 = vmatprep.subr.bf16.mxu0 0
      %3573 = vmatpush1.bf16.msra.mxu0 0
      %3574 = vmatprep.subr.bf16.mxu0 0
      %3575 = vmatpush1.bf16.msra.mxu0 0
      %3576 = vmatprep.subr.bf16.mxu0 0
      %3577 = vmatpush1.bf16.msra.mxu0 0
      %3578 = vmatprep.subr.bf16.mxu0 0
      %3579 = vmatpush1.bf16.msra.mxu0 0
      %3580 = vmatprep.subr.bf16.mxu0 0
      %3581 = vmatpush1.bf16.msra.mxu0 0
      %3582 = vmatprep.subr.bf16.mxu0 0
      %3583 = vmatpush1.bf16.msra.mxu0 0
      %3584 = vmatprep.subr.bf16.mxu0 0
      %3585 = vmatpush1.bf16.msra.mxu0 0
      %3586 = vmatprep.subr.bf16.mxu0 0
      %3587 = vmatpush1.bf16.msra.mxu0 0
      %3588 = vmatprep.subr.bf16.mxu0 0
      %3589 = vmatpush1.bf16.msra.mxu0 0
      %3590 = vmatprep.subr.bf16.mxu0 0
      %3591 = vmatpush1.bf16.msra.mxu0 0
      %3592 = vmatprep.subr.bf16.mxu0 0
      %3593 = vmatpush1.bf16.msra.mxu0 0
      %3594 = vmatprep.subr.bf16.mxu0 0
      %3595 = vmatpush1.bf16.msra.mxu0 0
      %3596 = vmatprep.subr.bf16.mxu0 0
      %3597 = vmatpush1.bf16.msra.mxu0 0
      %3598 = vmatprep.mubr.bf16.mxu0 0
      %3599 = vmatmul.mubr.bf16.gmra.mrb[0].mxu0 %v3279
      %v3600 = vpop.f32.mrb[0].mxu0
      %v3601 = vadd.f32 %v3263, %v3600
      %v3602 = vpop.f32.mrb[0].mxu0
      %v3603 = vpop.f32.mrb[0].mxu0
      %v3604 = vadd.f32 %v3263, %v3603
      %v3605 = vpop.f32.mrb[0].mxu0
      %3606 = vmatprep.mubr.bf16.mxu0 0
      %3607 = vmatmul.mubr.bf16.gmra.mrb[0].mxu0 %v3282
      %v3608 = vpop.f32.mrb[0].mxu0
      %v3609 = vadd.f32 %v3263, %v3608
      %v3610 = vpop.f32.mrb[0].mxu0
      %v3611 = vpop.f32.mrb[0].mxu0
      %v3612 = vadd.f32 %v3263, %v3611
      %v3613 = vpop.f32.mrb[0].mxu0
      %3614 = vmatprep.mubr.bf16.mxu0 0
      %3615 = vmatmul.mubr.bf16.gmra.mrb[0].mxu0 %v3285
      %v3616 = vpop.f32.mrb[0].mxu0
      %v3617 = vadd.f32 %v3263, %v3616
      %v3618 = vpop.f32.mrb[0].mxu0
      %v3619 = vpop.f32.mrb[0].mxu0
      %v3620 = vadd.f32 %v3263, %v3619
      %v3621 = vpop.f32.mrb[0].mxu0
      %3622 = vmatprep.mubr.bf16.mxu0 0
      %3623 = vmatmul.mubr.bf16.gmra.mrb[0].mxu0 %v3288
      %v3624 = vpop.f32.mrb[0].mxu0
      %v3625 = vadd.f32 %v3263, %v3624
      %v3626 = vpop.f32.mrb[0].mxu0
      %v3627 = vpop.f32.mrb[0].mxu0
      %v3628 = vadd.f32 %v3263, %v3627
      %v3629 = vpop.f32.mrb[0].mxu0
      %3630 = vmatprep.mubr.bf16.mxu0 0
      %3631 = vmatmul.mubr.bf16.gmra.mrb[0].mxu0 %v3291
      %v3632 = vpop.f32.mrb[0].mxu0
      %v3633 = vadd.f32 %v3263, %v3632
      %v3634 = vpop.f32.mrb[0].mxu0
      %v3635 = vpop.f32.mrb[0].mxu0
      %v3636 = vadd.f32 %v3263, %v3635
      %v3637 = vpop.f32.mrb[0].mxu0
      %3638 = vmatprep.mubr.bf16.mxu0 0
      %3639 = vmatmul.mubr.bf16.gmra.mrb[0].mxu0 %v3294
      %v3640 = vpop.f32.mrb[0].mxu0
      %v3641 = vadd.f32 %v3263, %v3640
      %v3642 = vpop.f32.mrb[0].mxu0
      %v3643 = vpop.f32.mrb[0].mxu0
      %v3644 = vadd.f32 %v3263, %v3643
      %v3645 = vpop.f32.mrb[0].mxu0
      %3646 = vmatprep.mubr.bf16.mxu0 0
      %3647 = vmatmul.mubr.bf16.gmra.mrb[0].mxu0 %v3297
      %v3648 = vpop.f32.mrb[0].mxu0
      %v3649 = vadd.f32 %v3263, %v3648
      %v3650 = vpop.f32.mrb[0].mxu0
      %v3651 = vpop.f32.mrb[0].mxu0
      %v3652 = vadd.f32 %v3263, %v3651
      %v3653 = vpop.f32.mrb[0].mxu0
      %3654 = vmatprep.mubr.bf16.mxu0 0
      %3655 = vmatmul.mubr.bf16.gmra.mrb[0].mxu0 %v3300
      %v3656 = vpop.f32.mrb[0].mxu0
      %v3657 = vadd.f32 %v3263, %v3656
      %v3658 = vpop.f32.mrb[0].mxu0
      %v3659 = vpop.f32.mrb[0].mxu0
      %v3660 = vadd.f32 %v3263, %v3659
      %v3661 = vpop.f32.mrb[0].mxu0
      %3662 = vmatprep.mubr.bf16.mxu0 0
      %3663 = vmatmul.mubr.bf16.gmra.mrb[0].mxu0 %v3303
      %v3664 = vpop.f32.mrb[0].mxu0
      %v3665 = vadd.f32 %v3263, %v3664
      %v3666 = vpop.f32.mrb[0].mxu0
      %v3667 = vpop.f32.mrb[0].mxu0
      %v3668 = vadd.f32 %v3263, %v3667
      %v3669 = vpop.f32.mrb[0].mxu0
      %3670 = vmatprep.mubr.bf16.mxu0 0
      %3671 = vmatmul.mubr.bf16.gmra.mrb[0].mxu0 %v3306
      %v3672 = vpop.f32.mrb[0].mxu0
      %v3673 = vadd.f32 %v3263, %v3672
      %v3674 = vpop.f32.mrb[0].mxu0
      %v3675 = vpop.f32.mrb[0].mxu0
      %v3676 = vadd.f32 %v3263, %v3675
      %v3677 = vpop.f32.mrb[0].mxu0
      %3678 = vmatprep.mubr.bf16.mxu0 0
      %3679 = vmatmul.mubr.bf16.gmra.mrb[0].mxu0 %v3309
      %v3680 = vpop.f32.mrb[0].mxu0
      %v3681 = vadd.f32 %v3263, %v3680
      %v3682 = vpop.f32.mrb[0].mxu0
      %v3683 = vpop.f32.mrb[0].mxu0
      %v3684 = vadd.f32 %v3263, %v3683
      %v3685 = vpop.f32.mrb[0].mxu0
      %3686 = vmatprep.mubr.bf16.mxu0 0
      %3687 = vmatmul.mubr.bf16.gmra.mrb[0].mxu0 %v3312
      %v3688 = vpop.f32.mrb[0].mxu0
      %v3689 = vadd.f32 %v3263, %v3688
      %v3690 = vpop.f32.mrb[0].mxu0
      %v3691 = vpop.f32.mrb[0].mxu0
      %v3692 = vadd.f32 %v3263, %v3691
      %v3693 = vpop.f32.mrb[0].mxu0
      %3694 = vmatprep.mubr.bf16.mxu0 0
      %3695 = vmatmul.mubr.bf16.gmra.mrb[0].mxu0 %v3315
      %v3696 = vpop.f32.mrb[0].mxu0
      %v3697 = vadd.f32 %v3263, %v3696
      %v3698 = vpop.f32.mrb[0].mxu0
      %v3699 = vpop.f32.mrb[0].mxu0
      %v3700 = vadd.f32 %v3263, %v3699
      %v3701 = vpop.f32.mrb[0].mxu0
      %3702 = vmatprep.mubr.bf16.mxu0 0
      %3703 = vmatmul.mubr.bf16.gmra.mrb[0].mxu0 %v3318
      %v3704 = vpop.f32.mrb[0].mxu0
      %v3705 = vadd.f32 %v3263, %v3704
      %v3706 = vpop.f32.mrb[0].mxu0
      %v3707 = vpop.f32.mrb[0].mxu0
      %v3708 = vadd.f32 %v3263, %v3707
      %v3709 = vpop.f32.mrb[0].mxu0
      %3710 = vmatprep.mubr.bf16.mxu0 0
      %3711 = vmatmul.mubr.bf16.gmra.mrb[0].mxu0 %v3321
      %v3712 = vpop.f32.mrb[0].mxu0
      %v3713 = vadd.f32 %v3263, %v3712
      %v3714 = vpop.f32.mrb[0].mxu0
      %v3715 = vpop.f32.mrb[0].mxu0
      %v3716 = vadd.f32 %v3263, %v3715
      %v3717 = vpop.f32.mrb[0].mxu0
      %3718 = vmatprep.mubr.bf16.mxu0 0
      %3719 = vmatmul.mubr.bf16.gmra.mrb[0].mxu0 %v3324
      %v3720 = vpop.f32.mrb[0].mxu0
      %v3721 = vadd.f32 %v3263, %v3720
      %v3722 = vpop.f32.mrb[0].mxu0
      %v3723 = vpop.f32.mrb[0].mxu0
      %v3724 = vadd.f32 %v3263, %v3723
      %v3725 = vpop.f32.mrb[0].mxu0
      %3726 = vmatprep.mubr.bf16.mxu0 0
      %3727 = vmatmul.mubr.bf16.gmra.mrb[0].mxu0 %v3327
      %v3728 = vpop.f32.mrb[0].mxu0
      %v3729 = vadd.f32 %v3263, %v3728
      %v3730 = vpop.f32.mrb[0].mxu0
      %v3731 = vpop.f32.mrb[0].mxu0
      %v3732 = vadd.f32 %v3263, %v3731
      %v3733 = vpop.f32.mrb[0].mxu0
      %3734 = vmatprep.mubr.bf16.mxu0 0
      %3735 = vmatmul.mubr.bf16.gmra.mrb[0].mxu0 %v3330
      %v3736 = vpop.f32.mrb[0].mxu0
      %v3737 = vadd.f32 %v3263, %v3736
      %v3738 = vpop.f32.mrb[0].mxu0
      %v3739 = vpop.f32.mrb[0].mxu0
      %v3740 = vadd.f32 %v3263, %v3739
      %v3741 = vpop.f32.mrb[0].mxu0
      %3742 = vmatprep.mubr.bf16.mxu0 0
      %3743 = vmatmul.mubr.bf16.gmra.mrb[0].mxu0 %v3333
      %v3744 = vpop.f32.mrb[0].mxu0
      %v3745 = vadd.f32 %v3263, %v3744
      %v3746 = vpop.f32.mrb[0].mxu0
      %v3747 = vpop.f32.mrb[0].mxu0
      %v3748 = vadd.f32 %v3263, %v3747
      %v3749 = vpop.f32.mrb[0].mxu0
      %3750 = vmatprep.mubr.bf16.mxu0 0
      %3751 = vmatmul.mubr.bf16.gmra.mrb[0].mxu0 %v3336
      %v3752 = vpop.f32.mrb[0].mxu0
      %v3753 = vadd.f32 %v3263, %v3752
      %v3754 = vpop.f32.mrb[0].mxu0
      %v3755 = vpop.f32.mrb[0].mxu0
      %v3756 = vadd.f32 %v3263, %v3755
      %v3757 = vpop.f32.mrb[0].mxu0
      %3758 = vmatprep.mubr.bf16.mxu0 0
      %3759 = vmatmul.mubr.bf16.gmra.mrb[0].mxu0 %v3339
      %v3760 = vpop.f32.mrb[0].mxu0
      %v3761 = vadd.f32 %v3263, %v3760
      %v3762 = vpop.f32.mrb[0].mxu0
      %v3763 = vpop.f32.mrb[0].mxu0
      %v3764 = vadd.f32 %v3263, %v3763
      %v3765 = vpop.f32.mrb[0].mxu0
      %3766 = vmatprep.mubr.bf16.mxu0 0
      %3767 = vmatmul.mubr.bf16.gmra.mrb[0].mxu0 %v3342
      %v3768 = vpop.f32.mrb[0].mxu0
      %v3769 = vadd.f32 %v3263, %v3768
      %v3770 = vpop.f32.mrb[0].mxu0
      %v3771 = vpop.f32.mrb[0].mxu0
      %v3772 = vadd.f32 %v3263, %v3771
      %v3773 = vpop.f32.mrb[0].mxu0
      %3774 = vmatprep.mubr.bf16.mxu0 0
      %3775 = vmatmul.mubr.bf16.gmra.mrb[0].mxu0 %v3345
      %v3776 = vpop.f32.mrb[0].mxu0
      %v3777 = vadd.f32 %v3263, %v3776
      %v3778 = vpop.f32.mrb[0].mxu0
      %v3779 = vpop.f32.mrb[0].mxu0
      %v3780 = vadd.f32 %v3263, %v3779
      %v3781 = vpop.f32.mrb[0].mxu0
      %3782 = vmatprep.mubr.bf16.mxu0 0
      %3783 = vmatmul.mubr.bf16.gmra.mrb[0].mxu0 %v3348
      %v3784 = vpop.f32.mrb[0].mxu0
      %v3785 = vadd.f32 %v3263, %v3784
      %v3786 = vpop.f32.mrb[0].mxu0
      %v3787 = vpop.f32.mrb[0].mxu0
      %v3788 = vadd.f32 %v3263, %v3787
      %v3789 = vpop.f32.mrb[0].mxu0
      %3790 = vmatprep.mubr.bf16.mxu0 0
      %3791 = vmatmul.mubr.bf16.gmra.mrb[0].mxu0 %v3351
      %v3792 = vpop.f32.mrb[0].mxu0
      %v3793 = vadd.f32 %v3263, %v3792
      %v3794 = vpop.f32.mrb[0].mxu0
      %v3795 = vpop.f32.mrb[0].mxu0
      %v3796 = vadd.f32 %v3263, %v3795
      %v3797 = vpop.f32.mrb[0].mxu0
      %3798 = vmatprep.mubr.bf16.mxu0 0
      %3799 = vmatmul.mubr.bf16.gmra.mrb[0].mxu0 %v3354
      %v3800 = vpop.f32.mrb[0].mxu0
      %v3801 = vadd.f32 %v3263, %v3800
      %v3802 = vpop.f32.mrb[0].mxu0
      %v3803 = vpop.f32.mrb[0].mxu0
      %v3804 = vadd.f32 %v3263, %v3803
      %v3805 = vpop.f32.mrb[0].mxu0
      %3806 = vmatprep.mubr.bf16.mxu0 0
      %3807 = vmatmul.mubr.bf16.gmra.mrb[0].mxu0 %v3357
      %v3808 = vpop.f32.mrb[0].mxu0
      %v3809 = vadd.f32 %v3263, %v3808
      %v3810 = vpop.f32.mrb[0].mxu0
      %v3811 = vpop.f32.mrb[0].mxu0
      %v3812 = vadd.f32 %v3263, %v3811
      %v3813 = vpop.f32.mrb[0].mxu0
      %3814 = vmatprep.mubr.bf16.mxu0 0
      %3815 = vmatmul.mubr.bf16.gmra.mrb[0].mxu0 %v3360
      %v3816 = vpop.f32.mrb[0].mxu0
      %v3817 = vadd.f32 %v3263, %v3816
      %v3818 = vpop.f32.mrb[0].mxu0
      %v3819 = vpop.f32.mrb[0].mxu0
      %v3820 = vadd.f32 %v3263, %v3819
      %v3821 = vpop.f32.mrb[0].mxu0
      %3822 = vmatprep.mubr.bf16.mxu0 0
      %3823 = vmatmul.mubr.bf16.gmra.mrb[0].mxu0 %v3363
      %v3824 = vpop.f32.mrb[0].mxu0
      %v3825 = vadd.f32 %v3263, %v3824
      %v3826 = vpop.f32.mrb[0].mxu0
      %v3827 = vpop.f32.mrb[0].mxu0
      %v3828 = vadd.f32 %v3263, %v3827
      %v3829 = vpop.f32.mrb[0].mxu0
      %3830 = vmatprep.mubr.bf16.mxu0 0
      %3831 = vmatmul.mubr.bf16.gmra.mrb[0].mxu0 %v3366
      %v3832 = vpop.f32.mrb[0].mxu0
      %v3833 = vadd.f32 %v3263, %v3832
      %v3834 = vpop.f32.mrb[0].mxu0
      %v3835 = vpop.f32.mrb[0].mxu0
      %v3836 = vadd.f32 %v3263, %v3835
      %v3837 = vpop.f32.mrb[0].mxu0
      %3838 = vmatprep.mubr.bf16.mxu0 0
      %3839 = vmatmul.mubr.bf16.gmra.mrb[0].mxu0 %v3369
      %v3840 = vpop.f32.mrb[0].mxu0
      %v3841 = vadd.f32 %v3263, %v3840
      %v3842 = vpop.f32.mrb[0].mxu0
      %v3843 = vpop.f32.mrb[0].mxu0
      %v3844 = vadd.f32 %v3263, %v3843
      %v3845 = vpop.f32.mrb[0].mxu0
      %3846 = vmatprep.mubr.bf16.mxu0 0
      %3847 = vmatmul.mubr.bf16.gmra.mrb[0].mxu0 %v3372
      %v3848 = vpop.f32.mrb[0].mxu0
      %v3849 = vadd.f32 %v3263, %v3848
      %v3850 = vpop.f32.mrb[0].mxu0
      %v3851 = vpop.f32.mrb[0].mxu0
      %v3852 = vadd.f32 %v3263, %v3851
      %v3853 = vpop.f32.mrb[0].mxu0
      %3854 = vmatprep.mubr.bf16.mxu0 0
      %3855 = vmatmul.mubr.bf16.gmra.mrb[0].mxu0 %v3375
      %v3856 = vpop.f32.mrb[0].mxu0
      %v3857 = vadd.f32 %v3263, %v3856
      %v3858 = vpop.f32.mrb[0].mxu0
      %v3859 = vpop.f32.mrb[0].mxu0
      %v3860 = vadd.f32 %v3263, %v3859
      %v3861 = vpop.f32.mrb[0].mxu0
      %3862 = vmatprep.mubr.bf16.mxu0 0
      %3863 = vmatmul.mubr.bf16.gmra.mrb[0].mxu0 %v3378
      %v3864 = vpop.f32.mrb[0].mxu0
      %v3865 = vadd.f32 %v3263, %v3864
      %v3866 = vpop.f32.mrb[0].mxu0
      %v3867 = vpop.f32.mrb[0].mxu0
      %v3868 = vadd.f32 %v3263, %v3867
      %v3869 = vpop.f32.mrb[0].mxu0
      %3870 = vmatprep.mubr.bf16.mxu0 0
      %3871 = vmatmul.mubr.bf16.gmra.mrb[0].mxu0 %v3381
      %v3872 = vpop.f32.mrb[0].mxu0
      %v3873 = vadd.f32 %v3263, %v3872
      %v3874 = vpop.f32.mrb[0].mxu0
      %v3875 = vpop.f32.mrb[0].mxu0
      %v3876 = vadd.f32 %v3263, %v3875
      %v3877 = vpop.f32.mrb[0].mxu0
      %3878 = vmatprep.mubr.bf16.mxu0 0
      %3879 = vmatmul.mubr.bf16.gmra.mrb[0].mxu0 %v3384
      %v3880 = vpop.f32.mrb[0].mxu0
      %v3881 = vadd.f32 %v3263, %v3880
      %v3882 = vpop.f32.mrb[0].mxu0
      %v3883 = vpop.f32.mrb[0].mxu0
      %v3884 = vadd.f32 %v3263, %v3883
      %v3885 = vpop.f32.mrb[0].mxu0
      %3886 = vmatprep.mubr.bf16.mxu0 0
      %3887 = vmatmul.mubr.bf16.gmra.mrb[0].mxu0 %v3387
      %v3888 = vpop.f32.mrb[0].mxu0
      %v3889 = vadd.f32 %v3263, %v3888
      %v3890 = vpop.f32.mrb[0].mxu0
      %v3891 = vpop.f32.mrb[0].mxu0
      %v3892 = vadd.f32 %v3263, %v3891
      %v3893 = vpop.f32.mrb[0].mxu0
      %3894 = vmatprep.mubr.bf16.mxu0 0
      %3895 = vmatmul.mubr.bf16.gmra.mrb[0].mxu0 %v3390
      %v3896 = vpop.f32.mrb[0].mxu0
      %v3897 = vadd.f32 %v3263, %v3896
      %v3898 = vpop.f32.mrb[0].mxu0
      %v3899 = vpop.f32.mrb[0].mxu0
      %v3900 = vadd.f32 %v3263, %v3899
      %v3901 = vpop.f32.mrb[0].mxu0
      %3902 = vmatprep.mubr.bf16.mxu0 0
      %3903 = vmatmul.mubr.bf16.gmra.mrb[0].mxu0 %v3393
      %v3904 = vpop.f32.mrb[0].mxu0
      %v3905 = vadd.f32 %v3263, %v3904
      %v3906 = vpop.f32.mrb[0].mxu0
      %v3907 = vpop.f32.mrb[0].mxu0
      %v3908 = vadd.f32 %v3263, %v3907
      %v3909 = vpop.f32.mrb[0].mxu0
      %3910 = vmatprep.mubr.bf16.mxu0 0
      %3911 = vmatmul.mubr.bf16.gmra.mrb[0].mxu0 %v3396
      %v3912 = vpop.f32.mrb[0].mxu0
      %v3913 = vadd.f32 %v3263, %v3912
      %v3914 = vpop.f32.mrb[0].mxu0
      %v3915 = vpop.f32.mrb[0].mxu0
      %v3916 = vadd.f32 %v3263, %v3915
      %v3917 = vpop.f32.mrb[0].mxu0
      %3918 = vmatprep.mubr.bf16.mxu0 0
      %3919 = vmatmul.mubr.bf16.gmra.mrb[0].mxu0 %v3399
      %v3920 = vpop.f32.mrb[0].mxu0
      %v3921 = vadd.f32 %v3263, %v3920
      %v3922 = vpop.f32.mrb[0].mxu0
      %v3923 = vpop.f32.mrb[0].mxu0
      %v3924 = vadd.f32 %v3263, %v3923
      %v3925 = vpop.f32.mrb[0].mxu0
      %3926 = vmatprep.mubr.bf16.mxu0 0
      %3927 = vmatmul.mubr.bf16.gmra.mrb[0].mxu0 %v3402
      %v3928 = vpop.f32.mrb[0].mxu0
      %v3929 = vadd.f32 %v3263, %v3928
      %v3930 = vpop.f32.mrb[0].mxu0
      %v3931 = vpop.f32.mrb[0].mxu0
      %v3932 = vadd.f32 %v3263, %v3931
      %v3933 = vpop.f32.mrb[0].mxu0
      %3934 = vmatprep.mubr.bf16.mxu0 0
      %3935 = vmatmul.mubr.bf16.gmra.mrb[0].mxu0 %v3405
      %v3936 = vpop.f32.mrb[0].mxu0
      %v3937 = vadd.f32 %v3263, %v3936
      %v3938 = vpop.f32.mrb[0].mxu0
      %v3939 = vpop.f32.mrb[0].mxu0
      %v3940 = vadd.f32 %v3263, %v3939
      %v3941 = vpop.f32.mrb[0].mxu0
      %3942 = vmatprep.mubr.bf16.mxu0 0
      %3943 = vmatmul.mubr.bf16.gmra.mrb[0].mxu0 %v3408
      %v3944 = vpop.f32.mrb[0].mxu0
      %v3945 = vadd.f32 %v3263, %v3944
      %v3946 = vpop.f32.mrb[0].mxu0
      %v3947 = vpop.f32.mrb[0].mxu0
      %v3948 = vadd.f32 %v3263, %v3947
      %v3949 = vpop.f32.mrb[0].mxu0
      %3950 = vmatprep.mubr.bf16.mxu0 0
      %3951 = vmatmul.mubr.bf16.gmra.mrb[0].mxu0 %v3411
      %v3952 = vpop.f32.mrb[0].mxu0
      %v3953 = vadd.f32 %v3263, %v3952
      %v3954 = vpop.f32.mrb[0].mxu0
      %v3955 = vpop.f32.mrb[0].mxu0
      %v3956 = vadd.f32 %v3263, %v3955
      %v3957 = vpop.f32.mrb[0].mxu0
      %3958 = vmatprep.mubr.bf16.mxu0 0
      %3959 = vmatmul.mubr.bf16.gmra.mrb[0].mxu0 %v3414
      %v3960 = vpop.f32.mrb[0].mxu0
      %v3961 = vadd.f32 %v3263, %v3960
      %v3962 = vpop.f32.mrb[0].mxu0
      %v3963 = vpop.f32.mrb[0].mxu0
      %v3964 = vadd.f32 %v3263, %v3963
      %v3965 = vpop.f32.mrb[0].mxu0
      %3966 = vmatprep.mubr.bf16.mxu0 0
      %3967 = vmatmul.mubr.bf16.gmra.mrb[0].mxu0 %v3417
      %v3968 = vpop.f32.mrb[0].mxu0
      %v3969 = vadd.f32 %v3263, %v3968
      %v3970 = vpop.f32.mrb[0].mxu0
      %v3971 = vpop.f32.mrb[0].mxu0
      %v3972 = vadd.f32 %v3263, %v3971
      %v3973 = vpop.f32.mrb[0].mxu0
      %3974 = vmatprep.mubr.bf16.mxu0 0
      %3975 = vmatmul.mubr.bf16.gmra.mrb[0].mxu0 %v3420
      %v3976 = vpop.f32.mrb[0].mxu0
      %v3977 = vadd.f32 %v3263, %v3976
      %v3978 = vpop.f32.mrb[0].mxu0
      %v3979 = vpop.f32.mrb[0].mxu0
      %v3980 = vadd.f32 %v3263, %v3979
      %v3981 = vpop.f32.mrb[0].mxu0
      %3982 = vmatprep.mubr.bf16.mxu0 0
      %3983 = vmatmul.mubr.bf16.gmra.mrb[0].mxu0 %v3423
      %v3984 = vpop.f32.mrb[0].mxu0
      %v3985 = vadd.f32 %v3263, %v3984
      %v3986 = vpop.f32.mrb[0].mxu0
      %v3987 = vpop.f32.mrb[0].mxu0
      %v3988 = vadd.f32 %v3263, %v3987
      %v3989 = vpop.f32.mrb[0].mxu0
      %3990 = vmatprep.mubr.bf16.mxu0 0
      %3991 = vmatmul.mubr.bf16.gmra.mrb[0].mxu0 %v3426
      %v3992 = vpop.f32.mrb[0].mxu0
      %v3993 = vadd.f32 %v3263, %v3992
      %v3994 = vpop.f32.mrb[0].mxu0
      %v3995 = vpop.f32.mrb[0].mxu0
      %v3996 = vadd.f32 %v3263, %v3995
      %v3997 = vpop.f32.mrb[0].mxu0
      %3998 = vmatprep.mubr.bf16.mxu0 0
      %3999 = vmatmul.mubr.bf16.gmra.mrb[0].mxu0 %v3429
      %v4000 = vpop.f32.mrb[0].mxu0
      %v4001 = vadd.f32 %v3263, %v4000
      %v4002 = vpop.f32.mrb[0].mxu0
      %v4003 = vpop.f32.mrb[0].mxu0
      %v4004 = vadd.f32 %v3263, %v4003
      %v4005 = vpop.f32.mrb[0].mxu0
      %4006 = vmatprep.mubr.bf16.mxu0 0
      %4007 = vmatmul.mubr.bf16.gmra.mrb[0].mxu0 %v3432
      %v4008 = vpop.f32.mrb[0].mxu0
      %v4009 = vadd.f32 %v3263, %v4008
      %v4010 = vpop.f32.mrb[0].mxu0
      %v4011 = vpop.f32.mrb[0].mxu0
      %v4012 = vadd.f32 %v3263, %v4011
      %v4013 = vpop.f32.mrb[0].mxu0
      %4014 = vmatprep.mubr.bf16.mxu0 0
      %4015 = vmatmul.mubr.bf16.gmra.mrb[0].mxu0 %v3435
      %v4016 = vpop.f32.mrb[0].mxu0
      %v4017 = vadd.f32 %v3263, %v4016
      %v4018 = vpop.f32.mrb[0].mxu0
      %v4019 = vpop.f32.mrb[0].mxu0
      %v4020 = vadd.f32 %v3263, %v4019
      %v4021 = vpop.f32.mrb[0].mxu0
      %4022 = vmatprep.mubr.bf16.mxu0 0
      %4023 = vmatmul.mubr.bf16.gmra.mrb[0].mxu0 %v3438
      %v4024 = vpop.f32.mrb[0].mxu0
      %v4025 = vadd.f32 %v3263, %v4024
      %v4026 = vpop.f32.mrb[0].mxu0
      %v4027 = vpop.f32.mrb[0].mxu0
      %v4028 = vadd.f32 %v3263, %v4027
      %v4029 = vpop.f32.mrb[0].mxu0
      %4030 = vmatprep.mubr.bf16.mxu0 0
      %4031 = vmatmul.mubr.bf16.gmra.mrb[0].mxu0 %v3441
      %v4032 = vpop.f32.mrb[0].mxu0
      %v4033 = vadd.f32 %v3263, %v4032
      %v4034 = vpop.f32.mrb[0].mxu0
      %v4035 = vpop.f32.mrb[0].mxu0
      %v4036 = vadd.f32 %v3263, %v4035
      %v4037 = vpop.f32.mrb[0].mxu0
      %4038 = vmatprep.mubr.bf16.mxu0 0
      %4039 = vmatmul.mubr.bf16.gmra.mrb[0].mxu0 %v3444
      %v4040 = vpop.f32.mrb[0].mxu0
      %v4041 = vadd.f32 %v3263, %v4040
      %v4042 = vpop.f32.mrb[0].mxu0
      %v4043 = vpop.f32.mrb[0].mxu0
      %v4044 = vadd.f32 %v3263, %v4043
      %v4045 = vpop.f32.mrb[0].mxu0
      %4046 = vmatprep.mubr.bf16.mxu0 0
      %4047 = vmatmul.mubr.bf16.gmra.mrb[0].mxu0 %v3447
      %v4048 = vpop.f32.mrb[0].mxu0
      %v4049 = vadd.f32 %v3263, %v4048
      %v4050 = vpop.f32.mrb[0].mxu0
      %v4051 = vpop.f32.mrb[0].mxu0
      %v4052 = vadd.f32 %v3263, %v4051
      %v4053 = vpop.f32.mrb[0].mxu0
      %4054 = vmatprep.mubr.bf16.mxu0 0
      %4055 = vmatmul.mubr.bf16.gmra.mrb[0].mxu0 %v3450
      %v4056 = vpop.f32.mrb[0].mxu0
      %v4057 = vadd.f32 %v3263, %v4056
      %v4058 = vpop.f32.mrb[0].mxu0
      %v4059 = vpop.f32.mrb[0].mxu0
      %v4060 = vadd.f32 %v3263, %v4059
      %v4061 = vpop.f32.mrb[0].mxu0
      %4062 = vmatprep.mubr.bf16.mxu0 0
      %4063 = vmatmul.mubr.bf16.gmra.mrb[0].mxu0 %v3453
      %v4064 = vpop.f32.mrb[0].mxu0
      %v4065 = vadd.f32 %v3263, %v4064
      %v4066 = vpop.f32.mrb[0].mxu0
      %v4067 = vpop.f32.mrb[0].mxu0
      %v4068 = vadd.f32 %v3263, %v4067
      %v4069 = vpop.f32.mrb[0].mxu0
      %4070 = vmatprep.mubr.bf16.mxu0 0
      %4071 = vmatmul.mubr.bf16.gmra.mrb[0].mxu0 %v3456
      %v4072 = vpop.f32.mrb[0].mxu0
      %v4073 = vadd.f32 %v3263, %v4072
      %v4074 = vpop.f32.mrb[0].mxu0
      %v4075 = vpop.f32.mrb[0].mxu0
      %v4076 = vadd.f32 %v3263, %v4075
      %v4077 = vpop.f32.mrb[0].mxu0
      %4078 = vmatprep.mubr.bf16.mxu0 0
      %4079 = vmatmul.mubr.bf16.gmra.mrb[0].mxu0 %v3459
      %v4080 = vpop.f32.mrb[0].mxu0
      %v4081 = vadd.f32 %v3263, %v4080
      %v4082 = vpop.f32.mrb[0].mxu0
      %v4083 = vpop.f32.mrb[0].mxu0
      %v4084 = vadd.f32 %v3263, %v4083
      %v4085 = vpop.f32.mrb[0].mxu0
      %4086 = vmatprep.mubr.bf16.mxu0 0
      %4087 = vmatmul.mubr.bf16.gmra.mrb[0].mxu0 %v3462
      %v4088 = vpop.f32.mrb[0].mxu0
      %v4089 = vadd.f32 %v3263, %v4088
      %v4090 = vpop.f32.mrb[0].mxu0
      %v4091 = vpop.f32.mrb[0].mxu0
      %v4092 = vadd.f32 %v3263, %v4091
      %v4093 = vpop.f32.mrb[0].mxu0
      %4094 = vmatprep.mubr.bf16.mxu0 0
      %4095 = vmatmul.mubr.bf16.gmra.mrb[0].mxu0 %v3465
      %v4096 = vpop.f32.mrb[0].mxu0
      %v4097 = vadd.f32 %v3263, %v4096
      %v4098 = vpop.f32.mrb[0].mxu0
      %v4099 = vpop.f32.mrb[0].mxu0
      %v4100 = vadd.f32 %v3263, %v4099
      %v4101 = vpop.f32.mrb[0].mxu0
      %4102 = vmatprep.mubr.bf16.mxu0 0
      %4103 = vmatmul.mubr.bf16.gmra.mrb[0].mxu0 %v3468
      %v4104 = vpop.f32.mrb[0].mxu0
      %v4105 = vadd.f32 %v3263, %v4104
      %v4106 = vpop.f32.mrb[0].mxu0
      %v4107 = vpop.f32.mrb[0].mxu0
      %v4108 = vadd.f32 %v3263, %v4107
      %v4109 = vpop.f32.mrb[0].mxu0
      %4110 = vmatprep.mubr.bf16.mxu0 0
      %4111 = vmatmul.mubr.bf16.gmra.mrb[0].mxu0 %v3471
      %v4112 = vpop.f32.mrb[0].mxu0
      %v4113 = vadd.f32 %v3263, %v4112
      %v4114 = vpop.f32.mrb[0].mxu0
      %v4115 = vpop.f32.mrb[0].mxu0
      %v4116 = vadd.f32 %v3263, %v4115
      %v4117 = vpop.f32.mrb[0].mxu0
      %4118 = vmatprep.mubr.bf16.mxu0 0
      %4119 = vmatmul.mubr.bf16.gmra.mrb[0].mxu0 %v3474
      %v4120 = vpop.f32.mrb[0].mxu0
      %v4121 = vadd.f32 %v3263, %v4120
      %v4122 = vpop.f32.mrb[0].mxu0
      %v4123 = vpop.f32.mrb[0].mxu0
      %v4124 = vadd.f32 %v3263, %v4123
      %v4125 = vpop.f32.mrb[0].mxu0
      %4126 = vmatprep.mubr.bf16.mxu0 0
      %4127 = vmatmul.mubr.bf16.gmra.mrb[0].mxu0 %v3477
      %v4128 = vpop.f32.mrb[0].mxu0
      %v4129 = vadd.f32 %v3263, %v4128
      %v4130 = vpop.f32.mrb[0].mxu0
      %v4131 = vpop.f32.mrb[0].mxu0
      %v4132 = vadd.f32 %v3263, %v4131
      %v4133 = vpop.f32.mrb[0].mxu0
      %4134 = vmatprep.mubr.bf16.mxu0 0
      %4135 = vmatmul.mubr.bf16.gmra.mrb[0].mxu0 %v3480
      %v4136 = vpop.f32.mrb[0].mxu0
      %v4137 = vadd.f32 %v3263, %v4136
      %v4138 = vpop.f32.mrb[0].mxu0
      %v4139 = vpop.f32.mrb[0].mxu0
      %v4140 = vadd.f32 %v3263, %v4139
      %v4141 = vpop.f32.mrb[0].mxu0
      %4142 = vmatprep.mubr.bf16.mxu0 0
      %4143 = vmatmul.mubr.bf16.gmra.mrb[0].mxu0 %v3483
      %v4144 = vpop.f32.mrb[0].mxu0
      %v4145 = vadd.f32 %v3263, %v4144
      %v4146 = vpop.f32.mrb[0].mxu0
      %v4147 = vpop.f32.mrb[0].mxu0
      %v4148 = vadd.f32 %v3263, %v4147
      %v4149 = vpop.f32.mrb[0].mxu0
      %4150 = vmatprep.mubr.bf16.mxu0 0
      %4151 = vmatmul.mubr.bf16.gmra.mrb[0].mxu0 %v3486
      %v4152 = vpop.f32.mrb[0].mxu0
      %v4153 = vadd.f32 %v3263, %v4152
      %v4154 = vpop.f32.mrb[0].mxu0
      %v4155 = vpop.f32.mrb[0].mxu0
      %v4156 = vadd.f32 %v3263, %v4155
      %v4157 = vpop.f32.mrb[0].mxu0
      %4158 = vmatprep.mubr.bf16.mxu0 0
      %4159 = vmatmul.mubr.bf16.gmra.mrb[0].mxu0 %v3489
      %v4160 = vpop.f32.mrb[0].mxu0
      %v4161 = vadd.f32 %v3263, %v4160
      %v4162 = vpop.f32.mrb[0].mxu0
      %v4163 = vpop.f32.mrb[0].mxu0
      %v4164 = vadd.f32 %v3263, %v4163
      %v4165 = vpop.f32.mrb[0].mxu0
      %4166 = vmatprep.mubr.bf16.mxu0 0
      %4167 = vmatmul.mubr.bf16.gmra.mrb[0].mxu0 %v3492
      %v4168 = vpop.f32.mrb[0].mxu0
      %v4169 = vadd.f32 %v3263, %v4168
      %v4170 = vpop.f32.mrb[0].mxu0
      %v4171 = vpop.f32.mrb[0].mxu0
      %v4172 = vadd.f32 %v3263, %v4171
      %v4173 = vpop.f32.mrb[0].mxu0
      %4174 = vmatprep.mubr.bf16.mxu0 0
      %4175 = vmatmul.mubr.bf16.gmra.mrb[0].mxu0 %v3495
      %v4176 = vpop.f32.mrb[0].mxu0
      %v4177 = vadd.f32 %v3263, %v4176
      %v4178 = vpop.f32.mrb[0].mxu0
      %v4179 = vpop.f32.mrb[0].mxu0
      %v4180 = vadd.f32 %v3263, %v4179
      %v4181 = vpop.f32.mrb[0].mxu0
      %4182 = vmatprep.mubr.bf16.mxu0 0
      %4183 = vmatmul.mubr.bf16.gmra.mrb[0].mxu0 %v3498
      %v4184 = vpop.f32.mrb[0].mxu0
      %v4185 = vadd.f32 %v3263, %v4184
      %v4186 = vpop.f32.mrb[0].mxu0
      %v4187 = vpop.f32.mrb[0].mxu0
      %v4188 = vadd.f32 %v3263, %v4187
      %v4189 = vpop.f32.mrb[0].mxu0
      %4190 = vmatprep.mubr.bf16.mxu0 0
      %4191 = vmatmul.mubr.bf16.gmra.mrb[0].mxu0 %v3501
      %v4192 = vpop.f32.mrb[0].mxu0
      %v4193 = vadd.f32 %v3263, %v4192
      %v4194 = vpop.f32.mrb[0].mxu0
      %v4195 = vpop.f32.mrb[0].mxu0
      %v4196 = vadd.f32 %v3263, %v4195
      %v4197 = vpop.f32.mrb[0].mxu0
      %4198 = vmatprep.mubr.bf16.mxu0 0
      %4199 = vmatmul.mubr.bf16.gmra.mrb[0].mxu0 %v3504
      %v4200 = vpop.f32.mrb[0].mxu0
      %v4201 = vadd.f32 %v3263, %v4200
      %v4202 = vpop.f32.mrb[0].mxu0
      %v4203 = vpop.f32.mrb[0].mxu0
      %v4204 = vadd.f32 %v3263, %v4203
      %v4205 = vpop.f32.mrb[0].mxu0
      %4206 = vmatprep.mubr.bf16.mxu0 0
      %4207 = vmatmul.mubr.bf16.gmra.mrb[0].mxu0 %v3507
      %v4208 = vpop.f32.mrb[0].mxu0
      %v4209 = vadd.f32 %v3263, %v4208
      %v4210 = vpop.f32.mrb[0].mxu0
      %v4211 = vpop.f32.mrb[0].mxu0
      %v4212 = vadd.f32 %v3263, %v4211
      %v4213 = vpop.f32.mrb[0].mxu0
      %4214 = vmatprep.mubr.bf16.mxu0 0
      %4215 = vmatmul.mubr.bf16.gmra.mrb[0].mxu0 %v3510
      %v4216 = vpop.f32.mrb[0].mxu0
      %v4217 = vadd.f32 %v3263, %v4216
      %v4218 = vpop.f32.mrb[0].mxu0
      %v4219 = vpop.f32.mrb[0].mxu0
      %v4220 = vadd.f32 %v3263, %v4219
      %v4221 = vpop.f32.mrb[0].mxu0
      %4222 = vmatprep.mubr.bf16.mxu0 0
      %4223 = vmatmul.mubr.bf16.gmra.mrb[0].mxu0 %v3513
      %v4224 = vpop.f32.mrb[0].mxu0
      %v4225 = vadd.f32 %v3263, %v4224
      %v4226 = vpop.f32.mrb[0].mxu0
      %v4227 = vpop.f32.mrb[0].mxu0
      %v4228 = vadd.f32 %v3263, %v4227
      %v4229 = vpop.f32.mrb[0].mxu0
      %4230 = vmatprep.mubr.bf16.mxu0 0
      %4231 = vmatmul.mubr.bf16.gmra.mrb[0].mxu0 %v3516
      %v4232 = vpop.f32.mrb[0].mxu0
      %v4233 = vadd.f32 %v3263, %v4232
      %v4234 = vpop.f32.mrb[0].mxu0
      %v4235 = vpop.f32.mrb[0].mxu0
      %v4236 = vadd.f32 %v3263, %v4235
      %v4237 = vpop.f32.mrb[0].mxu0
      %4238 = vmatprep.mubr.bf16.mxu0 0
      %4239 = vmatmul.mubr.bf16.gmra.mrb[0].mxu0 %v3519
      %v4240 = vpop.f32.mrb[0].mxu0
      %v4241 = vadd.f32 %v3263, %v4240
      %v4242 = vpop.f32.mrb[0].mxu0
      %v4243 = vpop.f32.mrb[0].mxu0
      %v4244 = vadd.f32 %v3263, %v4243
      %v4245 = vpop.f32.mrb[0].mxu0
      %4246 = vmatprep.mubr.bf16.mxu0 0
      %4247 = vmatmul.mubr.bf16.gmra.mrb[0].mxu0 %v3522
      %v4248 = vpop.f32.mrb[0].mxu0
      %v4249 = vadd.f32 %v3263, %v4248
      %v4250 = vpop.f32.mrb[0].mxu0
      %v4251 = vpop.f32.mrb[0].mxu0
      %v4252 = vadd.f32 %v3263, %v4251
      %v4253 = vpop.f32.mrb[0].mxu0
      %4254 = vmatprep.mubr.bf16.mxu0 0
      %4255 = vmatmul.mubr.bf16.gmra.mrb[0].mxu0 %v3525
      %v4256 = vpop.f32.mrb[0].mxu0
      %v4257 = vadd.f32 %v3263, %v4256
      %v4258 = vpop.f32.mrb[0].mxu0
      %v4259 = vpop.f32.mrb[0].mxu0
      %v4260 = vadd.f32 %v3263, %v4259
      %v4261 = vpop.f32.mrb[0].mxu0
      %4262 = vmatprep.mubr.bf16.mxu0 0
      %4263 = vmatmul.mubr.bf16.gmra.mrb[0].mxu0 %v3528
      %v4264 = vpop.f32.mrb[0].mxu0
      %v4265 = vadd.f32 %v3263, %v4264
      %v4266 = vpop.f32.mrb[0].mxu0
      %v4267 = vpop.f32.mrb[0].mxu0
      %v4268 = vadd.f32 %v3263, %v4267
      %v4269 = vpop.f32.mrb[0].mxu0
      %4270 = vmatprep.mubr.bf16.mxu0 0
      %4271 = vmatmul.mubr.bf16.gmra.mrb[0].mxu0 %v3531
      %v4272 = vpop.f32.mrb[0].mxu0
      %v4273 = vadd.f32 %v3263, %v4272
      %v4274 = vpop.f32.mrb[0].mxu0
      %v4275 = vpop.f32.mrb[0].mxu0
      %v4276 = vadd.f32 %v3263, %v4275
      %v4277 = vpop.f32.mrb[0].mxu0
      %4278 = vmatprep.mubr.bf16.mxu0 0
      %4279 = vmatmul.mubr.bf16.gmra.mrb[0].mxu0 %v3534
      %v4280 = vpop.f32.mrb[0].mxu0
      %v4281 = vadd.f32 %v3263, %v4280
      %v4282 = vpop.f32.mrb[0].mxu0
      %v4283 = vpop.f32.mrb[0].mxu0
      %v4284 = vadd.f32 %v3263, %v4283
      %v4285 = vpop.f32.mrb[0].mxu0
      %4286 = vmatprep.mubr.bf16.mxu0 0
      %4287 = vmatmul.mubr.bf16.gmra.mrb[0].mxu0 %v3537
      %v4288 = vpop.f32.mrb[0].mxu0
      %v4289 = vadd.f32 %v3263, %v4288
      %v4290 = vpop.f32.mrb[0].mxu0
      %v4291 = vpop.f32.mrb[0].mxu0
      %v4292 = vadd.f32 %v3263, %v4291
      %v4293 = vpop.f32.mrb[0].mxu0
      %4294 = vmatprep.mubr.bf16.mxu0 0
      %4295 = vmatmul.mubr.bf16.gmra.mrb[0].mxu0 %v3540
      %v4296 = vpop.f32.mrb[0].mxu0
      %v4297 = vadd.f32 %v3263, %v4296
      %v4298 = vpop.f32.mrb[0].mxu0
      %v4299 = vpop.f32.mrb[0].mxu0
      %v4300 = vadd.f32 %v3263, %v4299
      %v4301 = vpop.f32.mrb[0].mxu0
      %4302 = vmatprep.mubr.bf16.mxu0 0
      %4303 = vmatmul.mubr.bf16.gmra.mrb[0].mxu0 %v3543
      %v4304 = vpop.f32.mrb[0].mxu0
      %v4305 = vadd.f32 %v3263, %v4304
      %v4306 = vpop.f32.mrb[0].mxu0
      %v4307 = vpop.f32.mrb[0].mxu0
      %v4308 = vadd.f32 %v3263, %v4307
      %v4309 = vpop.f32.mrb[0].mxu0
      %4310 = vmatprep.mubr.bf16.mxu0 0
      %4311 = vmatmul.mubr.bf16.gmra.mrb[0].mxu0 %v3546
      %v4312 = vpop.f32.mrb[0].mxu0
      %v4313 = vadd.f32 %v3263, %v4312
      %v4314 = vpop.f32.mrb[0].mxu0
      %v4315 = vpop.f32.mrb[0].mxu0
      %v4316 = vadd.f32 %v3263, %v4315
      %v4317 = vpop.f32.mrb[0].mxu0
      %4318 = vmatprep.mubr.bf16.mxu0 0
      %4319 = vmatmul.mubr.bf16.gmra.mrb[0].mxu0 %v3549
      %v4320 = vpop.f32.mrb[0].mxu0
      %v4321 = vadd.f32 %v3263, %v4320
      %v4322 = vpop.f32.mrb[0].mxu0
      %v4323 = vpop.f32.mrb[0].mxu0
      %v4324 = vadd.f32 %v3263, %v4323
      %v4325 = vpop.f32.mrb[0].mxu0
      %4326 = vmatprep.mubr.bf16.mxu0 0
      %4327 = vmatmul.mubr.bf16.gmra.mrb[0].mxu0 %v3552
      %v4328 = vpop.f32.mrb[0].mxu0
      %v4329 = vadd.f32 %v3263, %v4328
      %v4330 = vpop.f32.mrb[0].mxu0
      %v4331 = vpop.f32.mrb[0].mxu0
      %v4332 = vadd.f32 %v3263, %v4331
      %v4333 = vpop.f32.mrb[0].mxu0
      %4334 = vmatprep.mubr.bf16.mxu0 0
      %4335 = vmatmul.mubr.bf16.gmra.mrb[0].mxu0 %v3555
      %v4336 = vpop.f32.mrb[0].mxu0
      %v4337 = vadd.f32 %v3263, %v4336
      %v4338 = vpop.f32.mrb[0].mxu0
      %v4339 = vpop.f32.mrb[0].mxu0
      %v4340 = vadd.f32 %v3263, %v4339
      %v4341 = vpop.f32.mrb[0].mxu0
      %4342 = vmatprep.mubr.bf16.mxu0 0
      %4343 = vmatmul.mubr.bf16.gmra.mrb[0].mxu0 %v3558
      %v4344 = vpop.f32.mrb[0].mxu0
      %v4345 = vadd.f32 %v3263, %v4344
      %v4346 = vpop.f32.mrb[0].mxu0
      %v4347 = vpop.f32.mrb[0].mxu0
      %v4348 = vadd.f32 %v3263, %v4347
      %v4349 = vpop.f32.mrb[0].mxu0
      %4350 = vmatprep.mubr.bf16.mxu0 0
      %4351 = vmatmul.mubr.bf16.gmra.mrb[0].mxu0 %v3561
      %v4352 = vpop.f32.mrb[0].mxu0
      %v4353 = vadd.f32 %v3263, %v4352
      %v4354 = vpop.f32.mrb[0].mxu0
      %v4355 = vpop.f32.mrb[0].mxu0
      %v4356 = vadd.f32 %v3263, %v4355
      %v4357 = vpop.f32.mrb[0].mxu0
      %4358 = vmatprep.mubr.bf16.mxu0 0
      %4359 = vmatmul.mubr.bf16.gmra.mrb[0].mxu0 %v3564
      %v4360 = vpop.f32.mrb[0].mxu0
      %v4361 = vadd.f32 %v3263, %v4360
      %v4362 = vpop.f32.mrb[0].mxu0
      %v4363 = vpop.f32.mrb[0].mxu0
      %v4364 = vadd.f32 %v3263, %v4363
      %v4365 = vpop.f32.mrb[0].mxu0
      %4366 = vdwg.mxu0
      %v4367 = vmax.f32 %v3601, 0.0
      %v4368 = vmax.f32 %v3604, 0.0
      %v4369 = vmax.f32 %v3609, 0.0
      %v4370 = vmax.f32 %v3612, 0.0
      %v4371 = vmax.f32 %v3617, 0.0
      %v4372 = vmax.f32 %v3620, 0.0
      %v4373 = vmax.f32 %v3625, 0.0
      %v4374 = vmax.f32 %v3628, 0.0
      %v4375 = vmax.f32 %v3633, 0.0
      %v4376 = vmax.f32 %v3636, 0.0
      %v4377 = vmax.f32 %v3641, 0.0
      %v4378 = vmax.f32 %v3644, 0.0
      %v4379 = vmax.f32 %v3649, 0.0
      %v4380 = vmax.f32 %v3652, 0.0
      %v4381 = vmax.f32 %v3657, 0.0
      %v4382 = vmax.f32 %v3660, 0.0
      %v4383 = vmax.f32 %v3665, 0.0
      %v4384 = vmax.f32 %v3668, 0.0
      %v4385 = vmax.f32 %v3673, 0.0
      %v4386 = vmax.f32 %v3676, 0.0
      %v4387 = vmax.f32 %v3681, 0.0
      %v4388 = vmax.f32 %v3684, 0.0
      %v4389 = vmax.f32 %v3689, 0.0
      %v4390 = vmax.f32 %v3692, 0.0
      %v4391 = vmax.f32 %v3697, 0.0
      %v4392 = vmax.f32 %v3700, 0.0
      %v4393 = vmax.f32 %v3705, 0.0
      %v4394 = vmax.f32 %v3708, 0.0
      %v4395 = vmax.f32 %v3713, 0.0
      %v4396 = vmax.f32 %v3716, 0.0
      %v4397 = vmax.f32 %v3721, 0.0
      %v4398 = vmax.f32 %v3724, 0.0
      %v4399 = vmax.f32 %v3729, 0.0
      %v4400 = vmax.f32 %v3732, 0.0
      %v4401 = vmax.f32 %v3737, 0.0
      %v4402 = vmax.f32 %v3740, 0.0
      %v4403 = vmax.f32 %v3745, 0.0
      %v4404 = vmax.f32 %v3748, 0.0
      %v4405 = vmax.f32 %v3753, 0.0
      %v4406 = vmax.f32 %v3756, 0.0
      %v4407 = vmax.f32 %v3761, 0.0
      %v4408 = vmax.f32 %v3764, 0.0
      %v4409 = vmax.f32 %v3769, 0.0
      %v4410 = vmax.f32 %v3772, 0.0
      %v4411 = vmax.f32 %v3777, 0.0
      %v4412 = vmax.f32 %v3780, 0.0
      %v4413 = vmax.f32 %v3785, 0.0
      %v4414 = vmax.f32 %v3788, 0.0
      %v4415 = vmax.f32 %v3793, 0.0
      %v4416 = vmax.f32 %v3796, 0.0
      %v4417 = vmax.f32 %v3801, 0.0
      %v4418 = vmax.f32 %v3804, 0.0
      %v4419 = vmax.f32 %v3809, 0.0
      %v4420 = vmax.f32 %v3812, 0.0
      %v4421 = vmax.f32 %v3817, 0.0
      %v4422 = vmax.f32 %v3820, 0.0
      %v4423 = vmax.f32 %v3825, 0.0
      %v4424 = vmax.f32 %v3828, 0.0
      %v4425 = vmax.f32 %v3833, 0.0
      %v4426 = vmax.f32 %v3836, 0.0
      %v4427 = vmax.f32 %v3841, 0.0
      %v4428 = vmax.f32 %v3844, 0.0
      %v4429 = vmax.f32 %v3849, 0.0
      %v4430 = vmax.f32 %v3852, 0.0
      %v4431 = vmax.f32 %v3857, 0.0
      %v4432 = vmax.f32 %v3860, 0.0
      %v4433 = vmax.f32 %v3865, 0.0
      %v4434 = vmax.f32 %v3868, 0.0
      %v4435 = vmax.f32 %v3873, 0.0
      %v4436 = vmax.f32 %v3876, 0.0
      %v4437 = vmax.f32 %v3881, 0.0
      %v4438 = vmax.f32 %v3884, 0.0
      %v4439 = vmax.f32 %v3889, 0.0
      %v4440 = vmax.f32 %v3892, 0.0
      %v4441 = vmax.f32 %v3897, 0.0
      %v4442 = vmax.f32 %v3900, 0.0
      %v4443 = vmax.f32 %v3905, 0.0
      %v4444 = vmax.f32 %v3908, 0.0
      %v4445 = vmax.f32 %v3913, 0.0
      %v4446 = vmax.f32 %v3916, 0.0
      %v4447 = vmax.f32 %v3921, 0.0
      %v4448 = vmax.f32 %v3924, 0.0
      %v4449 = vmax.f32 %v3929, 0.0
      %v4450 = vmax.f32 %v3932, 0.0
      %v4451 = vmax.f32 %v3937, 0.0
      %v4452 = vmax.f32 %v3940, 0.0
      %v4453 = vmax.f32 %v3945, 0.0
      %v4454 = vmax.f32 %v3948, 0.0
      %v4455 = vmax.f32 %v3953, 0.0
      %v4456 = vmax.f32 %v3956, 0.0
      %v4457 = vmax.f32 %v3961, 0.0
      %v4458 = vmax.f32 %v3964, 0.0
      %v4459 = vmax.f32 %v3969, 0.0
      %v4460 = vmax.f32 %v3972, 0.0
      %v4461 = vmax.f32 %v3977, 0.0
      %v4462 = vmax.f32 %v3980, 0.0
      %v4463 = vmax.f32 %v3985, 0.0
      %v4464 = vmax.f32 %v3988, 0.0
      %v4465 = vmax.f32 %v3993, 0.0
      %v4466 = vmax.f32 %v3996, 0.0
      %v4467 = vmax.f32 %v4001, 0.0
      %v4468 = vmax.f32 %v4004, 0.0
      %v4469 = vmax.f32 %v4009, 0.0
      %v4470 = vmax.f32 %v4012, 0.0
      %v4471 = vmax.f32 %v4017, 0.0
      %v4472 = vmax.f32 %v4020, 0.0
      %v4473 = vmax.f32 %v4025, 0.0
      %v4474 = vmax.f32 %v4028, 0.0
      %v4475 = vmax.f32 %v4033, 0.0
      %v4476 = vmax.f32 %v4036, 0.0
      %v4477 = vmax.f32 %v4041, 0.0
      %v4478 = vmax.f32 %v4044, 0.0
      %v4479 = vmax.f32 %v4049, 0.0
      %v4480 = vmax.f32 %v4052, 0.0
      %v4481 = vmax.f32 %v4057, 0.0
      %v4482 = vmax.f32 %v4060, 0.0
      %v4483 = vmax.f32 %v4065, 0.0
      %v4484 = vmax.f32 %v4068, 0.0
      %v4485 = vmax.f32 %v4073, 0.0
      %v4486 = vmax.f32 %v4076, 0.0
      %v4487 = vmax.f32 %v4081, 0.0
      %v4488 = vmax.f32 %v4084, 0.0
      %v4489 = vmax.f32 %v4089, 0.0
      %v4490 = vmax.f32 %v4092, 0.0
      %v4491 = vmax.f32 %v4097, 0.0
      %v4492 = vmax.f32 %v4100, 0.0
      %v4493 = vmax.f32 %v4105, 0.0
      %v4494 = vmax.f32 %v4108, 0.0
      %v4495 = vmax.f32 %v4113, 0.0
      %v4496 = vmax.f32 %v4116, 0.0
      %v4497 = vmax.f32 %v4121, 0.0
      %v4498 = vmax.f32 %v4124, 0.0
      %v4499 = vmax.f32 %v4129, 0.0
      %v4500 = vmax.f32 %v4132, 0.0
      %v4501 = vmax.f32 %v4137, 0.0
      %v4502 = vmax.f32 %v4140, 0.0
      %v4503 = vmax.f32 %v4145, 0.0
      %v4504 = vmax.f32 %v4148, 0.0
      %v4505 = vmax.f32 %v4153, 0.0
      %v4506 = vmax.f32 %v4156, 0.0
      %v4507 = vmax.f32 %v4161, 0.0
      %v4508 = vmax.f32 %v4164, 0.0
      %v4509 = vmax.f32 %v4169, 0.0
      %v4510 = vmax.f32 %v4172, 0.0
      %v4511 = vmax.f32 %v4177, 0.0
      %v4512 = vmax.f32 %v4180, 0.0
      %v4513 = vmax.f32 %v4185, 0.0
      %v4514 = vmax.f32 %v4188, 0.0
      %v4515 = vmax.f32 %v4193, 0.0
      %v4516 = vmax.f32 %v4196, 0.0
      %v4517 = vmax.f32 %v4201, 0.0
      %v4518 = vmax.f32 %v4204, 0.0
      %v4519 = vmax.f32 %v4209, 0.0
      %v4520 = vmax.f32 %v4212, 0.0
      %v4521 = vmax.f32 %v4217, 0.0
      %v4522 = vmax.f32 %v4220, 0.0
      %v4523 = vmax.f32 %v4225, 0.0
      %v4524 = vmax.f32 %v4228, 0.0
      %v4525 = vmax.f32 %v4233, 0.0
      %v4526 = vmax.f32 %v4236, 0.0
      %v4527 = vmax.f32 %v4241, 0.0
      %v4528 = vmax.f32 %v4244, 0.0
      %v4529 = vmax.f32 %v4249, 0.0
      %v4530 = vmax.f32 %v4252, 0.0
      %v4531 = vmax.f32 %v4257, 0.0
      %v4532 = vmax.f32 %v4260, 0.0
      %v4533 = vmax.f32 %v4265, 0.0
      %v4534 = vmax.f32 %v4268, 0.0
      %v4535 = vmax.f32 %v4273, 0.0
      %v4536 = vmax.f32 %v4276, 0.0
      %v4537 = vmax.f32 %v4281, 0.0
      %v4538 = vmax.f32 %v4284, 0.0
      %v4539 = vmax.f32 %v4289, 0.0
      %v4540 = vmax.f32 %v4292, 0.0
      %v4541 = vmax.f32 %v4297, 0.0
      %v4542 = vmax.f32 %v4300, 0.0
      %v4543 = vmax.f32 %v4305, 0.0
      %v4544 = vmax.f32 %v4308, 0.0
      %v4545 = vmax.f32 %v4313, 0.0
      %v4546 = vmax.f32 %v4316, 0.0
      %v4547 = vmax.f32 %v4321, 0.0
      %v4548 = vmax.f32 %v4324, 0.0
      %v4549 = vmax.f32 %v4329, 0.0
      %v4550 = vmax.f32 %v4332, 0.0
      %v4551 = vmax.f32 %v4337, 0.0
      %v4552 = vmax.f32 %v4340, 0.0
      %v4553 = vmax.f32 %v4345, 0.0
      %v4554 = vmax.f32 %v4348, 0.0
      %v4555 = vmax.f32 %v4353, 0.0
      %v4556 = vmax.f32 %v4356, 0.0
      %v4557 = vmax.f32 %v4361, 0.0
      %v4558 = vmax.f32 %v4364, 0.0
      %v4559 = vsel %vm3277, %v4367, -inf
      %v4560 = vsel %vm3277, %v4368, -inf
      %v4561 = vmax.f32 %v4559, %v4560
      %v4562 = vsel %vm3277, %v4369, -inf
      %v4563 = vmax.f32 %v4561, %v4562
      %v4564 = vsel %vm3277, %v4370, -inf
      %v4565 = vmax.f32 %v4563, %v4564
      %v4566 = vsel %vm3277, %v4371, -inf
      %v4567 = vmax.f32 %v4565, %v4566
      %v4568 = vsel %vm3277, %v4372, -inf
      %v4569 = vmax.f32 %v4567, %v4568
      %v4570 = vsel %vm3277, %v4373, -inf
      %v4571 = vmax.f32 %v4569, %v4570
      %v4572 = vsel %vm3277, %v4374, -inf
      %v4573 = vmax.f32 %v4571, %v4572
      %v4574 = vsel %vm3277, %v4375, -inf
      %v4575 = vsel %vm3277, %v4376, -inf
      %v4576 = vmax.f32 %v4574, %v4575
      %v4577 = vsel %vm3277, %v4377, -inf
      %v4578 = vmax.f32 %v4576, %v4577
      %v4579 = vsel %vm3277, %v4378, -inf
      %v4580 = vmax.f32 %v4578, %v4579
      %v4581 = vsel %vm3277, %v4379, -inf
      %v4582 = vmax.f32 %v4580, %v4581
      %v4583 = vsel %vm3277, %v4380, -inf
      %v4584 = vmax.f32 %v4582, %v4583
      %v4585 = vsel %vm3277, %v4381, -inf
      %v4586 = vmax.f32 %v4584, %v4585
      %v4587 = vsel %vm3277, %v4382, -inf
      %v4588 = vmax.f32 %v4586, %v4587
      %v4589 = vsel %vm3277, %v4383, -inf
      %v4590 = vsel %vm3277, %v4384, -inf
      %v4591 = vmax.f32 %v4589, %v4590
      %v4592 = vsel %vm3277, %v4385, -inf
      %v4593 = vmax.f32 %v4591, %v4592
      %v4594 = vsel %vm3277, %v4386, -inf
      %v4595 = vmax.f32 %v4593, %v4594
      %v4596 = vsel %vm3277, %v4387, -inf
      %v4597 = vmax.f32 %v4595, %v4596
      %v4598 = vsel %vm3277, %v4388, -inf
      %v4599 = vmax.f32 %v4597, %v4598
      %v4600 = vsel %vm3277, %v4389, -inf
      %v4601 = vmax.f32 %v4599, %v4600
      %v4602 = vsel %vm3277, %v4390, -inf
      %v4603 = vmax.f32 %v4601, %v4602
      %v4604 = vsel %vm3277, %v4391, -inf
      %v4605 = vsel %vm3277, %v4392, -inf
      %v4606 = vmax.f32 %v4604, %v4605
      %v4607 = vsel %vm3277, %v4393, -inf
      %v4608 = vmax.f32 %v4606, %v4607
      %v4609 = vsel %vm3277, %v4394, -inf
      %v4610 = vmax.f32 %v4608, %v4609
      %v4611 = vsel %vm3277, %v4395, -inf
      %v4612 = vmax.f32 %v4610, %v4611
      %v4613 = vsel %vm3277, %v4396, -inf
      %v4614 = vmax.f32 %v4612, %v4613
      %v4615 = vsel %vm3277, %v4397, -inf
      %v4616 = vmax.f32 %v4614, %v4615
      %v4617 = vsel %vm3277, %v4398, -inf
      %v4618 = vmax.f32 %v4616, %v4617
      %v4619 = vsel %vm3277, %v4399, -inf
      %v4620 = vsel %vm3277, %v4400, -inf
      %v4621 = vmax.f32 %v4619, %v4620
      %v4622 = vsel %vm3277, %v4401, -inf
      %v4623 = vmax.f32 %v4621, %v4622
      %v4624 = vsel %vm3277, %v4402, -inf
      %v4625 = vmax.f32 %v4623, %v4624
      %v4626 = vsel %vm3277, %v4403, -inf
      %v4627 = vmax.f32 %v4625, %v4626
      %v4628 = vsel %vm3277, %v4404, -inf
      %v4629 = vmax.f32 %v4627, %v4628
      %v4630 = vsel %vm3277, %v4405, -inf
      %v4631 = vmax.f32 %v4629, %v4630
      %v4632 = vsel %vm3277, %v4406, -inf
      %v4633 = vmax.f32 %v4631, %v4632
      %v4634 = vsel %vm3277, %v4407, -inf
      %v4635 = vsel %vm3277, %v4408, -inf
      %v4636 = vmax.f32 %v4634, %v4635
      %v4637 = vsel %vm3277, %v4409, -inf
      %v4638 = vmax.f32 %v4636, %v4637
      %v4639 = vsel %vm3277, %v4410, -inf
      %v4640 = vmax.f32 %v4638, %v4639
      %v4641 = vsel %vm3277, %v4411, -inf
      %v4642 = vmax.f32 %v4640, %v4641
      %v4643 = vsel %vm3277, %v4412, -inf
      %v4644 = vmax.f32 %v4642, %v4643
      %v4645 = vsel %vm3277, %v4413, -inf
      %v4646 = vmax.f32 %v4644, %v4645
      %v4647 = vsel %vm3277, %v4414, -inf
      %v4648 = vmax.f32 %v4646, %v4647
      %v4649 = vsel %vm3277, %v4415, -inf
      %v4650 = vsel %vm3277, %v4416, -inf
      %v4651 = vmax.f32 %v4649, %v4650
      %v4652 = vsel %vm3277, %v4417, -inf
      %v4653 = vmax.f32 %v4651, %v4652
      %v4654 = vsel %vm3277, %v4418, -inf
      %v4655 = vmax.f32 %v4653, %v4654
      %v4656 = vsel %vm3277, %v4419, -inf
      %v4657 = vmax.f32 %v4655, %v4656
      %v4658 = vsel %vm3277, %v4420, -inf
      %v4659 = vmax.f32 %v4657, %v4658
      %v4660 = vsel %vm3277, %v4421, -inf
      %v4661 = vmax.f32 %v4659, %v4660
      %v4662 = vsel %vm3277, %v4422, -inf
      %v4663 = vmax.f32 %v4661, %v4662
      %v4664 = vsel %vm3277, %v4423, -inf
      %v4665 = vsel %vm3277, %v4424, -inf
      %v4666 = vmax.f32 %v4664, %v4665
      %v4667 = vsel %vm3277, %v4425, -inf
      %v4668 = vmax.f32 %v4666, %v4667
      %v4669 = vsel %vm3277, %v4426, -inf
      %v4670 = vmax.f32 %v4668, %v4669
      %v4671 = vsel %vm3277, %v4427, -inf
      %v4672 = vmax.f32 %v4670, %v4671
      %v4673 = vsel %vm3277, %v4428, -inf
      %v4674 = vmax.f32 %v4672, %v4673
      %v4675 = vsel %vm3277, %v4429, -inf
      %v4676 = vmax.f32 %v4674, %v4675
      %v4677 = vsel %vm3277, %v4430, -inf
      %v4678 = vmax.f32 %v4676, %v4677
      %v4679 = vsel %vm3277, %v4431, -inf
      %v4680 = vsel %vm3277, %v4432, -inf
      %v4681 = vmax.f32 %v4679, %v4680
      %v4682 = vsel %vm3277, %v4433, -inf
      %v4683 = vmax.f32 %v4681, %v4682
      %v4684 = vsel %vm3277, %v4434, -inf
      %v4685 = vmax.f32 %v4683, %v4684
      %v4686 = vsel %vm3277, %v4435, -inf
      %v4687 = vmax.f32 %v4685, %v4686
      %v4688 = vsel %vm3277, %v4436, -inf
      %v4689 = vmax.f32 %v4687, %v4688
      %v4690 = vsel %vm3277, %v4437, -inf
      %v4691 = vmax.f32 %v4689, %v4690
      %v4692 = vsel %vm3277, %v4438, -inf
      %v4693 = vmax.f32 %v4691, %v4692
      %v4694 = vsel %vm3277, %v4439, -inf
      %v4695 = vsel %vm3277, %v4440, -inf
      %v4696 = vmax.f32 %v4694, %v4695
      %v4697 = vsel %vm3277, %v4441, -inf
      %v4698 = vmax.f32 %v4696, %v4697
      %v4699 = vsel %vm3277, %v4442, -inf
      %v4700 = vmax.f32 %v4698, %v4699
      %v4701 = vsel %vm3277, %v4443, -inf
      %v4702 = vmax.f32 %v4700, %v4701
      %v4703 = vsel %vm3277, %v4444, -inf
      %v4704 = vmax.f32 %v4702, %v4703
      %v4705 = vsel %vm3277, %v4445, -inf
      %v4706 = vmax.f32 %v4704, %v4705
      %v4707 = vsel %vm3277, %v4446, -inf
      %v4708 = vmax.f32 %v4706, %v4707
      %v4709 = vsel %vm3277, %v4447, -inf
      %v4710 = vsel %vm3277, %v4448, -inf
      %v4711 = vmax.f32 %v4709, %v4710
      %v4712 = vsel %vm3277, %v4449, -inf
      %v4713 = vmax.f32 %v4711, %v4712
      %v4714 = vsel %vm3277, %v4450, -inf
      %v4715 = vmax.f32 %v4713, %v4714
      %v4716 = vsel %vm3277, %v4451, -inf
      %v4717 = vmax.f32 %v4715, %v4716
      %v4718 = vsel %vm3277, %v4452, -inf
      %v4719 = vmax.f32 %v4717, %v4718
      %v4720 = vsel %vm3277, %v4453, -inf
      %v4721 = vmax.f32 %v4719, %v4720
      %v4722 = vsel %vm3277, %v4454, -inf
      %v4723 = vmax.f32 %v4721, %v4722
      %v4724 = vsel %vm3277, %v4455, -inf
      %v4725 = vsel %vm3277, %v4456, -inf
      %v4726 = vmax.f32 %v4724, %v4725
      %v4727 = vsel %vm3277, %v4457, -inf
      %v4728 = vmax.f32 %v4726, %v4727
      %v4729 = vsel %vm3277, %v4458, -inf
      %v4730 = vmax.f32 %v4728, %v4729
      %v4731 = vsel %vm3277, %v4459, -inf
      %v4732 = vmax.f32 %v4730, %v4731
      %v4733 = vsel %vm3277, %v4460, -inf
      %v4734 = vmax.f32 %v4732, %v4733
      %v4735 = vsel %vm3277, %v4461, -inf
      %v4736 = vmax.f32 %v4734, %v4735
      %v4737 = vsel %vm3277, %v4462, -inf
      %v4738 = vmax.f32 %v4736, %v4737
      %v4739 = vsel %vm3277, %v4463, -inf
      %v4740 = vsel %vm3277, %v4464, -inf
      %v4741 = vmax.f32 %v4739, %v4740
      %v4742 = vsel %vm3277, %v4465, -inf
      %v4743 = vmax.f32 %v4741, %v4742
      %v4744 = vsel %vm3277, %v4466, -inf
      %v4745 = vmax.f32 %v4743, %v4744
      %v4746 = vsel %vm3277, %v4467, -inf
      %v4747 = vmax.f32 %v4745, %v4746
      %v4748 = vsel %vm3277, %v4468, -inf
      %v4749 = vmax.f32 %v4747, %v4748
      %v4750 = vsel %vm3277, %v4469, -inf
      %v4751 = vmax.f32 %v4749, %v4750
      %v4752 = vsel %vm3277, %v4470, -inf
      %v4753 = vmax.f32 %v4751, %v4752
      %v4754 = vsel %vm3277, %v4471, -inf
      %v4755 = vsel %vm3277, %v4472, -inf
      %v4756 = vmax.f32 %v4754, %v4755
      %v4757 = vsel %vm3277, %v4473, -inf
      %v4758 = vmax.f32 %v4756, %v4757
      %v4759 = vsel %vm3277, %v4474, -inf
      %v4760 = vmax.f32 %v4758, %v4759
      %v4761 = vsel %vm3277, %v4475, -inf
      %v4762 = vmax.f32 %v4760, %v4761
      %v4763 = vsel %vm3277, %v4476, -inf
      %v4764 = vmax.f32 %v4762, %v4763
      %v4765 = vsel %vm3277, %v4477, -inf
      %v4766 = vmax.f32 %v4764, %v4765
      %v4767 = vsel %vm3277, %v4478, -inf
      %v4768 = vmax.f32 %v4766, %v4767
      %v4769 = vsel %vm3277, %v4479, -inf
      %v4770 = vsel %vm3277, %v4480, -inf
      %v4771 = vmax.f32 %v4769, %v4770
      %v4772 = vsel %vm3277, %v4481, -inf
      %v4773 = vmax.f32 %v4771, %v4772
      %v4774 = vsel %vm3277, %v4482, -inf
      %v4775 = vmax.f32 %v4773, %v4774
      %v4776 = vsel %vm3277, %v4483, -inf
      %v4777 = vmax.f32 %v4775, %v4776
      %v4778 = vsel %vm3277, %v4484, -inf
      %v4779 = vmax.f32 %v4777, %v4778
      %v4780 = vsel %vm3277, %v4485, -inf
      %v4781 = vmax.f32 %v4779, %v4780
      %v4782 = vsel %vm3277, %v4486, -inf
      %v4783 = vmax.f32 %v4781, %v4782
      %v4784 = vsel %vm3277, %v4487, -inf
      %v4785 = vsel %vm3277, %v4488, -inf
      %v4786 = vmax.f32 %v4784, %v4785
      %v4787 = vsel %vm3277, %v4489, -inf
      %v4788 = vmax.f32 %v4786, %v4787
      %v4789 = vsel %vm3277, %v4490, -inf
      %v4790 = vmax.f32 %v4788, %v4789
      %v4791 = vsel %vm3277, %v4491, -inf
      %v4792 = vmax.f32 %v4790, %v4791
      %v4793 = vsel %vm3277, %v4492, -inf
      %v4794 = vmax.f32 %v4792, %v4793
      %v4795 = vsel %vm3277, %v4493, -inf
      %v4796 = vmax.f32 %v4794, %v4795
      %v4797 = vsel %vm3277, %v4494, -inf
      %v4798 = vmax.f32 %v4796, %v4797
      %v4799 = vsel %vm3277, %v4495, -inf
      %v4800 = vsel %vm3277, %v4496, -inf
      %v4801 = vmax.f32 %v4799, %v4800
      %v4802 = vsel %vm3277, %v4497, -inf
      %v4803 = vmax.f32 %v4801, %v4802
      %v4804 = vsel %vm3277, %v4498, -inf
      %v4805 = vmax.f32 %v4803, %v4804
      %v4806 = vsel %vm3277, %v4499, -inf
      %v4807 = vmax.f32 %v4805, %v4806
      %v4808 = vsel %vm3277, %v4500, -inf
      %v4809 = vmax.f32 %v4807, %v4808
      %v4810 = vsel %vm3277, %v4501, -inf
      %v4811 = vmax.f32 %v4809, %v4810
      %v4812 = vsel %vm3277, %v4502, -inf
      %v4813 = vmax.f32 %v4811, %v4812
      %v4814 = vsel %vm3277, %v4503, -inf
      %v4815 = vsel %vm3277, %v4504, -inf
      %v4816 = vmax.f32 %v4814, %v4815
      %v4817 = vsel %vm3277, %v4505, -inf
      %v4818 = vmax.f32 %v4816, %v4817
      %v4819 = vsel %vm3277, %v4506, -inf
      %v4820 = vmax.f32 %v4818, %v4819
      %v4821 = vsel %vm3277, %v4507, -inf
      %v4822 = vmax.f32 %v4820, %v4821
      %v4823 = vsel %vm3277, %v4508, -inf
      %v4824 = vmax.f32 %v4822, %v4823
      %v4825 = vsel %vm3277, %v4509, -inf
      %v4826 = vmax.f32 %v4824, %v4825
      %v4827 = vsel %vm3277, %v4510, -inf
      %v4828 = vmax.f32 %v4826, %v4827
      %v4829 = vsel %vm3277, %v4511, -inf
      %v4830 = vsel %vm3277, %v4512, -inf
      %v4831 = vmax.f32 %v4829, %v4830
      %v4832 = vsel %vm3277, %v4513, -inf
      %v4833 = vmax.f32 %v4831, %v4832
      %v4834 = vsel %vm3277, %v4514, -inf
      %v4835 = vmax.f32 %v4833, %v4834
      %v4836 = vsel %vm3277, %v4515, -inf
      %v4837 = vmax.f32 %v4835, %v4836
      %v4838 = vsel %vm3277, %v4516, -inf
      %v4839 = vmax.f32 %v4837, %v4838
      %v4840 = vsel %vm3277, %v4517, -inf
      %v4841 = vmax.f32 %v4839, %v4840
      %v4842 = vsel %vm3277, %v4518, -inf
      %v4843 = vmax.f32 %v4841, %v4842
      %v4844 = vsel %vm3277, %v4519, -inf
      %v4845 = vsel %vm3277, %v4520, -inf
      %v4846 = vmax.f32 %v4844, %v4845
      %v4847 = vsel %vm3277, %v4521, -inf
      %v4848 = vmax.f32 %v4846, %v4847
      %v4849 = vsel %vm3277, %v4522, -inf
      %v4850 = vmax.f32 %v4848, %v4849
      %v4851 = vsel %vm3277, %v4523, -inf
      %v4852 = vmax.f32 %v4850, %v4851
      %v4853 = vsel %vm3277, %v4524, -inf
      %v4854 = vmax.f32 %v4852, %v4853
      %v4855 = vsel %vm3277, %v4525, -inf
      %v4856 = vmax.f32 %v4854, %v4855
      %v4857 = vsel %vm3277, %v4526, -inf
      %v4858 = vmax.f32 %v4856, %v4857
      %v4859 = vsel %vm3277, %v4527, -inf
      %v4860 = vsel %vm3277, %v4528, -inf
      %v4861 = vmax.f32 %v4859, %v4860
      %v4862 = vsel %vm3277, %v4529, -inf
      %v4863 = vmax.f32 %v4861, %v4862
      %v4864 = vsel %vm3277, %v4530, -inf
      %v4865 = vmax.f32 %v4863, %v4864
      %v4866 = vsel %vm3277, %v4531, -inf
      %v4867 = vmax.f32 %v4865, %v4866
      %v4868 = vsel %vm3277, %v4532, -inf
      %v4869 = vmax.f32 %v4867, %v4868
      %v4870 = vsel %vm3277, %v4533, -inf
      %v4871 = vmax.f32 %v4869, %v4870
      %v4872 = vsel %vm3277, %v4534, -inf
      %v4873 = vmax.f32 %v4871, %v4872
      %v4874 = vsel %vm3277, %v4535, -inf
      %v4875 = vsel %vm3277, %v4536, -inf
      %v4876 = vmax.f32 %v4874, %v4875
      %v4877 = vsel %vm3277, %v4537, -inf
      %v4878 = vmax.f32 %v4876, %v4877
      %v4879 = vsel %vm3277, %v4538, -inf
      %v4880 = vmax.f32 %v4878, %v4879
      %v4881 = vsel %vm3277, %v4539, -inf
      %v4882 = vmax.f32 %v4880, %v4881
      %v4883 = vsel %vm3277, %v4540, -inf
      %v4884 = vmax.f32 %v4882, %v4883
      %v4885 = vsel %vm3277, %v4541, -inf
      %v4886 = vmax.f32 %v4884, %v4885
      %v4887 = vsel %vm3277, %v4542, -inf
      %v4888 = vmax.f32 %v4886, %v4887
      %v4889 = vsel %vm3277, %v4543, -inf
      %v4890 = vsel %vm3277, %v4544, -inf
      %v4891 = vmax.f32 %v4889, %v4890
      %v4892 = vsel %vm3277, %v4545, -inf
      %v4893 = vmax.f32 %v4891, %v4892
      %v4894 = vsel %vm3277, %v4546, -inf
      %v4895 = vmax.f32 %v4893, %v4894
      %v4896 = vsel %vm3277, %v4547, -inf
      %v4897 = vmax.f32 %v4895, %v4896
      %v4898 = vsel %vm3277, %v4548, -inf
      %v4899 = vmax.f32 %v4897, %v4898
      %v4900 = vsel %vm3277, %v4549, -inf
      %v4901 = vmax.f32 %v4899, %v4900
      %v4902 = vsel %vm3277, %v4550, -inf
      %v4903 = vmax.f32 %v4901, %v4902
      %v4904 = vsel %vm3277, %v4551, -inf
      %v4905 = vsel %vm3277, %v4552, -inf
      %v4906 = vmax.f32 %v4904, %v4905
      %v4907 = vsel %vm3277, %v4553, -inf
      %v4908 = vmax.f32 %v4906, %v4907
      %v4909 = vsel %vm3277, %v4554, -inf
      %v4910 = vmax.f32 %v4908, %v4909
      %v4911 = vsel %vm3277, %v4555, -inf
      %v4912 = vmax.f32 %v4910, %v4911
      %v4913 = vsel %vm3277, %v4556, -inf
      %v4914 = vmax.f32 %v4912, %v4913
      %v4915 = vsel %vm3277, %v4557, -inf
      %v4916 = vmax.f32 %v4914, %v4915
      %v4917 = vsel %vm3277, %v4558, -inf
      %v4918 = vmax.f32 %v4916, %v4917
      %v4919 = vsel %vm3277, %v4573, 0.0
      %v4920 = vsel %vm3277, %v4588, 0.0
      %v4921 = vadd.f32 %v4919, %v4920
      %v4922 = vsel %vm3277, %v4603, 0.0
      %v4923 = vadd.f32 %v4921, %v4922
      %v4924 = vsel %vm3277, %v4618, 0.0
      %v4925 = vsel %vm3277, %v4633, 0.0
      %v4926 = vadd.f32 %v4924, %v4925
      %v4927 = vsel %vm3277, %v4648, 0.0
      %v4928 = vadd.f32 %v4926, %v4927
      %v4929 = vsel %vm3277, %v4663, 0.0
      %v4930 = vsel %vm3277, %v4678, 0.0
      %v4931 = vadd.f32 %v4929, %v4930
      %v4932 = vsel %vm3277, %v4693, 0.0
      %v4933 = vadd.f32 %v4931, %v4932
      %v4934 = vsel %vm3277, %v4708, 0.0
      %v4935 = vsel %vm3277, %v4723, 0.0
      %v4936 = vadd.f32 %v4934, %v4935
      %v4937 = vsel %vm3277, %v4738, 0.0
      %v4938 = vadd.f32 %v4936, %v4937
      %v4939 = vsel %vm3277, %v4753, 0.0
      %v4940 = vsel %vm3277, %v4768, 0.0
      %v4941 = vadd.f32 %v4939, %v4940
      %v4942 = vsel %vm3277, %v4783, 0.0
      %v4943 = vadd.f32 %v4941, %v4942
      %v4944 = vsel %vm3277, %v4798, 0.0
      %v4945 = vsel %vm3277, %v4813, 0.0
      %v4946 = vadd.f32 %v4944, %v4945
      %v4947 = vsel %vm3277, %v4828, 0.0
      %v4948 = vadd.f32 %v4946, %v4947
      %v4949 = vsel %vm3277, %v4843, 0.0
      %v4950 = vsel %vm3277, %v4858, 0.0
      %v4951 = vadd.f32 %v4949, %v4950
      %v4952 = vsel %vm3277, %v4873, 0.0
      %v4953 = vadd.f32 %v4951, %v4952
      %v4954 = vsel %vm3277, %v4888, 0.0
      %v4955 = vsel %vm3277, %v4903, 0.0
      %v4956 = vadd.f32 %v4954, %v4955
      %v4957 = vsel %vm3277, %v4918, 0.0
      %v4958 = vadd.f32 %v4956, %v4957
      %v4967 = vrot.slane %v4928, 7
      %vm4968 = vcmask 1041409
      %v4969 = vsel %vm4968, %v4967, %v4923
      %v4970 = vrot.slane %v4933, 6
      %vm4971 = vcmask 1042434
      %v4972 = vsel %vm4971, %v4970, %v4969
      %v4973 = vrot.slane %v4938, 5
      %vm4974 = vcmask 1043459
      %v4975 = vsel %vm4974, %v4973, %v4972
      %v4976 = vrot.slane %v4943, 4
      %vm4977 = vcmask 1044484
      %v4978 = vsel %vm4977, %v4976, %v4975
      %v4979 = vrot.slane %v4948, 3
      %vm4980 = vcmask 1045509
      %v4981 = vsel %vm4980, %v4979, %v4978
      %v4982 = vrot.slane %v4953, 2
      %vm4983 = vcmask 1046534
      %v4984 = vsel %vm4983, %v4982, %v4981
      %v4985 = vrot.slane %v4958, 1
      %vm4986 = vcmask 1047559
      %v4987 = vsel %vm4986, %v4985, %v4984
      %v4989 = vrot.slane %v4923, 1
      %v4990 = vsel %vm4968, %v4928, %v4989
      %v4991 = vrot.slane %v4933, 7
      %v4992 = vsel %vm4971, %v4991, %v4990
      %v4993 = vrot.slane %v4938, 6
      %v4994 = vsel %vm4974, %v4993, %v4992
      %v4995 = vrot.slane %v4943, 5
      %v4996 = vsel %vm4977, %v4995, %v4994
      %v4997 = vrot.slane %v4948, 4
      %v4998 = vsel %vm4980, %v4997, %v4996
      %v4999 = vrot.slane %v4953, 3
      %v5000 = vsel %vm4983, %v4999, %v4998
      %v5001 = vrot.slane %v4958, 2
      %v5002 = vsel %vm4986, %v5001, %v5000
      %5003 = vrot.lane.b32.xlu0 %v5002, 32
      %v5004 = vpop.permute.xlu0 %5003
      %v5006 = vrot.slane %v4923, 2
      %v5007 = vrot.slane %v4928, 1
      %v5008 = vsel %vm4968, %v5007, %v5006
      %v5009 = vsel %vm4971, %v4933, %v5008
      %v5010 = vrot.slane %v4938, 7
      %v5011 = vsel %vm4974, %v5010, %v5009
      %v5012 = vrot.slane %v4943, 6
      %v5013 = vsel %vm4977, %v5012, %v5011
      %v5014 = vrot.slane %v4948, 5
      %v5015 = vsel %vm4980, %v5014, %v5013
      %v5016 = vrot.slane %v4953, 4
      %v5017 = vsel %vm4983, %v5016, %v5015
      %v5018 = vrot.slane %v4958, 3
      %v5019 = vsel %vm4986, %v5018, %v5017
      %5020 = vrot.lane.b32.xlu0 %v5019, 64
      %v5021 = vpop.permute.xlu0 %5020
      %v5023 = vrot.slane %v4923, 3
      %v5024 = vrot.slane %v4928, 2
      %v5025 = vsel %vm4968, %v5024, %v5023
      %v5026 = vrot.slane %v4933, 1
      %v5027 = vsel %vm4971, %v5026, %v5025
      %v5028 = vsel %vm4974, %v4938, %v5027
      %v5029 = vrot.slane %v4943, 7
      %v5030 = vsel %vm4977, %v5029, %v5028
      %v5031 = vrot.slane %v4948, 6
      %v5032 = vsel %vm4980, %v5031, %v5030
      %v5033 = vrot.slane %v4953, 5
      %v5034 = vsel %vm4983, %v5033, %v5032
      %v5035 = vrot.slane %v4958, 4
      %v5036 = vsel %vm4986, %v5035, %v5034
      %5037 = vrot.lane.b32.xlu0 %v5036, 96
      %v5038 = vpop.permute.xlu0 %5037
      %v5040 = vrot.slane %v4923, 4
      %v5041 = vrot.slane %v4928, 3
      %v5042 = vsel %vm4968, %v5041, %v5040
      %v5043 = vrot.slane %v4933, 2
      %v5044 = vsel %vm4971, %v5043, %v5042
      %v5045 = vrot.slane %v4938, 1
      %v5046 = vsel %vm4974, %v5045, %v5044
      %v5047 = vsel %vm4977, %v4943, %v5046
      %v5048 = vrot.slane %v4948, 7
      %v5049 = vsel %vm4980, %v5048, %v5047
      %v5050 = vrot.slane %v4953, 6
      %v5051 = vsel %vm4983, %v5050, %v5049
      %v5052 = vrot.slane %v4958, 5
      %v5053 = vsel %vm4986, %v5052, %v5051
      %v5055 = vrot.slane %v4923, 5
      %v5056 = vrot.slane %v4928, 4
      %v5057 = vsel %vm4968, %v5056, %v5055
      %v5058 = vrot.slane %v4933, 3
      %v5059 = vsel %vm4971, %v5058, %v5057
      %v5060 = vrot.slane %v4938, 2
      %v5061 = vsel %vm4974, %v5060, %v5059
      %v5062 = vrot.slane %v4943, 1
      %v5063 = vsel %vm4977, %v5062, %v5061
      %v5064 = vsel %vm4980, %v4948, %v5063
      %v5065 = vrot.slane %v4953, 7
      %v5066 = vsel %vm4983, %v5065, %v5064
      %v5067 = vrot.slane %v4958, 6
      %v5068 = vsel %vm4986, %v5067, %v5066
      %5069 = vrot.lane.b32.xlu0 %v5068, 32
      %v5070 = vpop.permute.xlu0 %5069
      %v5072 = vrot.slane %v4923, 6
      %v5073 = vrot.slane %v4928, 5
      %v5074 = vsel %vm4968, %v5073, %v5072
      %v5075 = vrot.slane %v4933, 4
      %v5076 = vsel %vm4971, %v5075, %v5074
      %v5077 = vrot.slane %v4938, 3
      %v5078 = vsel %vm4974, %v5077, %v5076
      %v5079 = vrot.slane %v4943, 2
      %v5080 = vsel %vm4977, %v5079, %v5078
      %v5081 = vrot.slane %v4948, 1
      %v5082 = vsel %vm4980, %v5081, %v5080
      %v5083 = vsel %vm4983, %v4953, %v5082
      %v5084 = vrot.slane %v4958, 7
      %v5085 = vsel %vm4986, %v5084, %v5083
      %5086 = vrot.lane.b32.xlu0 %v5085, 64
      %v5087 = vpop.permute.xlu0 %5086
      %v5089 = vrot.slane %v4923, 7
      %v5090 = vrot.slane %v4928, 6
      %v5091 = vsel %vm4968, %v5090, %v5089
      %v5092 = vrot.slane %v4933, 5
      %v5093 = vsel %vm4971, %v5092, %v5091
      %v5094 = vrot.slane %v4938, 4
      %v5095 = vsel %vm4974, %v5094, %v5093
      %v5096 = vrot.slane %v4943, 3
      %v5097 = vsel %vm4977, %v5096, %v5095
      %v5098 = vrot.slane %v4948, 2
      %v5099 = vsel %vm4980, %v5098, %v5097
      %v5100 = vrot.slane %v4953, 1
      %v5101 = vsel %vm4983, %v5100, %v5099
      %v5102 = vsel %vm4986, %v4958, %v5101
      %5103 = vrot.lane.b32.xlu0 %v5102, 96
      %v5104 = vpop.permute.xlu0 %5103
      %v5106 = vsel %vm3277, %v4987, %v5004
      %vm5107 = vcmask 523264
      %v5108 = vsel %vm5107, %v5106, %v5021
      %vm5109 = vcmask 785408
      %v5110 = vsel %vm5109, %v5108, %v5038
      %v5111 = vsel %vm3277, %v5053, %v5070
      %v5112 = vsel %vm5107, %v5111, %v5087
      %v5113 = vsel %vm5109, %v5112, %v5104
      %5114 = vst [vmem:[%s224] sm:$0xff] %v5110
      %5115 = vst [vmem:[%s224 + $0x8] sm:$0xff] %v5113
      %p5116 = scmp.lt.s32.totalorder %s16, 1
      %s5117 = scalar_select %p5116, %s16, 1
      %s5118 = smul.addr %s5117, 2
      %s5119 = smul.addr %s5118, 8
      %s5120 = scalar_lea.vmem %s5, %s5119
      // Predicated region
      $region41: #{p4dconv_forward.1} parent=39 // pred_check
        %p5121 = pneg %p144
      $region42: #{p4dconv_forward.1} parent=39 // pred_check_branch
        %5123 = sbr.rel (%p5121) target = $region44
      $region43: #{p4dconv_forward.1} parent=39 // pred_region
        _
      $region44: #{p4dconv_forward.1} parent=39 // pred_fallthru
        _
    $region40: #{p4dconv_forward.1} parent=5 // pred_fallthru
      _
    %p5124 = scmp.le.s32.totalorder 2, %s11
    // Predicated region
    $region45: #{p4dconv_forward.1} parent=5 // pred_check
      %p5125 = pneg %p5124
    $region46: #{p4dconv_forward.1} parent=5 // pred_check_branch
      %5127 = sbr.rel (%p5125) target = $region48
    $region47: #{p4dconv_forward.1} parent=5 // pred_region
      %s5128 = ssub.s32 %s11, 2
      // Predicated region
      $region49: #{p4dconv_forward.1} parent=47 // pred_check
        %p5129 = pneg %p150
      $region50: #{p4dconv_forward.1} parent=47 // pred_check_branch
        %5131 = sbr.rel (%p5129) target = $region52
      $region51: #{p4dconv_forward.1} parent=47 // pred_region
        %p5132 = scmp.lt.s32.totalorder %s17, 1
        %s5133 = scalar_select %p5132, %s17, 1
        %s5134 = smul.addr %s5133, 2
        %s5135 = smul.addr %s5134, 8
        %s5136 = scalar_lea.vmem %s5, %s5135
      $region52: #{p4dconv_forward.1} parent=47 // pred_fallthru
        _
    $region48: #{p4dconv_forward.1} parent=5 // pred_fallthru
      _
  $region6: #{p4dconv_forward.1} parent=0 // loop_footer
    %s15 = sadd.s32 1, %s11
  $region7: #{p4dconv_forward.1} parent=0 // loop_footer_branch
    %10 = sbr.rel target = $region3
  $region8: #{p4dconv_forward.1} parent=0 // loop_exit
    _

</llo_original>
